<compile_context>
chip_gen: v7x
topology: tpu7x:2x2x1
jax: 0.10.0
libtpu: 0.0.40
codegen_flags: <defaults>
</compile_context>

<pallas_src>
import functools
import math

import jax
import jax.numpy as jnp
from jax.experimental import pallas as pl
from jax.experimental.pallas import tpu as pltpu


def _round_up(x, m):
    return ((x + m - 1) // m) * m


def _choose_tm(M, tm_max):
    """Row tile: multiple of 8 sublanes, large enough to amortize the ~0.35us
    per-grid-step overhead, but clamped so the grid has >= 2 blocks (v7x
    megacore sharding of the 'parallel' axis)."""
    if M <= 8:
        return 8
    tm = min(tm_max, _round_up(M, 8), _round_up(-(-M // 2), 8))
    return max(tm, 8)


# ----------------------------------------------------------------------------
# Fused MLP kernel:
#   y = x_0 @ W0_0 + ... + x_{K-1} @ W0_{K-1} + b0        (first layer, split K)
#   per layer: optional LayerNorm, optional ReLU
#   chained Linear layers, all on the VMEM tile
#   optional residual add (y += x_residual), optional L2-normalize
# ----------------------------------------------------------------------------
def _ln_relu(y, do_ln, do_relu):
    if do_ln:
        # nn.LayerNorm(dim), eps=1e-5; affine params at init are (1, 0) => identity.
        # (If trained gamma/beta were loaded they would be two extra resident args.)
        # Single-pass stats: var = E[y^2] - mean^2  (one XLU reduce pair, not two passes).
        mu = jnp.mean(y, axis=-1, keepdims=True)
        ms = jnp.mean(y * y, axis=-1, keepdims=True)
        var = jnp.maximum(ms - mu * mu, 0.0)
        y = (y - mu) * jax.lax.rsqrt(var + 1e-5)
    if do_relu:
        y = jnp.maximum(y, 0.0)
    return y


def _fused_mlp_kernel(*refs, n_inputs, acts, l2norm, residual_idx):
    # refs = [x_0..x_{K-1}, W0_0..W0_{K-1}, b0, (W_i, b_i) for i>=1 ..., out]
    n_layers = len(acts)
    o_ref = refs[-1]

    # Load each input tile once; cast to bf16 so the MXU runs its native path.
    xs = [refs[k][...].astype(jnp.bfloat16) for k in range(n_inputs)]

    p = n_inputs
    # --- first layer: split-K matmul (fused "concat") ---
    y = refs[p + n_inputs][...].astype(jnp.float32)  # bias b0, broadcasts over rows
    for k in range(n_inputs):
        y = y + jnp.dot(xs[k], refs[p + k][...],
                        preferred_element_type=jnp.float32)
    p = p + n_inputs + 1
    y = _ln_relu(y, acts[0][0], acts[0][1])

    # --- remaining layers (bf16 operands into the MXU, f32 accumulation) ---
    for i in range(1, n_layers):
        w = refs[p][...]                                  # bf16, resident
        b = refs[p + 1][...].astype(jnp.float32)
        p += 2
        y = jnp.dot(y.astype(jnp.bfloat16), w, preferred_element_type=jnp.float32) + b
        y = _ln_relu(y, acts[i][0], acts[i][1])

    # --- fused residual (InteractionGNNCell: out = mlp(...) + skip), f32 math ---
    if residual_idx is not None:
        y = y + xs[residual_idx].astype(jnp.float32)

    # --- fused L2 normalize (torch.nn.functional.normalize, p=2, eps=1e-12) ---
    if l2norm:
        ss = jnp.sum(y * y, axis=-1, keepdims=True)
        y = y * jax.lax.rsqrt(jnp.maximum(ss, 1e-24))

    o_ref[...] = y.astype(o_ref.dtype)


def fused_mlp(inputs, layers, *, acts, l2norm=False, residual_idx=None,
              out_dtype=jnp.bfloat16, tm_max=1024):
    """Apply an MLP (list of (W, b)) to the row-wise concat of `inputs`, fully fused.

    inputs:  list of [M, d_k] arrays (same M, any float dtype).  The concat is
             never built: the first-layer weight is split into K-blocks.
    layers:  [(W0, b0), (W1, b1), ...]  with W0: [sum(d_k), h0].
    acts:    per-layer (do_layernorm, do_relu) tuples.
    """
    M = int(inputs[0].shape[0])
    widths = [int(a.shape[1]) for a in inputs]
    dout = int(layers[-1][0].shape[1])

    tm = _choose_tm(M, tm_max)
    grid = (pl.cdiv(M, tm),)

    # Split first-layer weight into per-input K-blocks (static slices, trace-time),
    # weights/biases in bf16 (they are resident and feed the bf16 MXU path).
    w0, b0 = layers[0]
    splits, off = [], 0
    for d in widths:
        splits.append(w0[off:off + d, :].astype(jnp.bfloat16))
        off += d
    assert off == w0.shape[0]

    args = list(inputs) + splits + [b0.astype(jnp.bfloat16)]
    in_specs = (
        [pl.BlockSpec((tm, d), lambda i: (i, 0)) for d in widths]           # row-tiled acts
        + [pl.BlockSpec(tuple(w.shape), lambda i: (0, 0)) for w in splits]  # resident W0_k
        + [pl.BlockSpec(tuple(b0.shape), lambda i: (0, 0))]                 # resident b0
    )
    for (w, b) in layers[1:]:
        args += [w.astype(jnp.bfloat16), b.astype(jnp.bfloat16)]
        in_specs += [pl.BlockSpec(tuple(w.shape), lambda i: (0, 0)),
                     pl.BlockSpec(tuple(b.shape), lambda i: (0, 0))]

    # Advisory cost estimate for XLA's scheduler around the custom call.
    dims = [sum(widths)] + [int(w.shape[1]) for (w, _) in layers]
    flops = 2 * M * sum(dims[i] * dims[i + 1] for i in range(len(layers)))
    transcendentals = M * (sum(1 for a in acts if a[0]) + (1 if l2norm else 0))
    bytes_accessed = (
        sum(int(a.size) * jnp.dtype(a.dtype).itemsize for a in inputs)
        + M * dout * jnp.dtype(out_dtype).itemsize
        + sum(2 * (int(w.size) + int(b.size)) for (w, b) in layers)
    )
    cost = pl.CostEstimate(flops=int(flops),
                           transcendentals=int(transcendentals),
                           bytes_accessed=int(bytes_accessed))

    kernel = functools.partial(
        _fused_mlp_kernel,
        n_inputs=len(inputs),
        acts=tuple(tuple(a) for a in acts),
        l2norm=l2norm,
        residual_idx=residual_idx,
    )
    return pl.pallas_call(
        kernel,
        out_shape=jax.ShapeDtypeStruct((M, dout), out_dtype),
        grid=grid,
        in_specs=in_specs,
        out_specs=pl.BlockSpec((tm, dout), lambda i: (i, 0)),
        compiler_params=pltpu.CompilerParams(dimension_semantics=("parallel",)),
        cost_estimate=cost,
    )(*args)


def mlp_acts(n_layers, layer_norm, output_activation):
    """make_mlp semantics: hidden layers Linear->LN->ReLU; final layer gets
    LN->ReLU only if output_activation, else plain Linear."""
    acts = [(layer_norm, True)] * (n_layers - 1)
    acts.append((layer_norm, True) if output_activation else (False, False))
    return acts


# ----------------------------------------------------------------------------
# Message aggregation: scatter_add(edges, dst, dim_size=N) as a true segmented
# sum, O(E*L).  Accumulate in f32 (edges are carried in bf16 between kernels).
# ----------------------------------------------------------------------------
def scatter_add(edge_feat, dst_idx, num_nodes):
    return jax.ops.segment_sum(edge_feat.astype(jnp.float32), dst_idx,
                               num_segments=num_nodes)


# ----------------------------------------------------------------------------
# Deterministic parameter initialization (nn.Linear-style uniform init)
# ----------------------------------------------------------------------------
def init_linear(key, din, dout):
    kw, kb = jax.random.split(key)
    bound = 1.0 / math.sqrt(din)
    w = jax.random.uniform(kw, (din, dout), jnp.float32, -bound, bound)
    b = jax.random.uniform(kb, (1, dout), jnp.float32, -bound, bound)
    return w, b


def init_mlp(key, din, hidden, dout, n_layers):
    sizes = [din] + [hidden] * (n_layers - 1) + [dout]
    keys = jax.random.split(key, n_layers)
    return [init_linear(keys[i], sizes[i], sizes[i + 1]) for i in range(n_layers)]


def init_block_params(key, hp, iterations):
    keys = jax.random.split(key, 3 + 2 * iterations)
    params = {
        "node_encoder": init_mlp(
            keys[0], hp["spatial_channels"], hp["hidden"], hp["latent"], hp["nb_node_layer"]
        ),
        "edge_encoder": init_mlp(
            keys[1], 2 * hp["spatial_channels"], hp["hidden"], hp["latent"], hp["nb_edge_layer"]
        ),
        "output_layer": init_mlp(
            keys[2], hp["latent"], hp["hidden"], hp["emb_dim"], hp["output_layers"]
        ),
        "cells": [],
    }
    for it in range(iterations):
        if hp["share_weight"] and it > 0:
            params["cells"].append(params["cells"][0])
            continue
        cell = {
            "node_network": init_mlp(
                keys[3 + 2 * it], 2 * hp["latent"], hp["hidden"], hp["latent"], hp["nb_node_layer"]
            ),
            "edge_network": init_mlp(
                keys[4 + 2 * it], 3 * hp["latent"], hp["hidden"], hp["latent"], hp["nb_edge_layer"]
            ),
        }
        params["cells"].append(cell)
    return params


# ----------------------------------------------------------------------------
# Forward pass of InteractionGNNBlock (emb=True path)
# ----------------------------------------------------------------------------
def interaction_gnn_block_forward(params, x, graph, hp):
    ln = hp["layernorm"]
    src, dst = graph[0], graph[1]
    num_nodes = x.shape[0]

    # Encoders (output_activation = hidden_activation -> LN+ReLU on final layer too).
    # Intermediate node/edge state is carried in bf16 between kernels.
    ne = params["node_encoder"]
    nodes = fused_mlp([x], ne, acts=mlp_acts(len(ne), ln, True))

    ee = params["edge_encoder"]
    # concat([x[src], x[dst]]) fused as split-K first layer.
    # TODO(synk): fuse these row gathers into the kernel (scalar-prefetched idx).
    edges = fused_mlp([x[src], x[dst]], ee, acts=mlp_acts(len(ee), ln, True))

    # Interaction cells (standard Exa.TrkX InteractionGNNCell with residuals)
    for cell in params["cells"]:
        # Node update: aggregate incoming edge messages at dst, MLP + residual (fused)
        msgs = scatter_add(edges, dst, num_nodes)
        nn_p = cell["node_network"]
        nodes = fused_mlp(
            [nodes, msgs], nn_p, acts=mlp_acts(len(nn_p), ln, True), residual_idx=0
        )
        # Edge update: MLP on [nodes[src], nodes[dst], edges] + residual (fused)
        en_p = cell["edge_network"]
        edges = fused_mlp(
            [nodes[src], nodes[dst], edges], en_p,
            acts=mlp_acts(len(en_p), ln, True), residual_idx=2,
        )

    # Output MLP (no output activation) + in-kernel L2 normalize; embeddings in f32.
    ol = params["output_layer"]
    embeddings = fused_mlp([nodes], ol, acts=mlp_acts(len(ol), ln, False),
                           l2norm=True, out_dtype=jnp.float32)
    # Return nodes/edges in f32 to preserve the module's output dtype contract.
    return embeddings, nodes.astype(jnp.float32), edges.astype(jnp.float32)


# ----------------------------------------------------------------------------
if __name__ == "__main__":
    hparams = {
        "spatial_channels": 3,
        "hidden": 32,
        "latent": 16,
        "nb_node_layer": 2,
        "nb_edge_layer": 2,
        "output_layers": 2,
        "emb_dim": 8,
        "layernorm": True,
        "hidden_activation": "ReLU",
        "hidden_output_activation": "ReLU",
        "share_weight": False,
    }
    iterations = 2
    num_nodes, num_edges = 64, 128

    key = jax.random.PRNGKey(0)
    k_param, k_x, k_src, k_dst = jax.random.split(key, 4)

    params = init_block_params(k_param, hparams, iterations)
    x = jax.random.normal(k_x, (num_nodes, hparams["spatial_channels"]), jnp.float32)
    graph = jnp.stack(
        [
            jax.random.randint(k_src, (num_edges,), 0, num_nodes, jnp.int32),
            jax.random.randint(k_dst, (num_edges,), 0, num_nodes, jnp.int32),
        ],
        axis=0,
    )

    fwd = jax.jit(lambda p, xx, g: interaction_gnn_block_forward(p, xx, g, hparams))
    embeddings, nodes, edges = fwd(params, x, graph)
    jax.block_until_ready((embeddings, nodes, edges))

    assert embeddings.shape == (num_nodes, hparams["emb_dim"])
    assert nodes.shape == (num_nodes, hparams["latent"])
    assert edges.shape == (num_edges, hparams["latent"])
    assert bool(jnp.all(jnp.isfinite(embeddings)))
    assert bool(jnp.all(jnp.isfinite(nodes)))
    assert bool(jnp.all(jnp.isfinite(edges)))
    # Unit L2 norm check on the embedding output
    norms = jnp.sqrt(jnp.sum(embeddings * embeddings, axis=-1))
    assert bool(jnp.all(jnp.abs(norms - 1.0) < 1e-3))
    # torch.utils.checkpoint / x.requires_grad are autograd-only; no forward effect.
    print("KERNEL_OK")
</pallas_src>

<mosaic_0001>
module attributes {stable_mosaic.version = 11 : i64} {
  func.func @_fused_mlp_kernel(%arg0: i32, %arg1: memref<32x3xf32, #tpu.memory_space<vmem>>, %arg2: memref<3x32xbf16, #tpu.memory_space<vmem>>, %arg3: memref<1x32xbf16, #tpu.memory_space<vmem>>, %arg4: memref<32x16xbf16, #tpu.memory_space<vmem>>, %arg5: memref<1x16xbf16, #tpu.memory_space<vmem>>, %arg6: memref<32x16xbf16, #tpu.memory_space<vmem>>) attributes {dimension_semantics = [#tpu.dimension_semantics<parallel>], iteration_bounds = array<i64: 2>, scalar_prefetch = 0 : i64, scratch_operands = 0 : i64, tpu.core_type = #tpu.core_type<tc>, window_params = [{transform_indices = @transform_0, window_bounds = array<i64: 32, 3>}, {pipeline_mode = #tpu.pipeline_mode<synchronous>, transform_indices = @transform_1, window_bounds = array<i64: 3, 32>}, {pipeline_mode = #tpu.pipeline_mode<synchronous>, transform_indices = @transform_2, window_bounds = array<i64: 1, 32>}, {pipeline_mode = #tpu.pipeline_mode<synchronous>, transform_indices = @transform_3, window_bounds = array<i64: 32, 16>}, {pipeline_mode = #tpu.pipeline_mode<synchronous>, transform_indices = @transform_4, window_bounds = array<i64: 1, 16>}, {transform_indices = @transform_5, window_bounds = array<i64: 32, 16>}]} {
    %c0 = arith.constant 0 : index
    %c0_0 = arith.constant 0 : index
    %0 = vector.load %arg1[%c0, %c0_0] : memref<32x3xf32, #tpu.memory_space<vmem>>, vector<32x3xf32>
    %1 = arith.truncf %0 : vector<32x3xf32> to vector<32x3xbf16>
    %c0_1 = arith.constant 0 : index
    %c0_2 = arith.constant 0 : index
    %2 = vector.load %arg3[%c0_1, %c0_2] : memref<1x32xbf16, #tpu.memory_space<vmem>>, vector<1x32xbf16>
    %3 = arith.extf %2 : vector<1x32xbf16> to vector<1x32xf32>
    %c0_3 = arith.constant 0 : index
    %c0_4 = arith.constant 0 : index
    %4 = vector.load %arg2[%c0_3, %c0_4] : memref<3x32xbf16, #tpu.memory_space<vmem>>, vector<3x32xbf16>
    %cst = arith.constant dense<0.000000e+00> : vector<32x32xf32>
    %5 = tpu.matmul %1, %4, %cst {dimension_numbers = #tpu.dot_dimension_numbers<[1], [0], [0], [1], [0, 0, 1, 1], [], []>} : vector<32x3xbf16>, vector<3x32xbf16>, vector<32x32xf32> -> vector<32x32xf32>
    %6 = vector.broadcast %3 : vector<1x32xf32> to vector<32x32xf32>
    %7 = arith.addf %6, %5 : vector<32x32xf32>
    %cst_5 = arith.constant dense<0.000000e+00> : vector<32xf32>
    %8 = vector.multi_reduction <add>, %7, %cst_5 [1] : vector<32x32xf32> to vector<32xf32>
    %9 = vector.shape_cast %8 : vector<32xf32> to vector<32x1xf32>
    %cst_6 = arith.constant 3.200000e+01 : f32
    %10 = vector.broadcast %cst_6 : f32 to vector<32x1xf32>
    %11 = arith.divf %9, %10 : vector<32x1xf32>
    %12 = arith.mulf %7, %7 : vector<32x32xf32>
    %cst_7 = arith.constant dense<0.000000e+00> : vector<32xf32>
    %13 = vector.multi_reduction <add>, %12, %cst_7 [1] : vector<32x32xf32> to vector<32xf32>
    %14 = vector.shape_cast %13 : vector<32xf32> to vector<32x1xf32>
    %cst_8 = arith.constant 3.200000e+01 : f32
    %15 = vector.broadcast %cst_8 : f32 to vector<32x1xf32>
    %16 = arith.divf %14, %15 : vector<32x1xf32>
    %17 = arith.mulf %11, %11 : vector<32x1xf32>
    %18 = arith.subf %16, %17 : vector<32x1xf32>
    %cst_9 = arith.constant 0.000000e+00 : f32
    %19 = vector.broadcast %cst_9 : f32 to vector<32x1xf32>
    %20 = arith.maximumf %18, %19 : vector<32x1xf32>
    %21 = vector.broadcast %11 : vector<32x1xf32> to vector<32x32xf32>
    %22 = arith.subf %7, %21 : vector<32x32xf32>
    %cst_10 = arith.constant 9.99999974E-6 : f32
    %23 = vector.broadcast %cst_10 : f32 to vector<32x1xf32>
    %24 = arith.addf %20, %23 : vector<32x1xf32>
    %25 = math.rsqrt %24 : vector<32x1xf32>
    %26 = vector.broadcast %25 : vector<32x1xf32> to vector<32x32xf32>
    %27 = arith.mulf %22, %26 : vector<32x32xf32>
    %cst_11 = arith.constant 0.000000e+00 : f32
    %28 = vector.broadcast %cst_11 : f32 to vector<32x32xf32>
    %29 = arith.maximumf %27, %28 : vector<32x32xf32>
    %c0_12 = arith.constant 0 : index
    %c0_13 = arith.constant 0 : index
    %30 = vector.load %arg4[%c0_12, %c0_13] : memref<32x16xbf16, #tpu.memory_space<vmem>>, vector<32x16xbf16>
    %c0_14 = arith.constant 0 : index
    %c0_15 = arith.constant 0 : index
    %31 = vector.load %arg5[%c0_14, %c0_15] : memref<1x16xbf16, #tpu.memory_space<vmem>>, vector<1x16xbf16>
    %32 = arith.extf %31 : vector<1x16xbf16> to vector<1x16xf32>
    %33 = arith.truncf %29 : vector<32x32xf32> to vector<32x32xbf16>
    %cst_16 = arith.constant dense<0.000000e+00> : vector<32x16xf32>
    %34 = tpu.matmul %33, %30, %cst_16 {dimension_numbers = #tpu.dot_dimension_numbers<[1], [0], [0], [1], [0, 0, 1, 1], [], []>} : vector<32x32xbf16>, vector<32x16xbf16>, vector<32x16xf32> -> vector<32x16xf32>
    %35 = vector.broadcast %32 : vector<1x16xf32> to vector<32x16xf32>
    %36 = arith.addf %34, %35 : vector<32x16xf32>
    %cst_17 = arith.constant dense<0.000000e+00> : vector<32xf32>
    %37 = vector.multi_reduction <add>, %36, %cst_17 [1] : vector<32x16xf32> to vector<32xf32>
    %38 = vector.shape_cast %37 : vector<32xf32> to vector<32x1xf32>
    %cst_18 = arith.constant 1.600000e+01 : f32
    %39 = vector.broadcast %cst_18 : f32 to vector<32x1xf32>
    %40 = arith.divf %38, %39 : vector<32x1xf32>
    %41 = arith.mulf %36, %36 : vector<32x16xf32>
    %cst_19 = arith.constant dense<0.000000e+00> : vector<32xf32>
    %42 = vector.multi_reduction <add>, %41, %cst_19 [1] : vector<32x16xf32> to vector<32xf32>
    %43 = vector.shape_cast %42 : vector<32xf32> to vector<32x1xf32>
    %cst_20 = arith.constant 1.600000e+01 : f32
    %44 = vector.broadcast %cst_20 : f32 to vector<32x1xf32>
    %45 = arith.divf %43, %44 : vector<32x1xf32>
    %46 = arith.mulf %40, %40 : vector<32x1xf32>
    %47 = arith.subf %45, %46 : vector<32x1xf32>
    %cst_21 = arith.constant 0.000000e+00 : f32
    %48 = vector.broadcast %cst_21 : f32 to vector<32x1xf32>
    %49 = arith.maximumf %47, %48 : vector<32x1xf32>
    %50 = vector.broadcast %40 : vector<32x1xf32> to vector<32x16xf32>
    %51 = arith.subf %36, %50 : vector<32x16xf32>
    %cst_22 = arith.constant 9.99999974E-6 : f32
    %52 = vector.broadcast %cst_22 : f32 to vector<32x1xf32>
    %53 = arith.addf %49, %52 : vector<32x1xf32>
    %54 = math.rsqrt %53 : vector<32x1xf32>
    %55 = vector.broadcast %54 : vector<32x1xf32> to vector<32x16xf32>
    %56 = arith.mulf %51, %55 : vector<32x16xf32>
    %cst_23 = arith.constant 0.000000e+00 : f32
    %57 = vector.broadcast %cst_23 : f32 to vector<32x16xf32>
    %58 = arith.maximumf %56, %57 : vector<32x16xf32>
    %59 = arith.truncf %58 : vector<32x16xf32> to vector<32x16xbf16>
    %c0_24 = arith.constant 0 : index
    %c0_25 = arith.constant 0 : index
    %60 = vector.load %arg6[%c0_24, %c0_25] : memref<32x16xbf16, #tpu.memory_space<vmem>>, vector<32x16xbf16>
    tpu.vector_store %arg6[%c0_24, %c0_25], %59 {strides = array<i32>} : memref<32x16xbf16, #tpu.memory_space<vmem>>, vector<32x16xbf16>,
    return
  }
  func.func @transform_0(%arg0: i32) -> (i32, i32) {
    %c0_i32 = arith.constant 0 : i32
    %c0_i32_0 = arith.constant 0 : i32
    return %arg0, %c0_i32 : i32, i32
  }
  func.func @transform_1(%arg0: i32) -> (i32, i32) {
    %c0_i32 = arith.constant 0 : i32
    %c0_i32_0 = arith.constant 0 : i32
    %c0_i32_1 = arith.constant 0 : i32
    return %c0_i32, %c0_i32_0 : i32, i32
  }
  func.func @transform_2(%arg0: i32) -> (i32, i32) {
    %c0_i32 = arith.constant 0 : i32
    %c0_i32_0 = arith.constant 0 : i32
    %c0_i32_1 = arith.constant 0 : i32
    return %c0_i32, %c0_i32_0 : i32, i32
  }
  func.func @transform_3(%arg0: i32) -> (i32, i32) {
    %c0_i32 = arith.constant 0 : i32
    %c0_i32_0 = arith.constant 0 : i32
    %c0_i32_1 = arith.constant 0 : i32
    return %c0_i32, %c0_i32_0 : i32, i32
  }
  func.func @transform_4(%arg0: i32) -> (i32, i32) {
    %c0_i32 = arith.constant 0 : i32
    %c0_i32_0 = arith.constant 0 : i32
    %c0_i32_1 = arith.constant 0 : i32
    return %c0_i32, %c0_i32_0 : i32, i32
  }
  func.func @transform_5(%arg0: i32) -> (i32, i32) {
    %c0_i32 = arith.constant 0 : i32
    %c0_i32_0 = arith.constant 0 : i32
    return %arg0, %c0_i32 : i32, i32
  }
}

module attributes {stable_mosaic.version = 11 : i64} {
  func.func @_fused_mlp_kernel(%arg0: i32, %arg1: memref<64x3xf32, #tpu.memory_space<vmem>>, %arg2: memref<64x3xf32, #tpu.memory_space<vmem>>, %arg3: memref<3x32xbf16, #tpu.memory_space<vmem>>, %arg4: memref<3x32xbf16, #tpu.memory_space<vmem>>, %arg5: memref<1x32xbf16, #tpu.memory_space<vmem>>, %arg6: memref<32x16xbf16, #tpu.memory_space<vmem>>, %arg7: memref<1x16xbf16, #tpu.memory_space<vmem>>, %arg8: memref<64x16xbf16, #tpu.memory_space<vmem>>) attributes {dimension_semantics = [#tpu.dimension_semantics<parallel>], iteration_bounds = array<i64: 2>, scalar_prefetch = 0 : i64, scratch_operands = 0 : i64, tpu.core_type = #tpu.core_type<tc>, window_params = [{transform_indices = @transform_0, window_bounds = array<i64: 64, 3>}, {transform_indices = @transform_1, window_bounds = array<i64: 64, 3>}, {pipeline_mode = #tpu.pipeline_mode<synchronous>, transform_indices = @transform_2, window_bounds = array<i64: 3, 32>}, {pipeline_mode = #tpu.pipeline_mode<synchronous>, transform_indices = @transform_3, window_bounds = array<i64: 3, 32>}, {pipeline_mode = #tpu.pipeline_mode<synchronous>, transform_indices = @transform_4, window_bounds = array<i64: 1, 32>}, {pipeline_mode = #tpu.pipeline_mode<synchronous>, transform_indices = @transform_5, window_bounds = array<i64: 32, 16>}, {pipeline_mode = #tpu.pipeline_mode<synchronous>, transform_indices = @transform_6, window_bounds = array<i64: 1, 16>}, {transform_indices = @transform_7, window_bounds = array<i64: 64, 16>}]} {
    %c0 = arith.constant 0 : index
    %c0_0 = arith.constant 0 : index
    %0 = vector.load %arg1[%c0, %c0_0] : memref<64x3xf32, #tpu.memory_space<vmem>>, vector<64x3xf32>
    %1 = arith.truncf %0 : vector<64x3xf32> to vector<64x3xbf16>
    %c0_1 = arith.constant 0 : index
    %c0_2 = arith.constant 0 : index
    %2 = vector.load %arg2[%c0_1, %c0_2] : memref<64x3xf32, #tpu.memory_space<vmem>>, vector<64x3xf32>
    %3 = arith.truncf %2 : vector<64x3xf32> to vector<64x3xbf16>
    %c0_3 = arith.constant 0 : index
    %c0_4 = arith.constant 0 : index
    %4 = vector.load %arg5[%c0_3, %c0_4] : memref<1x32xbf16, #tpu.memory_space<vmem>>, vector<1x32xbf16>
    %5 = arith.extf %4 : vector<1x32xbf16> to vector<1x32xf32>
    %c0_5 = arith.constant 0 : index
    %c0_6 = arith.constant 0 : index
    %6 = vector.load %arg3[%c0_5, %c0_6] : memref<3x32xbf16, #tpu.memory_space<vmem>>, vector<3x32xbf16>
    %cst = arith.constant dense<0.000000e+00> : vector<64x32xf32>
    %7 = tpu.matmul %1, %6, %cst {dimension_numbers = #tpu.dot_dimension_numbers<[1], [0], [0], [1], [0, 0, 1, 1], [], []>} : vector<64x3xbf16>, vector<3x32xbf16>, vector<64x32xf32> -> vector<64x32xf32>
    %8 = vector.broadcast %5 : vector<1x32xf32> to vector<64x32xf32>
    %9 = arith.addf %8, %7 : vector<64x32xf32>
    %c0_7 = arith.constant 0 : index
    %c0_8 = arith.constant 0 : index
    %10 = vector.load %arg4[%c0_7, %c0_8] : memref<3x32xbf16, #tpu.memory_space<vmem>>, vector<3x32xbf16>
    %cst_9 = arith.constant dense<0.000000e+00> : vector<64x32xf32>
    %11 = tpu.matmul %3, %10, %cst_9 {dimension_numbers = #tpu.dot_dimension_numbers<[1], [0], [0], [1], [0, 0, 1, 1], [], []>} : vector<64x3xbf16>, vector<3x32xbf16>, vector<64x32xf32> -> vector<64x32xf32>
    %12 = arith.addf %9, %11 : vector<64x32xf32>
    %cst_10 = arith.constant dense<0.000000e+00> : vector<64xf32>
    %13 = vector.multi_reduction <add>, %12, %cst_10 [1] : vector<64x32xf32> to vector<64xf32>
    %14 = vector.shape_cast %13 : vector<64xf32> to vector<64x1xf32>
    %cst_11 = arith.constant 3.200000e+01 : f32
    %15 = vector.broadcast %cst_11 : f32 to vector<64x1xf32>
    %16 = arith.divf %14, %15 : vector<64x1xf32>
    %17 = arith.mulf %12, %12 : vector<64x32xf32>
    %cst_12 = arith.constant dense<0.000000e+00> : vector<64xf32>
    %18 = vector.multi_reduction <add>, %17, %cst_12 [1] : vector<64x32xf32> to vector<64xf32>
    %19 = vector.shape_cast %18 : vector<64xf32> to vector<64x1xf32>
    %cst_13 = arith.constant 3.200000e+01 : f32
    %20 = vector.broadcast %cst_13 : f32 to vector<64x1xf32>
    %21 = arith.divf %19, %20 : vector<64x1xf32>
    %22 = arith.mulf %16, %16 : vector<64x1xf32>
    %23 = arith.subf %21, %22 : vector<64x1xf32>
    %cst_14 = arith.constant 0.000000e+00 : f32
    %24 = vector.broadcast %cst_14 : f32 to vector<64x1xf32>
    %25 = arith.maximumf %23, %24 : vector<64x1xf32>
    %26 = vector.broadcast %16 : vector<64x1xf32> to vector<64x32xf32>
    %27 = arith.subf %12, %26 : vector<64x32xf32>
    %cst_15 = arith.constant 9.99999974E-6 : f32
    %28 = vector.broadcast %cst_15 : f32 to vector<64x1xf32>
    %29 = arith.addf %25, %28 : vector<64x1xf32>
    %30 = math.rsqrt %29 : vector<64x1xf32>
    %31 = vector.broadcast %30 : vector<64x1xf32> to vector<64x32xf32>
    %32 = arith.mulf %27, %31 : vector<64x32xf32>
    %cst_16 = arith.constant 0.000000e+00 : f32
    %33 = vector.broadcast %cst_16 : f32 to vector<64x32xf32>
    %34 = arith.maximumf %32, %33 : vector<64x32xf32>
    %c0_17 = arith.constant 0 : index
    %c0_18 = arith.constant 0 : index
    %35 = vector.load %arg6[%c0_17, %c0_18] : memref<32x16xbf16, #tpu.memory_space<vmem>>, vector<32x16xbf16>
    %c0_19 = arith.constant 0 : index
    %c0_20 = arith.constant 0 : index
    %36 = vector.load %arg7[%c0_19, %c0_20] : memref<1x16xbf16, #tpu.memory_space<vmem>>, vector<1x16xbf16>
    %37 = arith.extf %36 : vector<1x16xbf16> to vector<1x16xf32>
    %38 = arith.truncf %34 : vector<64x32xf32> to vector<64x32xbf16>
    %cst_21 = arith.constant dense<0.000000e+00> : vector<64x16xf32>
    %39 = tpu.matmul %38, %35, %cst_21 {dimension_numbers = #tpu.dot_dimension_numbers<[1], [0], [0], [1], [0, 0, 1, 1], [], []>} : vector<64x32xbf16>, vector<32x16xbf16>, vector<64x16xf32> -> vector<64x16xf32>
    %40 = vector.broadcast %37 : vector<1x16xf32> to vector<64x16xf32>
    %41 = arith.addf %39, %40 : vector<64x16xf32>
    %cst_22 = arith.constant dense<0.000000e+00> : vector<64xf32>
    %42 = vector.multi_reduction <add>, %41, %cst_22 [1] : vector<64x16xf32> to vector<64xf32>
    %43 = vector.shape_cast %42 : vector<64xf32> to vector<64x1xf32>
    %cst_23 = arith.constant 1.600000e+01 : f32
    %44 = vector.broadcast %cst_23 : f32 to vector<64x1xf32>
    %45 = arith.divf %43, %44 : vector<64x1xf32>
    %46 = arith.mulf %41, %41 : vector<64x16xf32>
    %cst_24 = arith.constant dense<0.000000e+00> : vector<64xf32>
    %47 = vector.multi_reduction <add>, %46, %cst_24 [1] : vector<64x16xf32> to vector<64xf32>
    %48 = vector.shape_cast %47 : vector<64xf32> to vector<64x1xf32>
    %cst_25 = arith.constant 1.600000e+01 : f32
    %49 = vector.broadcast %cst_25 : f32 to vector<64x1xf32>
    %50 = arith.divf %48, %49 : vector<64x1xf32>
    %51 = arith.mulf %45, %45 : vector<64x1xf32>
    %52 = arith.subf %50, %51 : vector<64x1xf32>
    %cst_26 = arith.constant 0.000000e+00 : f32
    %53 = vector.broadcast %cst_26 : f32 to vector<64x1xf32>
    %54 = arith.maximumf %52, %53 : vector<64x1xf32>
    %55 = vector.broadcast %45 : vector<64x1xf32> to vector<64x16xf32>
    %56 = arith.subf %41, %55 : vector<64x16xf32>
    %cst_27 = arith.constant 9.99999974E-6 : f32
    %57 = vector.broadcast %cst_27 : f32 to vector<64x1xf32>
    %58 = arith.addf %54, %57 : vector<64x1xf32>
    %59 = math.rsqrt %58 : vector<64x1xf32>
    %60 = vector.broadcast %59 : vector<64x1xf32> to vector<64x16xf32>
    %61 = arith.mulf %56, %60 : vector<64x16xf32>
    %cst_28 = arith.constant 0.000000e+00 : f32
    %62 = vector.broadcast %cst_28 : f32 to vector<64x16xf32>
    %63 = arith.maximumf %61, %62 : vector<64x16xf32>
    %64 = arith.truncf %63 : vector<64x16xf32> to vector<64x16xbf16>
    %c0_29 = arith.constant 0 : index
    %c0_30 = arith.constant 0 : index
    %65 = vector.load %arg8[%c0_29, %c0_30] : memref<64x16xbf16, #tpu.memory_space<vmem>>, vector<64x16xbf16>
    tpu.vector_store %arg8[%c0_29, %c0_30], %64 {strides = array<i32>} : memref<64x16xbf16, #tpu.memory_space<vmem>>, vector<64x16xbf16>,
    return
  }
  func.func @transform_0(%arg0: i32) -> (i32, i32) {
    %c0_i32 = arith.constant 0 : i32
    %c0_i32_0 = arith.constant 0 : i32
    return %arg0, %c0_i32 : i32, i32
  }
  func.func @transform_1(%arg0: i32) -> (i32, i32) {
    %c0_i32 = arith.constant 0 : i32
    %c0_i32_0 = arith.constant 0 : i32
    return %arg0, %c0_i32 : i32, i32
  }
  func.func @transform_2(%arg0: i32) -> (i32, i32) {
    %c0_i32 = arith.constant 0 : i32
    %c0_i32_0 = arith.constant 0 : i32
    %c0_i32_1 = arith.constant 0 : i32
    return %c0_i32, %c0_i32_0 : i32, i32
  }
  func.func @transform_3(%arg0: i32) -> (i32, i32) {
    %c0_i32 = arith.constant 0 : i32
    %c0_i32_0 = arith.constant 0 : i32
    %c0_i32_1 = arith.constant 0 : i32
    return %c0_i32, %c0_i32_0 : i32, i32
  }
  func.func @transform_4(%arg0: i32) -> (i32, i32) {
    %c0_i32 = arith.constant 0 : i32
    %c0_i32_0 = arith.constant 0 : i32
    %c0_i32_1 = arith.constant 0 : i32
    return %c0_i32, %c0_i32_0 : i32, i32
  }
  func.func @transform_5(%arg0: i32) -> (i32, i32) {
    %c0_i32 = arith.constant 0 : i32
    %c0_i32_0 = arith.constant 0 : i32
    %c0_i32_1 = arith.constant 0 : i32
    return %c0_i32, %c0_i32_0 : i32, i32
  }
  func.func @transform_6(%arg0: i32) -> (i32, i32) {
    %c0_i32 = arith.constant 0 : i32
    %c0_i32_0 = arith.constant 0 : i32
    %c0_i32_1 = arith.constant 0 : i32
    return %c0_i32, %c0_i32_0 : i32, i32
  }
  func.func @transform_7(%arg0: i32) -> (i32, i32) {
    %c0_i32 = arith.constant 0 : i32
    %c0_i32_0 = arith.constant 0 : i32
    return %arg0, %c0_i32 : i32, i32
  }
}

module attributes {stable_mosaic.version = 11 : i64} {
  func.func @_fused_mlp_kernel(%arg0: i32, %arg1: memref<32x16xbf16, #tpu.memory_space<vmem>>, %arg2: memref<32x16xf32, #tpu.memory_space<vmem>>, %arg3: memref<16x32xbf16, #tpu.memory_space<vmem>>, %arg4: memref<16x32xbf16, #tpu.memory_space<vmem>>, %arg5: memref<1x32xbf16, #tpu.memory_space<vmem>>, %arg6: memref<32x16xbf16, #tpu.memory_space<vmem>>, %arg7: memref<1x16xbf16, #tpu.memory_space<vmem>>, %arg8: memref<32x16xbf16, #tpu.memory_space<vmem>>) attributes {dimension_semantics = [#tpu.dimension_semantics<parallel>], iteration_bounds = array<i64: 2>, scalar_prefetch = 0 : i64, scratch_operands = 0 : i64, tpu.core_type = #tpu.core_type<tc>, window_params = [{transform_indices = @transform_0, window_bounds = array<i64: 32, 16>}, {transform_indices = @transform_1, window_bounds = array<i64: 32, 16>}, {pipeline_mode = #tpu.pipeline_mode<synchronous>, transform_indices = @transform_2, window_bounds = array<i64: 16, 32>}, {pipeline_mode = #tpu.pipeline_mode<synchronous>, transform_indices = @transform_3, window_bounds = array<i64: 16, 32>}, {pipeline_mode = #tpu.pipeline_mode<synchronous>, transform_indices = @transform_4, window_bounds = array<i64: 1, 32>}, {pipeline_mode = #tpu.pipeline_mode<synchronous>, transform_indices = @transform_5, window_bounds = array<i64: 32, 16>}, {pipeline_mode = #tpu.pipeline_mode<synchronous>, transform_indices = @transform_6, window_bounds = array<i64: 1, 16>}, {transform_indices = @transform_7, window_bounds = array<i64: 32, 16>}]} {
    %c0 = arith.constant 0 : index
    %c0_0 = arith.constant 0 : index
    %0 = vector.load %arg1[%c0, %c0_0] : memref<32x16xbf16, #tpu.memory_space<vmem>>, vector<32x16xbf16>
    %c0_1 = arith.constant 0 : index
    %c0_2 = arith.constant 0 : index
    %1 = vector.load %arg2[%c0_1, %c0_2] : memref<32x16xf32, #tpu.memory_space<vmem>>, vector<32x16xf32>
    %2 = arith.truncf %1 : vector<32x16xf32> to vector<32x16xbf16>
    %c0_3 = arith.constant 0 : index
    %c0_4 = arith.constant 0 : index
    %3 = vector.load %arg5[%c0_3, %c0_4] : memref<1x32xbf16, #tpu.memory_space<vmem>>, vector<1x32xbf16>
    %4 = arith.extf %3 : vector<1x32xbf16> to vector<1x32xf32>
    %c0_5 = arith.constant 0 : index
    %c0_6 = arith.constant 0 : index
    %5 = vector.load %arg3[%c0_5, %c0_6] : memref<16x32xbf16, #tpu.memory_space<vmem>>, vector<16x32xbf16>
    %cst = arith.constant dense<0.000000e+00> : vector<32x32xf32>
    %6 = tpu.matmul %0, %5, %cst {dimension_numbers = #tpu.dot_dimension_numbers<[1], [0], [0], [1], [0, 0, 1, 1], [], []>} : vector<32x16xbf16>, vector<16x32xbf16>, vector<32x32xf32> -> vector<32x32xf32>
    %7 = vector.broadcast %4 : vector<1x32xf32> to vector<32x32xf32>
    %8 = arith.addf %7, %6 : vector<32x32xf32>
    %c0_7 = arith.constant 0 : index
    %c0_8 = arith.constant 0 : index
    %9 = vector.load %arg4[%c0_7, %c0_8] : memref<16x32xbf16, #tpu.memory_space<vmem>>, vector<16x32xbf16>
    %cst_9 = arith.constant dense<0.000000e+00> : vector<32x32xf32>
    %10 = tpu.matmul %2, %9, %cst_9 {dimension_numbers = #tpu.dot_dimension_numbers<[1], [0], [0], [1], [0, 0, 1, 1], [], []>} : vector<32x16xbf16>, vector<16x32xbf16>, vector<32x32xf32> -> vector<32x32xf32>
    %11 = arith.addf %8, %10 : vector<32x32xf32>
    %cst_10 = arith.constant dense<0.000000e+00> : vector<32xf32>
    %12 = vector.multi_reduction <add>, %11, %cst_10 [1] : vector<32x32xf32> to vector<32xf32>
    %13 = vector.shape_cast %12 : vector<32xf32> to vector<32x1xf32>
    %cst_11 = arith.constant 3.200000e+01 : f32
    %14 = vector.broadcast %cst_11 : f32 to vector<32x1xf32>
    %15 = arith.divf %13, %14 : vector<32x1xf32>
    %16 = arith.mulf %11, %11 : vector<32x32xf32>
    %cst_12 = arith.constant dense<0.000000e+00> : vector<32xf32>
    %17 = vector.multi_reduction <add>, %16, %cst_12 [1] : vector<32x32xf32> to vector<32xf32>
    %18 = vector.shape_cast %17 : vector<32xf32> to vector<32x1xf32>
    %cst_13 = arith.constant 3.200000e+01 : f32
    %19 = vector.broadcast %cst_13 : f32 to vector<32x1xf32>
    %20 = arith.divf %18, %19 : vector<32x1xf32>
    %21 = arith.mulf %15, %15 : vector<32x1xf32>
    %22 = arith.subf %20, %21 : vector<32x1xf32>
    %cst_14 = arith.constant 0.000000e+00 : f32
    %23 = vector.broadcast %cst_14 : f32 to vector<32x1xf32>
    %24 = arith.maximumf %22, %23 : vector<32x1xf32>
    %25 = vector.broadcast %15 : vector<32x1xf32> to vector<32x32xf32>
    %26 = arith.subf %11, %25 : vector<32x32xf32>
    %cst_15 = arith.constant 9.99999974E-6 : f32
    %27 = vector.broadcast %cst_15 : f32 to vector<32x1xf32>
    %28 = arith.addf %24, %27 : vector<32x1xf32>
    %29 = math.rsqrt %28 : vector<32x1xf32>
    %30 = vector.broadcast %29 : vector<32x1xf32> to vector<32x32xf32>
    %31 = arith.mulf %26, %30 : vector<32x32xf32>
    %cst_16 = arith.constant 0.000000e+00 : f32
    %32 = vector.broadcast %cst_16 : f32 to vector<32x32xf32>
    %33 = arith.maximumf %31, %32 : vector<32x32xf32>
    %c0_17 = arith.constant 0 : index
    %c0_18 = arith.constant 0 : index
    %34 = vector.load %arg6[%c0_17, %c0_18] : memref<32x16xbf16, #tpu.memory_space<vmem>>, vector<32x16xbf16>
    %c0_19 = arith.constant 0 : index
    %c0_20 = arith.constant 0 : index
    %35 = vector.load %arg7[%c0_19, %c0_20] : memref<1x16xbf16, #tpu.memory_space<vmem>>, vector<1x16xbf16>
    %36 = arith.extf %35 : vector<1x16xbf16> to vector<1x16xf32>
    %37 = arith.truncf %33 : vector<32x32xf32> to vector<32x32xbf16>
    %cst_21 = arith.constant dense<0.000000e+00> : vector<32x16xf32>
    %38 = tpu.matmul %37, %34, %cst_21 {dimension_numbers = #tpu.dot_dimension_numbers<[1], [0], [0], [1], [0, 0, 1, 1], [], []>} : vector<32x32xbf16>, vector<32x16xbf16>, vector<32x16xf32> -> vector<32x16xf32>
    %39 = vector.broadcast %36 : vector<1x16xf32> to vector<32x16xf32>
    %40 = arith.addf %38, %39 : vector<32x16xf32>
    %cst_22 = arith.constant dense<0.000000e+00> : vector<32xf32>
    %41 = vector.multi_reduction <add>, %40, %cst_22 [1] : vector<32x16xf32> to vector<32xf32>
    %42 = vector.shape_cast %41 : vector<32xf32> to vector<32x1xf32>
    %cst_23 = arith.constant 1.600000e+01 : f32
    %43 = vector.broadcast %cst_23 : f32 to vector<32x1xf32>
    %44 = arith.divf %42, %43 : vector<32x1xf32>
    %45 = arith.mulf %40, %40 : vector<32x16xf32>
    %cst_24 = arith.constant dense<0.000000e+00> : vector<32xf32>
    %46 = vector.multi_reduction <add>, %45, %cst_24 [1] : vector<32x16xf32> to vector<32xf32>
    %47 = vector.shape_cast %46 : vector<32xf32> to vector<32x1xf32>
    %cst_25 = arith.constant 1.600000e+01 : f32
    %48 = vector.broadcast %cst_25 : f32 to vector<32x1xf32>
    %49 = arith.divf %47, %48 : vector<32x1xf32>
    %50 = arith.mulf %44, %44 : vector<32x1xf32>
    %51 = arith.subf %49, %50 : vector<32x1xf32>
    %cst_26 = arith.constant 0.000000e+00 : f32
    %52 = vector.broadcast %cst_26 : f32 to vector<32x1xf32>
    %53 = arith.maximumf %51, %52 : vector<32x1xf32>
    %54 = vector.broadcast %44 : vector<32x1xf32> to vector<32x16xf32>
    %55 = arith.subf %40, %54 : vector<32x16xf32>
    %cst_27 = arith.constant 9.99999974E-6 : f32
    %56 = vector.broadcast %cst_27 : f32 to vector<32x1xf32>
    %57 = arith.addf %53, %56 : vector<32x1xf32>
    %58 = math.rsqrt %57 : vector<32x1xf32>
    %59 = vector.broadcast %58 : vector<32x1xf32> to vector<32x16xf32>
    %60 = arith.mulf %55, %59 : vector<32x16xf32>
    %cst_28 = arith.constant 0.000000e+00 : f32
    %61 = vector.broadcast %cst_28 : f32 to vector<32x16xf32>
    %62 = arith.maximumf %60, %61 : vector<32x16xf32>
    %63 = arith.extf %0 : vector<32x16xbf16> to vector<32x16xf32>
    %64 = arith.addf %62, %63 : vector<32x16xf32>
    %65 = arith.truncf %64 : vector<32x16xf32> to vector<32x16xbf16>
    %c0_29 = arith.constant 0 : index
    %c0_30 = arith.constant 0 : index
    %66 = vector.load %arg8[%c0_29, %c0_30] : memref<32x16xbf16, #tpu.memory_space<vmem>>, vector<32x16xbf16>
    tpu.vector_store %arg8[%c0_29, %c0_30], %65 {strides = array<i32>} : memref<32x16xbf16, #tpu.memory_space<vmem>>, vector<32x16xbf16>,
    return
  }
  func.func @transform_0(%arg0: i32) -> (i32, i32) {
    %c0_i32 = arith.constant 0 : i32
    %c0_i32_0 = arith.constant 0 : i32
    return %arg0, %c0_i32 : i32, i32
  }
  func.func @transform_1(%arg0: i32) -> (i32, i32) {
    %c0_i32 = arith.constant 0 : i32
    %c0_i32_0 = arith.constant 0 : i32
    return %arg0, %c0_i32 : i32, i32
  }
  func.func @transform_2(%arg0: i32) -> (i32, i32) {
    %c0_i32 = arith.constant 0 : i32
    %c0_i32_0 = arith.constant 0 : i32
    %c0_i32_1 = arith.constant 0 : i32
    return %c0_i32, %c0_i32_0 : i32, i32
  }
  func.func @transform_3(%arg0: i32) -> (i32, i32) {
    %c0_i32 = arith.constant 0 : i32
    %c0_i32_0 = arith.constant 0 : i32
    %c0_i32_1 = arith.constant 0 : i32
    return %c0_i32, %c0_i32_0 : i32, i32
  }
  func.func @transform_4(%arg0: i32) -> (i32, i32) {
    %c0_i32 = arith.constant 0 : i32
    %c0_i32_0 = arith.constant 0 : i32
    %c0_i32_1 = arith.constant 0 : i32
    return %c0_i32, %c0_i32_0 : i32, i32
  }
  func.func @transform_5(%arg0: i32) -> (i32, i32) {
    %c0_i32 = arith.constant 0 : i32
    %c0_i32_0 = arith.constant 0 : i32
    %c0_i32_1 = arith.constant 0 : i32
    return %c0_i32, %c0_i32_0 : i32, i32
  }
  func.func @transform_6(%arg0: i32) -> (i32, i32) {
    %c0_i32 = arith.constant 0 : i32
    %c0_i32_0 = arith.constant 0 : i32
    %c0_i32_1 = arith.constant 0 : i32
    return %c0_i32, %c0_i32_0 : i32, i32
  }
  func.func @transform_7(%arg0: i32) -> (i32, i32) {
    %c0_i32 = arith.constant 0 : i32
    %c0_i32_0 = arith.constant 0 : i32
    return %arg0, %c0_i32 : i32, i32
  }
}

module attributes {stable_mosaic.version = 11 : i64} {
  func.func @_fused_mlp_kernel(%arg0: i32, %arg1: memref<64x16xbf16, #tpu.memory_space<vmem>>, %arg2: memref<64x16xbf16, #tpu.memory_space<vmem>>, %arg3: memref<64x16xbf16, #tpu.memory_space<vmem>>, %arg4: memref<16x32xbf16, #tpu.memory_space<vmem>>, %arg5: memref<16x32xbf16, #tpu.memory_space<vmem>>, %arg6: memref<16x32xbf16, #tpu.memory_space<vmem>>, %arg7: memref<1x32xbf16, #tpu.memory_space<vmem>>, %arg8: memref<32x16xbf16, #tpu.memory_space<vmem>>, %arg9: memref<1x16xbf16, #tpu.memory_space<vmem>>, %arg10: memref<64x16xbf16, #tpu.memory_space<vmem>>) attributes {dimension_semantics = [#tpu.dimension_semantics<parallel>], iteration_bounds = array<i64: 2>, scalar_prefetch = 0 : i64, scratch_operands = 0 : i64, tpu.core_type = #tpu.core_type<tc>, window_params = [{transform_indices = @transform_0, window_bounds = array<i64: 64, 16>}, {transform_indices = @transform_1, window_bounds = array<i64: 64, 16>}, {transform_indices = @transform_2, window_bounds = array<i64: 64, 16>}, {pipeline_mode = #tpu.pipeline_mode<synchronous>, transform_indices = @transform_3, window_bounds = array<i64: 16, 32>}, {pipeline_mode = #tpu.pipeline_mode<synchronous>, transform_indices = @transform_4, window_bounds = array<i64: 16, 32>}, {pipeline_mode = #tpu.pipeline_mode<synchronous>, transform_indices = @transform_5, window_bounds = array<i64: 16, 32>}, {pipeline_mode = #tpu.pipeline_mode<synchronous>, transform_indices = @transform_6, window_bounds = array<i64: 1, 32>}, {pipeline_mode = #tpu.pipeline_mode<synchronous>, transform_indices = @transform_7, window_bounds = array<i64: 32, 16>}, {pipeline_mode = #tpu.pipeline_mode<synchronous>, transform_indices = @transform_8, window_bounds = array<i64: 1, 16>}, {transform_indices = @transform_9, window_bounds = array<i64: 64, 16>}]} {
    %c0 = arith.constant 0 : index
    %c0_0 = arith.constant 0 : index
    %0 = vector.load %arg1[%c0, %c0_0] : memref<64x16xbf16, #tpu.memory_space<vmem>>, vector<64x16xbf16>
    %c0_1 = arith.constant 0 : index
    %c0_2 = arith.constant 0 : index
    %1 = vector.load %arg2[%c0_1, %c0_2] : memref<64x16xbf16, #tpu.memory_space<vmem>>, vector<64x16xbf16>
    %c0_3 = arith.constant 0 : index
    %c0_4 = arith.constant 0 : index
    %2 = vector.load %arg3[%c0_3, %c0_4] : memref<64x16xbf16, #tpu.memory_space<vmem>>, vector<64x16xbf16>
    %c0_5 = arith.constant 0 : index
    %c0_6 = arith.constant 0 : index
    %3 = vector.load %arg7[%c0_5, %c0_6] : memref<1x32xbf16, #tpu.memory_space<vmem>>, vector<1x32xbf16>
    %4 = arith.extf %3 : vector<1x32xbf16> to vector<1x32xf32>
    %c0_7 = arith.constant 0 : index
    %c0_8 = arith.constant 0 : index
    %5 = vector.load %arg4[%c0_7, %c0_8] : memref<16x32xbf16, #tpu.memory_space<vmem>>, vector<16x32xbf16>
    %cst = arith.constant dense<0.000000e+00> : vector<64x32xf32>
    %6 = tpu.matmul %0, %5, %cst {dimension_numbers = #tpu.dot_dimension_numbers<[1], [0], [0], [1], [0, 0, 1, 1], [], []>} : vector<64x16xbf16>, vector<16x32xbf16>, vector<64x32xf32> -> vector<64x32xf32>
    %7 = vector.broadcast %4 : vector<1x32xf32> to vector<64x32xf32>
    %8 = arith.addf %7, %6 : vector<64x32xf32>
    %c0_9 = arith.constant 0 : index
    %c0_10 = arith.constant 0 : index
    %9 = vector.load %arg5[%c0_9, %c0_10] : memref<16x32xbf16, #tpu.memory_space<vmem>>, vector<16x32xbf16>
    %cst_11 = arith.constant dense<0.000000e+00> : vector<64x32xf32>
    %10 = tpu.matmul %1, %9, %cst_11 {dimension_numbers = #tpu.dot_dimension_numbers<[1], [0], [0], [1], [0, 0, 1, 1], [], []>} : vector<64x16xbf16>, vector<16x32xbf16>, vector<64x32xf32> -> vector<64x32xf32>
    %11 = arith.addf %8, %10 : vector<64x32xf32>
    %c0_12 = arith.constant 0 : index
    %c0_13 = arith.constant 0 : index
    %12 = vector.load %arg6[%c0_12, %c0_13] : memref<16x32xbf16, #tpu.memory_space<vmem>>, vector<16x32xbf16>
    %cst_14 = arith.constant dense<0.000000e+00> : vector<64x32xf32>
    %13 = tpu.matmul %2, %12, %cst_14 {dimension_numbers = #tpu.dot_dimension_numbers<[1], [0], [0], [1], [0, 0, 1, 1], [], []>} : vector<64x16xbf16>, vector<16x32xbf16>, vector<64x32xf32> -> vector<64x32xf32>
    %14 = arith.addf %11, %13 : vector<64x32xf32>
    %cst_15 = arith.constant dense<0.000000e+00> : vector<64xf32>
    %15 = vector.multi_reduction <add>, %14, %cst_15 [1] : vector<64x32xf32> to vector<64xf32>
    %16 = vector.shape_cast %15 : vector<64xf32> to vector<64x1xf32>
    %cst_16 = arith.constant 3.200000e+01 : f32
    %17 = vector.broadcast %cst_16 : f32 to vector<64x1xf32>
    %18 = arith.divf %16, %17 : vector<64x1xf32>
    %19 = arith.mulf %14, %14 : vector<64x32xf32>
    %cst_17 = arith.constant dense<0.000000e+00> : vector<64xf32>
    %20 = vector.multi_reduction <add>, %19, %cst_17 [1] : vector<64x32xf32> to vector<64xf32>
    %21 = vector.shape_cast %20 : vector<64xf32> to vector<64x1xf32>
    %cst_18 = arith.constant 3.200000e+01 : f32
    %22 = vector.broadcast %cst_18 : f32 to vector<64x1xf32>
    %23 = arith.divf %21, %22 : vector<64x1xf32>
    %24 = arith.mulf %18, %18 : vector<64x1xf32>
    %25 = arith.subf %23, %24 : vector<64x1xf32>
    %cst_19 = arith.constant 0.000000e+00 : f32
    %26 = vector.broadcast %cst_19 : f32 to vector<64x1xf32>
    %27 = arith.maximumf %25, %26 : vector<64x1xf32>
    %28 = vector.broadcast %18 : vector<64x1xf32> to vector<64x32xf32>
    %29 = arith.subf %14, %28 : vector<64x32xf32>
    %cst_20 = arith.constant 9.99999974E-6 : f32
    %30 = vector.broadcast %cst_20 : f32 to vector<64x1xf32>
    %31 = arith.addf %27, %30 : vector<64x1xf32>
    %32 = math.rsqrt %31 : vector<64x1xf32>
    %33 = vector.broadcast %32 : vector<64x1xf32> to vector<64x32xf32>
    %34 = arith.mulf %29, %33 : vector<64x32xf32>
    %cst_21 = arith.constant 0.000000e+00 : f32
    %35 = vector.broadcast %cst_21 : f32 to vector<64x32xf32>
    %36 = arith.maximumf %34, %35 : vector<64x32xf32>
    %c0_22 = arith.constant 0 : index
    %c0_23 = arith.constant 0 : index
    %37 = vector.load %arg8[%c0_22, %c0_23] : memref<32x16xbf16, #tpu.memory_space<vmem>>, vector<32x16xbf16>
    %c0_24 = arith.constant 0 : index
    %c0_25 = arith.constant 0 : index
    %38 = vector.load %arg9[%c0_24, %c0_25] : memref<1x16xbf16, #tpu.memory_space<vmem>>, vector<1x16xbf16>
    %39 = arith.extf %38 : vector<1x16xbf16> to vector<1x16xf32>
    %40 = arith.truncf %36 : vector<64x32xf32> to vector<64x32xbf16>
    %cst_26 = arith.constant dense<0.000000e+00> : vector<64x16xf32>
    %41 = tpu.matmul %40, %37, %cst_26 {dimension_numbers = #tpu.dot_dimension_numbers<[1], [0], [0], [1], [0, 0, 1, 1], [], []>} : vector<64x32xbf16>, vector<32x16xbf16>, vector<64x16xf32> -> vector<64x16xf32>
    %42 = vector.broadcast %39 : vector<1x16xf32> to vector<64x16xf32>
    %43 = arith.addf %41, %42 : vector<64x16xf32>
    %cst_27 = arith.constant dense<0.000000e+00> : vector<64xf32>
    %44 = vector.multi_reduction <add>, %43, %cst_27 [1] : vector<64x16xf32> to vector<64xf32>
    %45 = vector.shape_cast %44 : vector<64xf32> to vector<64x1xf32>
    %cst_28 = arith.constant 1.600000e+01 : f32
    %46 = vector.broadcast %cst_28 : f32 to vector<64x1xf32>
    %47 = arith.divf %45, %46 : vector<64x1xf32>
    %48 = arith.mulf %43, %43 : vector<64x16xf32>
    %cst_29 = arith.constant dense<0.000000e+00> : vector<64xf32>
    %49 = vector.multi_reduction <add>, %48, %cst_29 [1] : vector<64x16xf32> to vector<64xf32>
    %50 = vector.shape_cast %49 : vector<64xf32> to vector<64x1xf32>
    %cst_30 = arith.constant 1.600000e+01 : f32
    %51 = vector.broadcast %cst_30 : f32 to vector<64x1xf32>
    %52 = arith.divf %50, %51 : vector<64x1xf32>
    %53 = arith.mulf %47, %47 : vector<64x1xf32>
    %54 = arith.subf %52, %53 : vector<64x1xf32>
    %cst_31 = arith.constant 0.000000e+00 : f32
    %55 = vector.broadcast %cst_31 : f32 to vector<64x1xf32>
    %56 = arith.maximumf %54, %55 : vector<64x1xf32>
    %57 = vector.broadcast %47 : vector<64x1xf32> to vector<64x16xf32>
    %58 = arith.subf %43, %57 : vector<64x16xf32>
    %cst_32 = arith.constant 9.99999974E-6 : f32
    %59 = vector.broadcast %cst_32 : f32 to vector<64x1xf32>
    %60 = arith.addf %56, %59 : vector<64x1xf32>
    %61 = math.rsqrt %60 : vector<64x1xf32>
    %62 = vector.broadcast %61 : vector<64x1xf32> to vector<64x16xf32>
    %63 = arith.mulf %58, %62 : vector<64x16xf32>
    %cst_33 = arith.constant 0.000000e+00 : f32
    %64 = vector.broadcast %cst_33 : f32 to vector<64x16xf32>
    %65 = arith.maximumf %63, %64 : vector<64x16xf32>
    %66 = arith.extf %2 : vector<64x16xbf16> to vector<64x16xf32>
    %67 = arith.addf %65, %66 : vector<64x16xf32>
    %68 = arith.truncf %67 : vector<64x16xf32> to vector<64x16xbf16>
    %c0_34 = arith.constant 0 : index
    %c0_35 = arith.constant 0 : index
    %69 = vector.load %arg10[%c0_34, %c0_35] : memref<64x16xbf16, #tpu.memory_space<vmem>>, vector<64x16xbf16>
    tpu.vector_store %arg10[%c0_34, %c0_35], %68 {strides = array<i32>} : memref<64x16xbf16, #tpu.memory_space<vmem>>, vector<64x16xbf16>,
    return
  }
  func.func @transform_0(%arg0: i32) -> (i32, i32) {
    %c0_i32 = arith.constant 0 : i32
    %c0_i32_0 = arith.constant 0 : i32
    return %arg0, %c0_i32 : i32, i32
  }
  func.func @transform_1(%arg0: i32) -> (i32, i32) {
    %c0_i32 = arith.constant 0 : i32
    %c0_i32_0 = arith.constant 0 : i32
    return %arg0, %c0_i32 : i32, i32
  }
  func.func @transform_2(%arg0: i32) -> (i32, i32) {
    %c0_i32 = arith.constant 0 : i32
    %c0_i32_0 = arith.constant 0 : i32
    return %arg0, %c0_i32 : i32, i32
  }
  func.func @transform_3(%arg0: i32) -> (i32, i32) {
    %c0_i32 = arith.constant 0 : i32
    %c0_i32_0 = arith.constant 0 : i32
    %c0_i32_1 = arith.constant 0 : i32
    return %c0_i32, %c0_i32_0 : i32, i32
  }
  func.func @transform_4(%arg0: i32) -> (i32, i32) {
    %c0_i32 = arith.constant 0 : i32
    %c0_i32_0 = arith.constant 0 : i32
    %c0_i32_1 = arith.constant 0 : i32
    return %c0_i32, %c0_i32_0 : i32, i32
  }
  func.func @transform_5(%arg0: i32) -> (i32, i32) {
    %c0_i32 = arith.constant 0 : i32
    %c0_i32_0 = arith.constant 0 : i32
    %c0_i32_1 = arith.constant 0 : i32
    return %c0_i32, %c0_i32_0 : i32, i32
  }
  func.func @transform_6(%arg0: i32) -> (i32, i32) {
    %c0_i32 = arith.constant 0 : i32
    %c0_i32_0 = arith.constant 0 : i32
    %c0_i32_1 = arith.constant 0 : i32
    return %c0_i32, %c0_i32_0 : i32, i32
  }
  func.func @transform_7(%arg0: i32) -> (i32, i32) {
    %c0_i32 = arith.constant 0 : i32
    %c0_i32_0 = arith.constant 0 : i32
    %c0_i32_1 = arith.constant 0 : i32
    return %c0_i32, %c0_i32_0 : i32, i32
  }
  func.func @transform_8(%arg0: i32) -> (i32, i32) {
    %c0_i32 = arith.constant 0 : i32
    %c0_i32_0 = arith.constant 0 : i32
    %c0_i32_1 = arith.constant 0 : i32
    return %c0_i32, %c0_i32_0 : i32, i32
  }
  func.func @transform_9(%arg0: i32) -> (i32, i32) {
    %c0_i32 = arith.constant 0 : i32
    %c0_i32_0 = arith.constant 0 : i32
    return %arg0, %c0_i32 : i32, i32
  }
}

module attributes {stable_mosaic.version = 11 : i64} {
  func.func @_fused_mlp_kernel(%arg0: i32, %arg1: memref<32x16xbf16, #tpu.memory_space<vmem>>, %arg2: memref<16x32xbf16, #tpu.memory_space<vmem>>, %arg3: memref<1x32xbf16, #tpu.memory_space<vmem>>, %arg4: memref<32x8xbf16, #tpu.memory_space<vmem>>, %arg5: memref<1x8xbf16, #tpu.memory_space<vmem>>, %arg6: memref<32x8xf32, #tpu.memory_space<vmem>>) attributes {dimension_semantics = [#tpu.dimension_semantics<parallel>], iteration_bounds = array<i64: 2>, scalar_prefetch = 0 : i64, scratch_operands = 0 : i64, tpu.core_type = #tpu.core_type<tc>, window_params = [{transform_indices = @transform_0, window_bounds = array<i64: 32, 16>}, {pipeline_mode = #tpu.pipeline_mode<synchronous>, transform_indices = @transform_1, window_bounds = array<i64: 16, 32>}, {pipeline_mode = #tpu.pipeline_mode<synchronous>, transform_indices = @transform_2, window_bounds = array<i64: 1, 32>}, {pipeline_mode = #tpu.pipeline_mode<synchronous>, transform_indices = @transform_3, window_bounds = array<i64: 32, 8>}, {pipeline_mode = #tpu.pipeline_mode<synchronous>, transform_indices = @transform_4, window_bounds = array<i64: 1, 8>}, {transform_indices = @transform_5, window_bounds = array<i64: 32, 8>}]} {
    %c0 = arith.constant 0 : index
    %c0_0 = arith.constant 0 : index
    %0 = vector.load %arg1[%c0, %c0_0] : memref<32x16xbf16, #tpu.memory_space<vmem>>, vector<32x16xbf16>
    %c0_1 = arith.constant 0 : index
    %c0_2 = arith.constant 0 : index
    %1 = vector.load %arg3[%c0_1, %c0_2] : memref<1x32xbf16, #tpu.memory_space<vmem>>, vector<1x32xbf16>
    %2 = arith.extf %1 : vector<1x32xbf16> to vector<1x32xf32>
    %c0_3 = arith.constant 0 : index
    %c0_4 = arith.constant 0 : index
    %3 = vector.load %arg2[%c0_3, %c0_4] : memref<16x32xbf16, #tpu.memory_space<vmem>>, vector<16x32xbf16>
    %cst = arith.constant dense<0.000000e+00> : vector<32x32xf32>
    %4 = tpu.matmul %0, %3, %cst {dimension_numbers = #tpu.dot_dimension_numbers<[1], [0], [0], [1], [0, 0, 1, 1], [], []>} : vector<32x16xbf16>, vector<16x32xbf16>, vector<32x32xf32> -> vector<32x32xf32>
    %5 = vector.broadcast %2 : vector<1x32xf32> to vector<32x32xf32>
    %6 = arith.addf %5, %4 : vector<32x32xf32>
    %cst_5 = arith.constant dense<0.000000e+00> : vector<32xf32>
    %7 = vector.multi_reduction <add>, %6, %cst_5 [1] : vector<32x32xf32> to vector<32xf32>
    %8 = vector.shape_cast %7 : vector<32xf32> to vector<32x1xf32>
    %cst_6 = arith.constant 3.200000e+01 : f32
    %9 = vector.broadcast %cst_6 : f32 to vector<32x1xf32>
    %10 = arith.divf %8, %9 : vector<32x1xf32>
    %11 = arith.mulf %6, %6 : vector<32x32xf32>
    %cst_7 = arith.constant dense<0.000000e+00> : vector<32xf32>
    %12 = vector.multi_reduction <add>, %11, %cst_7 [1] : vector<32x32xf32> to vector<32xf32>
    %13 = vector.shape_cast %12 : vector<32xf32> to vector<32x1xf32>
    %cst_8 = arith.constant 3.200000e+01 : f32
    %14 = vector.broadcast %cst_8 : f32 to vector<32x1xf32>
    %15 = arith.divf %13, %14 : vector<32x1xf32>
    %16 = arith.mulf %10, %10 : vector<32x1xf32>
    %17 = arith.subf %15, %16 : vector<32x1xf32>
    %cst_9 = arith.constant 0.000000e+00 : f32
    %18 = vector.broadcast %cst_9 : f32 to vector<32x1xf32>
    %19 = arith.maximumf %17, %18 : vector<32x1xf32>
    %20 = vector.broadcast %10 : vector<32x1xf32> to vector<32x32xf32>
    %21 = arith.subf %6, %20 : vector<32x32xf32>
    %cst_10 = arith.constant 9.99999974E-6 : f32
    %22 = vector.broadcast %cst_10 : f32 to vector<32x1xf32>
    %23 = arith.addf %19, %22 : vector<32x1xf32>
    %24 = math.rsqrt %23 : vector<32x1xf32>
    %25 = vector.broadcast %24 : vector<32x1xf32> to vector<32x32xf32>
    %26 = arith.mulf %21, %25 : vector<32x32xf32>
    %cst_11 = arith.constant 0.000000e+00 : f32
    %27 = vector.broadcast %cst_11 : f32 to vector<32x32xf32>
    %28 = arith.maximumf %26, %27 : vector<32x32xf32>
    %c0_12 = arith.constant 0 : index
    %c0_13 = arith.constant 0 : index
    %29 = vector.load %arg4[%c0_12, %c0_13] : memref<32x8xbf16, #tpu.memory_space<vmem>>, vector<32x8xbf16>
    %c0_14 = arith.constant 0 : index
    %c0_15 = arith.constant 0 : index
    %30 = vector.load %arg5[%c0_14, %c0_15] : memref<1x8xbf16, #tpu.memory_space<vmem>>, vector<1x8xbf16>
    %31 = arith.extf %30 : vector<1x8xbf16> to vector<1x8xf32>
    %32 = arith.truncf %28 : vector<32x32xf32> to vector<32x32xbf16>
    %cst_16 = arith.constant dense<0.000000e+00> : vector<32x8xf32>
    %33 = tpu.matmul %32, %29, %cst_16 {dimension_numbers = #tpu.dot_dimension_numbers<[1], [0], [0], [1], [0, 0, 1, 1], [], []>} : vector<32x32xbf16>, vector<32x8xbf16>, vector<32x8xf32> -> vector<32x8xf32>
    %34 = vector.broadcast %31 : vector<1x8xf32> to vector<32x8xf32>
    %35 = arith.addf %33, %34 : vector<32x8xf32>
    %36 = arith.mulf %35, %35 : vector<32x8xf32>
    %cst_17 = arith.constant dense<0.000000e+00> : vector<32xf32>
    %37 = vector.multi_reduction <add>, %36, %cst_17 [1] : vector<32x8xf32> to vector<32xf32>
    %38 = vector.shape_cast %37 : vector<32xf32> to vector<32x1xf32>
    %cst_18 = arith.constant 1.000000e-24 : f32
    %39 = vector.broadcast %cst_18 : f32 to vector<32x1xf32>
    %40 = arith.maximumf %38, %39 : vector<32x1xf32>
    %41 = math.rsqrt %40 : vector<32x1xf32>
    %42 = vector.broadcast %41 : vector<32x1xf32> to vector<32x8xf32>
    %43 = arith.mulf %35, %42 : vector<32x8xf32>
    %c0_19 = arith.constant 0 : index
    %c0_20 = arith.constant 0 : index
    %44 = vector.load %arg6[%c0_19, %c0_20] : memref<32x8xf32, #tpu.memory_space<vmem>>, vector<32x8xf32>
    tpu.vector_store %arg6[%c0_19, %c0_20], %43 {strides = array<i32>} : memref<32x8xf32, #tpu.memory_space<vmem>>, vector<32x8xf32>,
    return
  }
  func.func @transform_0(%arg0: i32) -> (i32, i32) {
    %c0_i32 = arith.constant 0 : i32
    %c0_i32_0 = arith.constant 0 : i32
    return %arg0, %c0_i32 : i32, i32
  }
  func.func @transform_1(%arg0: i32) -> (i32, i32) {
    %c0_i32 = arith.constant 0 : i32
    %c0_i32_0 = arith.constant 0 : i32
    %c0_i32_1 = arith.constant 0 : i32
    return %c0_i32, %c0_i32_0 : i32, i32
  }
  func.func @transform_2(%arg0: i32) -> (i32, i32) {
    %c0_i32 = arith.constant 0 : i32
    %c0_i32_0 = arith.constant 0 : i32
    %c0_i32_1 = arith.constant 0 : i32
    return %c0_i32, %c0_i32_0 : i32, i32
  }
  func.func @transform_3(%arg0: i32) -> (i32, i32) {
    %c0_i32 = arith.constant 0 : i32
    %c0_i32_0 = arith.constant 0 : i32
    %c0_i32_1 = arith.constant 0 : i32
    return %c0_i32, %c0_i32_0 : i32, i32
  }
  func.func @transform_4(%arg0: i32) -> (i32, i32) {
    %c0_i32 = arith.constant 0 : i32
    %c0_i32_0 = arith.constant 0 : i32
    %c0_i32_1 = arith.constant 0 : i32
    return %c0_i32, %c0_i32_0 : i32, i32
  }
  func.func @transform_5(%arg0: i32) -> (i32, i32) {
    %c0_i32 = arith.constant 0 : i32
    %c0_i32_0 = arith.constant 0 : i32
    return %arg0, %c0_i32 : i32, i32
  }
}

</mosaic_0001>

<llo_original>
// kernel: _lambda_.7
$region0: #{_lambda_.7}
  #allocation0 [shape = 'u32[]', space=smem, size = 0x4, offset = 0x4, fixed_abs, tag = 'smem constant byte address 0x4 - core index']
  #allocation1 [shape = 'u32[144,128]{1,0:T(1,128)}', space=vmem, size = 0x12000, scoped, tag = 'internal scratch']
  %s0 = inlined_call_operand.vmem [shape: f32[64,3], index: 0, kind: input, shape index: {}]
  %s1 = inlined_call_operand.vmem [shape: bf16[3,32], index: 1, kind: input, shape index: {}]
  %s2 = inlined_call_operand.vmem [shape: bf16[1,32], index: 2, kind: input, shape index: {}]
  %s3 = inlined_call_operand.vmem [shape: bf16[32,16], index: 3, kind: input, shape index: {}]
  %s4 = inlined_call_operand.vmem [shape: bf16[1,16], index: 4, kind: input, shape index: {}]
  %s5 = inlined_call_operand.vmem [shape: bf16[64,16], index: 5, kind: output, shape index: {}]
  %s6 = sld [smem:[#allocation0]]
  $region53: #{_lambda_.7} parent=0
    _
  %s8 = ssub.s32 1, %s6
  %s9 = scalar_select 0, %s8, %s6
  loop: start=0, step=1, limit=4
  $region2: #{_lambda_.7} parent=0 // loop_pre_header
    _
  $region3: #{_lambda_.7} parent=0 // loop_header
    %s11 = sphi 0, %s15
    %p12 = scmp.ge.s32.totalorder %s11, 4
    %s21 = sphi 0, %s23
    %s24 = sphi 0, %s21
    %s25 = sphi 0, %s24
    %s41 = sphi 0, %s25
    %s45 = sphi 0, %s45
    %s47 = sphi 0, %s45
    %s48 = sphi 0, %s47
    %s62 = sphi 0, %s48
    %s66 = sphi 0, %s66
    %s68 = sphi 0, %s66
    %s69 = sphi 0, %s68
    %s83 = sphi 0, %s69
    %s87 = sphi 0, %s87
    %s89 = sphi 0, %s87
    %s90 = sphi 0, %s89
    %s104 = sphi 0, %s90
    %s108 = sphi 0, %s108
    %s110 = sphi 0, %s108
    %s111 = sphi 0, %s110
    %s125 = sphi 0, %s111
    %s131 = sphi 0, %s133
    %s134 = sphi 0, %s131
    %s135 = sphi 0, %s134
    %s151 = sphi 0, %s135
  $region4: #{_lambda_.7} parent=0 // loop_header_branch
    %14 = sbr.rel (%p12) target = $region8
  $region5: #{_lambda_.7} parent=0 // loop_body
    %s16 = ssub.s32 %s11, 1
    %s17 = ssub.s32 %s11, 2
    %s18 = sadd.s32 %s11, 1
    %s19 = ssub.s32 %s11, %s18
    %p20 = scmp.eq.s32.totalorder %s19, 0
    %s22 = sadd.s32 %s21, 1
    %s23 = scalar_select %p20, %s21, %s22
    %p26 = pneg %p20
    %p27 = scmp.eq.s32.totalorder %s11, 1
    %p28 = por %p26, %p27
    %p29 = scmp.ne.s32.totalorder %s21, %s24
    %p30 = scmp.eq.s32.totalorder %s11, 0
    %p31 = por %p29, %p30
    %p32 = scmp.ne.s32.totalorder %s21, %s24
    %p33 = scmp.eq.s32.totalorder %s16, 1
    %p34 = por %p32, %p33
    %p35 = scmp.ne.s32.totalorder %s24, %s25
    %p36 = scmp.eq.s32.totalorder %s16, 0
    %p37 = por %p35, %p36
    %p38 = scmp.ne.s32.totalorder %s24, %s25
    %p39 = scmp.eq.s32.totalorder %s17, 1
    %p40 = por %p38, %p39
    %p42 = scmp.ne.s32.totalorder %s25, %s41
    %p43 = scmp.eq.s32.totalorder %s17, 0
    %p44 = por %p42, %p43
    %s46 = sadd.s32 %s45, 1
    %p49 = scmp.eq.s32.totalorder %s11, 1
    %p50 = scmp.ne.s32.totalorder %s45, %s47
    %p51 = scmp.eq.s32.totalorder %s11, 0
    %p52 = por %p50, %p51
    %p53 = scmp.ne.s32.totalorder %s45, %s47
    %p54 = scmp.eq.s32.totalorder %s16, 1
    %p55 = por %p53, %p54
    %p56 = scmp.ne.s32.totalorder %s47, %s48
    %p57 = scmp.eq.s32.totalorder %s16, 0
    %p58 = por %p56, %p57
    %p59 = scmp.ne.s32.totalorder %s47, %s48
    %p60 = scmp.eq.s32.totalorder %s17, 1
    %p61 = por %p59, %p60
    %p63 = scmp.ne.s32.totalorder %s48, %s62
    %p64 = scmp.eq.s32.totalorder %s17, 0
    %p65 = por %p63, %p64
    %s67 = sadd.s32 %s66, 1
    %p70 = scmp.eq.s32.totalorder %s11, 1
    %p71 = scmp.ne.s32.totalorder %s66, %s68
    %p72 = scmp.eq.s32.totalorder %s11, 0
    %p73 = por %p71, %p72
    %p74 = scmp.ne.s32.totalorder %s66, %s68
    %p75 = scmp.eq.s32.totalorder %s16, 1
    %p76 = por %p74, %p75
    %p77 = scmp.ne.s32.totalorder %s68, %s69
    %p78 = scmp.eq.s32.totalorder %s16, 0
    %p79 = por %p77, %p78
    %p80 = scmp.ne.s32.totalorder %s68, %s69
    %p81 = scmp.eq.s32.totalorder %s17, 1
    %p82 = por %p80, %p81
    %p84 = scmp.ne.s32.totalorder %s69, %s83
    %p85 = scmp.eq.s32.totalorder %s17, 0
    %p86 = por %p84, %p85
    %s88 = sadd.s32 %s87, 1
    %p91 = scmp.eq.s32.totalorder %s11, 1
    %p92 = scmp.ne.s32.totalorder %s87, %s89
    %p93 = scmp.eq.s32.totalorder %s11, 0
    %p94 = por %p92, %p93
    %p95 = scmp.ne.s32.totalorder %s87, %s89
    %p96 = scmp.eq.s32.totalorder %s16, 1
    %p97 = por %p95, %p96
    %p98 = scmp.ne.s32.totalorder %s89, %s90
    %p99 = scmp.eq.s32.totalorder %s16, 0
    %p100 = por %p98, %p99
    %p101 = scmp.ne.s32.totalorder %s89, %s90
    %p102 = scmp.eq.s32.totalorder %s17, 1
    %p103 = por %p101, %p102
    %p105 = scmp.ne.s32.totalorder %s90, %s104
    %p106 = scmp.eq.s32.totalorder %s17, 0
    %p107 = por %p105, %p106
    %s109 = sadd.s32 %s108, 1
    %p112 = scmp.eq.s32.totalorder %s11, 1
    %p113 = scmp.ne.s32.totalorder %s108, %s110
    %p114 = scmp.eq.s32.totalorder %s11, 0
    %p115 = por %p113, %p114
    %p116 = scmp.ne.s32.totalorder %s108, %s110
    %p117 = scmp.eq.s32.totalorder %s16, 1
    %p118 = por %p116, %p117
    %p119 = scmp.ne.s32.totalorder %s110, %s111
    %p120 = scmp.eq.s32.totalorder %s16, 0
    %p121 = por %p119, %p120
    %p122 = scmp.ne.s32.totalorder %s110, %s111
    %p123 = scmp.eq.s32.totalorder %s17, 1
    %p124 = por %p122, %p123
    %p126 = scmp.ne.s32.totalorder %s111, %s125
    %p127 = scmp.eq.s32.totalorder %s17, 0
    %p128 = por %p126, %p127
    %s129 = ssub.s32 %s11, %s18
    %p130 = scmp.eq.s32.totalorder %s129, 0
    %s132 = sadd.s32 %s131, 1
    %s133 = scalar_select %p130, %s131, %s132
    %p136 = pneg %p130
    %p137 = scmp.eq.s32.totalorder %s11, 1
    %p138 = por %p136, %p137
    %p139 = scmp.ne.s32.totalorder %s131, %s134
    %p140 = scmp.eq.s32.totalorder %s11, 0
    %p141 = por %p139, %p140
    %p142 = scmp.ne.s32.totalorder %s131, %s134
    %p143 = scmp.eq.s32.totalorder %s16, 1
    %p144 = por %p142, %p143
    %p145 = scmp.ne.s32.totalorder %s134, %s135
    %p146 = scmp.eq.s32.totalorder %s16, 0
    %p147 = por %p145, %p146
    %p148 = scmp.ne.s32.totalorder %s134, %s135
    %p149 = scmp.eq.s32.totalorder %s17, 1
    %p150 = por %p148, %p149
    %p152 = scmp.ne.s32.totalorder %s135, %s151
    %p153 = scmp.eq.s32.totalorder %s17, 0
    %p154 = por %p152, %p153
    %p155 = scmp.le.s32.totalorder 1, %s11
    %p156 = scmp.lt.s32.totalorder %s11, 3
    %p157 = pnand %p155, %p156
    %p158 = pneg %p157
    // Predicated region
    $region9: #{_lambda_.7} parent=5 // pred_check
      _
    $region10: #{_lambda_.7} parent=5 // pred_check_branch
      %160 = sbr.rel (%p157) target = $region12
    $region11: #{_lambda_.7} parent=5 // pred_region
      %s161 = ssub.s32 %s11, 1
      // Predicated region
      $region13: #{_lambda_.7} parent=11 // pred_check
        %p162 = pneg %p58
      $region14: #{_lambda_.7} parent=11 // pred_check_branch
        %164 = sbr.rel (%p162) target = $region16
      $region15: #{_lambda_.7} parent=11 // pred_region
        _
      $region16: #{_lambda_.7} parent=11 // pred_fallthru
        _
      // Predicated region
      $region17: #{_lambda_.7} parent=11 // pred_check
        %p165 = pneg %p79
      $region18: #{_lambda_.7} parent=11 // pred_check_branch
        %167 = sbr.rel (%p165) target = $region20
      $region19: #{_lambda_.7} parent=11 // pred_region
        _
      $region20: #{_lambda_.7} parent=11 // pred_fallthru
        _
      // Predicated region
      $region21: #{_lambda_.7} parent=11 // pred_check
        %p168 = pneg %p100
      $region22: #{_lambda_.7} parent=11 // pred_check_branch
        %170 = sbr.rel (%p168) target = $region24
      $region23: #{_lambda_.7} parent=11 // pred_region
        _
      $region24: #{_lambda_.7} parent=11 // pred_fallthru
        _
      // Predicated region
      $region25: #{_lambda_.7} parent=11 // pred_check
        %p171 = pneg %p121
      $region26: #{_lambda_.7} parent=11 // pred_check_branch
        %173 = sbr.rel (%p171) target = $region28
      $region27: #{_lambda_.7} parent=11 // pred_region
        _
      $region28: #{_lambda_.7} parent=11 // pred_fallthru
        _
    $region12: #{_lambda_.7} parent=5 // pred_fallthru
      _
    %p174 = scmp.lt.s32.totalorder %s11, 2
    // Predicated region
    $region29: #{_lambda_.7} parent=5 // pred_check
      %p175 = pneg %p174
    $region30: #{_lambda_.7} parent=5 // pred_check_branch
      %177 = sbr.rel (%p175) target = $region32
    $region31: #{_lambda_.7} parent=5 // pred_region
      // Predicated region
      $region33: #{_lambda_.7} parent=31 // pred_check
        %p178 = pneg %p31
      $region34: #{_lambda_.7} parent=31 // pred_check_branch
        %180 = sbr.rel (%p178) target = $region36
      $region35: #{_lambda_.7} parent=31 // pred_region
        %s181 = smul.u32 4, %s11
        %p182 = scmp.lt.s32.totalorder %s181, 7
        %s183 = scalar_select %p182, %s181, 7
        %s184 = smul.addr %s183, 8
        %s185 = scalar_lea.vmem %s0, %s184
        %s186 = smul.u32 4, %s11
      $region36: #{_lambda_.7} parent=31 // pred_fallthru
        _
    $region32: #{_lambda_.7} parent=5 // pred_fallthru
      _
    %p187 = scmp.le.s32.totalorder 1, %s11
    %p188 = scmp.lt.s32.totalorder %s11, 3
    %p189 = pnand %p187, %p188
    %p190 = pneg %p189
    // Predicated region
    $region37: #{_lambda_.7} parent=5 // pred_check
      _
    $region38: #{_lambda_.7} parent=5 // pred_check_branch
      %192 = sbr.rel (%p189) target = $region40
    $region39: #{_lambda_.7} parent=5 // pred_region
      %s193 = ssub.s32 %s11, 1
      %s194 = smul.u32 4, %s16
      %p195 = scmp.lt.s32.totalorder %s194, 7
      %s196 = scalar_select %p195, %s194, 7
      %s197 = smul.addr %s196, 8
      %s198 = scalar_lea.vmem %s0, %s197
      %p199 = pneg %p37
      %p200 = pneg %p34
      %p201 = pneg %p58
      %p202 = pneg %p55
      %p203 = pneg %p79
      %p204 = pneg %p76
      %p205 = pneg %p100
      %p206 = pneg %p97
      %p207 = pneg %p121
      %p208 = pneg %p118
      %p209 = pneg %p147
      %p210 = pneg %p144
      %s211 = smul.u32 4, %s16
      %p212 = scmp.lt.s32.totalorder %s211, 7
      %s213 = scalar_select %p212, %s211, 7
      %s214 = smul.addr %s213, 4
      %s215 = scalar_lea.vmem %s5, %s214
      %s216 = smul.u32 4, %s16
      %p217 = scmp.lt.s32.totalorder %s216, 7
      %s218 = scalar_select %p217, %s216, 7
      %s219 = smul.addr %s218, 8
      %s220 = scalar_lea.vmem %s0, %s219
      %s221 = smul.u32 4, %s16
      %s222 = smul.u32 4, %s16
      %p223 = scmp.lt.s32.totalorder %s222, 7
      %s224 = scalar_select %p223, %s222, 7
      %s225 = smul.addr %s224, 4
      %s226 = scalar_lea.vmem %s5, %s225
      %s227 = smul.u32 4, %s16
      %v229 = vld [vmem:[%s220] sm:$0xff]
      %v230 = vld [vmem:[%s220 + $0x8] sm:$0xff]
      %v231 = vld [vmem:[%s220 + $0x10] sm:$0xff]
      %v232 = vld [vmem:[%s220 + $0x18] sm:$0xff]
      %v233 = vpack.c.bf16 %v230, %v229
      %v234 = vpack.c.bf16 %v232, %v231
      %v235 = vld [vmem:[%s2] sm:$0x1]
      %v236 = vunpack.c.l.bf16 %v235
      %v237 = vld [vmem:[%s1] sm:$0x3]
      %vm238 = vcmask 23552
      %v240 = vsel %vm238, %v233, 0
      %v243 = vsel %vm238, %v234, 0
      %vm245 = vcmask 1040384
      %vm246 = vcmask 1041408
      %v247 = vsel %vm245, 4294967295, 65535
      %v248 = vsel %vm246, %v247, 0
      %v250 = vand.u32 %v237, %v248
      %252 = vmatprep.subr.bf16.mxu0 0
      %253 = vmatpush1.bf16.msra.mxu0 %v250
      %254 = vmatprep.subr.bf16.mxu0 0
      %255 = vmatpush1.bf16.msra.mxu0 0
      %256 = vmatprep.subr.bf16.mxu0 0
      %257 = vmatpush1.bf16.msra.mxu0 0
      %258 = vmatprep.subr.bf16.mxu0 0
      %259 = vmatpush1.bf16.msra.mxu0 0
      %260 = vmatprep.subr.bf16.mxu0 0
      %261 = vmatpush1.bf16.msra.mxu0 0
      %262 = vmatprep.subr.bf16.mxu0 0
      %263 = vmatpush1.bf16.msra.mxu0 0
      %264 = vmatprep.subr.bf16.mxu0 0
      %265 = vmatpush1.bf16.msra.mxu0 0
      %266 = vmatprep.subr.bf16.mxu0 0
      %267 = vmatpush1.bf16.msra.mxu0 0
      %268 = vmatprep.subr.bf16.mxu0 0
      %269 = vmatpush1.bf16.msra.mxu0 0
      %270 = vmatprep.subr.bf16.mxu0 0
      %271 = vmatpush1.bf16.msra.mxu0 0
      %272 = vmatprep.subr.bf16.mxu0 0
      %273 = vmatpush1.bf16.msra.mxu0 0
      %274 = vmatprep.subr.bf16.mxu0 0
      %275 = vmatpush1.bf16.msra.mxu0 0
      %276 = vmatprep.subr.bf16.mxu0 0
      %277 = vmatpush1.bf16.msra.mxu0 0
      %278 = vmatprep.subr.bf16.mxu0 0
      %279 = vmatpush1.bf16.msra.mxu0 0
      %280 = vmatprep.subr.bf16.mxu0 0
      %281 = vmatpush1.bf16.msra.mxu0 0
      %282 = vmatprep.subr.bf16.mxu0 0
      %283 = vmatpush1.bf16.msra.mxu0 0
      %284 = vmatprep.mubr.bf16.mxu0 0
      %285 = vmatmul.mubr.bf16.gmra.mrb[0].mxu0 %v240
      %v286 = vpop.f32.mrb[0].mxu0
      %v287 = vadd.f32 0.0, %v286
      %v288 = vpop.f32.mrb[0].mxu0
      %v289 = vpop.f32.mrb[0].mxu0
      %v290 = vadd.f32 0.0, %v289
      %v291 = vpop.f32.mrb[0].mxu0
      %292 = vmatprep.mubr.bf16.mxu0 0
      %293 = vmatmul.mubr.bf16.gmra.mrb[0].mxu0 %v243
      %v294 = vpop.f32.mrb[0].mxu0
      %v295 = vadd.f32 0.0, %v294
      %v296 = vpop.f32.mrb[0].mxu0
      %v297 = vpop.f32.mrb[0].mxu0
      %v298 = vadd.f32 0.0, %v297
      %v299 = vpop.f32.mrb[0].mxu0
      %300 = vdwg.mxu0
      %v301 = vlaneseq
      %v302 = vshrl.u32 %v301, 7
      %v303 = vsub.s32 0, %v302
      %v304 = vrot.slane %v236, %v303
      %v305 = vadd.f32 %v304, %v287
      %v306 = vadd.f32 %v304, %v290
      %v307 = vadd.f32 %v304, %v295
      %v308 = vadd.f32 %v304, %v298
      %vm309 = vcmask 261120
      %v310 = vsel %vm309, %v305, 0.0
      %311 = vadd.xlane.f32.xlu0 %v310
      %v312 = vpop.xlane.xlu0 %311
      %v313 = vsel %vm309, %v306, 0.0
      %314 = vadd.xlane.f32.xlu0 %v313
      %v315 = vpop.xlane.xlu0 %314
      %v316 = vsel %vm309, %v307, 0.0
      %317 = vadd.xlane.f32.xlu0 %v316
      %v318 = vpop.xlane.xlu0 %317
      %v319 = vsel %vm309, %v308, 0.0
      %320 = vadd.xlane.f32.xlu0 %v319
      %v321 = vpop.xlane.xlu0 %320
      %v322 = vrcp.pop 32.0
      %v323 = vmul.f32 %v312, %v322
      %v324 = vmul.f32 %v315, %v322
      %v325 = vmul.f32 %v318, %v322
      %v326 = vmul.f32 %v321, %v322
      %v327 = vmul.f32 %v305, %v305
      %v328 = vmul.f32 %v306, %v306
      %v329 = vmul.f32 %v307, %v307
      %v330 = vmul.f32 %v308, %v308
      %v331 = vsel %vm309, %v327, 0.0
      %332 = vadd.xlane.f32.xlu0 %v331
      %v333 = vpop.xlane.xlu0 %332
      %v334 = vsel %vm309, %v328, 0.0
      %335 = vadd.xlane.f32.xlu0 %v334
      %v336 = vpop.xlane.xlu0 %335
      %v337 = vsel %vm309, %v329, 0.0
      %338 = vadd.xlane.f32.xlu0 %v337
      %v339 = vpop.xlane.xlu0 %338
      %v340 = vsel %vm309, %v330, 0.0
      %341 = vadd.xlane.f32.xlu0 %v340
      %v342 = vpop.xlane.xlu0 %341
      %v343 = vmul.f32 %v333, %v322
      %v344 = vmul.f32 %v336, %v322
      %v345 = vmul.f32 %v339, %v322
      %v346 = vmul.f32 %v342, %v322
      %v347 = vmul.f32 %v323, %v323
      %v348 = vmul.f32 %v324, %v324
      %v349 = vmul.f32 %v325, %v325
      %v350 = vmul.f32 %v326, %v326
      %v351 = vsub.f32 %v343, %v347
      %v352 = vsub.f32 %v344, %v348
      %v353 = vsub.f32 %v345, %v349
      %v354 = vsub.f32 %v346, %v350
      %v355 = vmax.f32 %v351, 0.0
      %v356 = vmax.f32 %v352, 0.0
      %v357 = vmax.f32 %v353, 0.0
      %v358 = vmax.f32 %v354, 0.0
      %v359 = vsub.f32 %v305, %v323
      %v360 = vsub.f32 %v306, %v324
      %v361 = vsub.f32 %v307, %v325
      %v362 = vsub.f32 %v308, %v326
      %v363 = vadd.f32 %v355, 1e-05
      %v364 = vadd.f32 %v356, 1e-05
      %v365 = vadd.f32 %v357, 1e-05
      %v366 = vadd.f32 %v358, 1e-05
      %v367 = vrsqrt.pop %v363
      %v368 = vrsqrt.pop %v364
      %v369 = vrsqrt.pop %v365
      %v370 = vrsqrt.pop %v366
      %v371 = vmul.f32 %v359, %v367
      %v372 = vmul.f32 %v360, %v368
      %v373 = vmul.f32 %v361, %v369
      %v374 = vmul.f32 %v362, %v370
      %v375 = vmax.f32 %v371, 0.0
      %v376 = vmax.f32 %v372, 0.0
      %v377 = vmax.f32 %v373, 0.0
      %v378 = vmax.f32 %v374, 0.0
      %v379 = vld [vmem:[%s3] sm:$0xf]
      %v380 = vld [vmem:[%s3 + $0x4] sm:$0xf]
      %v381 = vld [vmem:[%s3 + $0x8] sm:$0xf]
      %v382 = vld [vmem:[%s3 + $0xc] sm:$0xf]
      %v383 = vld [vmem:[%s4] sm:$0x1]
      %v384 = vunpack.c.l.bf16 %v383
      %v385 = vpack.c.bf16 %v376, %v375
      %v386 = vpack.c.bf16 %v378, %v377
      %v387 = vlaneseq
      %v388 = vshrl.u32 %v387, 7
      %v389 = vsub.s32 0, %v388
      %v390 = vrot.slane %v384, %v389
      %v395 = vunpack.c.l.b16 %v379
      %v396 = vunpack.c.l.b16 %v380
      %v397 = vunpack.c.l.b16 %v381
      %v398 = vunpack.c.l.b16 %v382
      %v399 = vpack.c.b16 %v396, %v395
      %v400 = vpack.c.b16 %v398, %v397
      %v404 = vsel %vm309, %v385, 0
      %v407 = vsel %vm309, %v386, 0
      %409 = vmatprep.subr.bf16.mxu0 0
      %410 = vmatpush1.bf16.msra.mxu0 %v399
      %411 = vmatprep.subr.bf16.mxu0 0
      %412 = vmatpush1.bf16.msra.mxu0 %v400
      %413 = vmatprep.subr.bf16.mxu0 0
      %414 = vmatpush1.bf16.msra.mxu0 0
      %415 = vmatprep.subr.bf16.mxu0 0
      %416 = vmatpush1.bf16.msra.mxu0 0
      %417 = vmatprep.subr.bf16.mxu0 0
      %418 = vmatpush1.bf16.msra.mxu0 0
      %419 = vmatprep.subr.bf16.mxu0 0
      %420 = vmatpush1.bf16.msra.mxu0 0
      %421 = vmatprep.subr.bf16.mxu0 0
      %422 = vmatpush1.bf16.msra.mxu0 0
      %423 = vmatprep.subr.bf16.mxu0 0
      %424 = vmatpush1.bf16.msra.mxu0 0
      %425 = vmatprep.subr.bf16.mxu0 0
      %426 = vmatpush1.bf16.msra.mxu0 0
      %427 = vmatprep.subr.bf16.mxu0 0
      %428 = vmatpush1.bf16.msra.mxu0 0
      %429 = vmatprep.subr.bf16.mxu0 0
      %430 = vmatpush1.bf16.msra.mxu0 0
      %431 = vmatprep.subr.bf16.mxu0 0
      %432 = vmatpush1.bf16.msra.mxu0 0
      %433 = vmatprep.subr.bf16.mxu0 0
      %434 = vmatpush1.bf16.msra.mxu0 0
      %435 = vmatprep.subr.bf16.mxu0 0
      %436 = vmatpush1.bf16.msra.mxu0 0
      %437 = vmatprep.subr.bf16.mxu0 0
      %438 = vmatpush1.bf16.msra.mxu0 0
      %439 = vmatprep.subr.bf16.mxu0 0
      %440 = vmatpush1.bf16.msra.mxu0 0
      %441 = vmatprep.mubr.bf16.mxu0 0
      %442 = vmatmul.mubr.bf16.gmra.mrb[0].mxu0 %v404
      %v443 = vpop.f32.mrb[0].mxu0
      %v444 = vadd.f32 %v390, %v443
      %v445 = vpop.f32.mrb[0].mxu0
      %v446 = vpop.f32.mrb[0].mxu0
      %v447 = vadd.f32 %v390, %v446
      %v448 = vpop.f32.mrb[0].mxu0
      %449 = vmatprep.mubr.bf16.mxu0 0
      %450 = vmatmul.mubr.bf16.gmra.mrb[0].mxu0 %v407
      %v451 = vpop.f32.mrb[0].mxu0
      %v452 = vadd.f32 %v390, %v451
      %v453 = vpop.f32.mrb[0].mxu0
      %v454 = vpop.f32.mrb[0].mxu0
      %v455 = vadd.f32 %v390, %v454
      %v456 = vpop.f32.mrb[0].mxu0
      %457 = vdwg.mxu0
      %vm458 = vcmask 130048
      %v459 = vsel %vm458, %v444, 0.0
      %460 = vadd.xlane.f32.xlu0 %v459
      %v461 = vpop.xlane.xlu0 %460
      %v462 = vsel %vm458, %v447, 0.0
      %463 = vadd.xlane.f32.xlu0 %v462
      %v464 = vpop.xlane.xlu0 %463
      %v465 = vsel %vm458, %v452, 0.0
      %466 = vadd.xlane.f32.xlu0 %v465
      %v467 = vpop.xlane.xlu0 %466
      %v468 = vsel %vm458, %v455, 0.0
      %469 = vadd.xlane.f32.xlu0 %v468
      %v470 = vpop.xlane.xlu0 %469
      %v471 = vrcp.pop 16.0
      %v472 = vmul.f32 %v461, %v471
      %v473 = vmul.f32 %v464, %v471
      %v474 = vmul.f32 %v467, %v471
      %v475 = vmul.f32 %v470, %v471
      %v476 = vmul.f32 %v444, %v444
      %v477 = vmul.f32 %v447, %v447
      %v478 = vmul.f32 %v452, %v452
      %v479 = vmul.f32 %v455, %v455
      %v480 = vsel %vm458, %v476, 0.0
      %481 = vadd.xlane.f32.xlu0 %v480
      %v482 = vpop.xlane.xlu0 %481
      %v483 = vsel %vm458, %v477, 0.0
      %484 = vadd.xlane.f32.xlu0 %v483
      %v485 = vpop.xlane.xlu0 %484
      %v486 = vsel %vm458, %v478, 0.0
      %487 = vadd.xlane.f32.xlu0 %v486
      %v488 = vpop.xlane.xlu0 %487
      %v489 = vsel %vm458, %v479, 0.0
      %490 = vadd.xlane.f32.xlu0 %v489
      %v491 = vpop.xlane.xlu0 %490
      %v492 = vmul.f32 %v482, %v471
      %v493 = vmul.f32 %v485, %v471
      %v494 = vmul.f32 %v488, %v471
      %v495 = vmul.f32 %v491, %v471
      %v496 = vmul.f32 %v472, %v472
      %v497 = vmul.f32 %v473, %v473
      %v498 = vmul.f32 %v474, %v474
      %v499 = vmul.f32 %v475, %v475
      %v500 = vsub.f32 %v492, %v496
      %v501 = vsub.f32 %v493, %v497
      %v502 = vsub.f32 %v494, %v498
      %v503 = vsub.f32 %v495, %v499
      %v504 = vmax.f32 %v500, 0.0
      %v505 = vmax.f32 %v501, 0.0
      %v506 = vmax.f32 %v502, 0.0
      %v507 = vmax.f32 %v503, 0.0
      %v508 = vsub.f32 %v444, %v472
      %v509 = vsub.f32 %v447, %v473
      %v510 = vsub.f32 %v452, %v474
      %v511 = vsub.f32 %v455, %v475
      %v512 = vadd.f32 %v504, 1e-05
      %v513 = vadd.f32 %v505, 1e-05
      %v514 = vadd.f32 %v506, 1e-05
      %v515 = vadd.f32 %v507, 1e-05
      %v516 = vrsqrt.pop %v512
      %v517 = vrsqrt.pop %v513
      %v518 = vrsqrt.pop %v514
      %v519 = vrsqrt.pop %v515
      %v520 = vmul.f32 %v508, %v516
      %v521 = vmul.f32 %v509, %v517
      %v522 = vmul.f32 %v510, %v518
      %v523 = vmul.f32 %v511, %v519
      %v524 = vmax.f32 %v520, 0.0
      %v525 = vmax.f32 %v521, 0.0
      %v526 = vmax.f32 %v522, 0.0
      %v527 = vmax.f32 %v523, 0.0
      %v528 = vpack.c.bf16 %v525, %v524
      %v529 = vpack.c.bf16 %v527, %v526
      %v532 = vunpack.c.l.b16 %v528
      %v533 = vunpack.c.h.b16 %v528
      %v534 = vunpack.c.l.b16 %v529
      %v535 = vunpack.c.h.b16 %v529
      %v536 = vpack.c.b16 %v532, %v532
      %v537 = vpack.c.b16 %v533, %v533
      %v538 = vpack.c.b16 %v534, %v534
      %v539 = vpack.c.b16 %v535, %v535
      %vm544 = vcmask 125952
      %545 = vst.msk [vmem:[%s226] sm:$0xf] %vm544, %v536
      %546 = vst.msk [vmem:[%s226 + $0x4] sm:$0xf] %vm544, %v537
      %547 = vst.msk [vmem:[%s226 + $0x8] sm:$0xf] %vm544, %v538
      %548 = vst.msk [vmem:[%s226 + $0xc] sm:$0xf] %vm544, %v539
      %s549 = smul.u32 4, %s16
      %p550 = scmp.lt.s32.totalorder %s549, 7
      %s551 = scalar_select %p550, %s549, 7
      %s552 = smul.addr %s551, 4
      %s553 = scalar_lea.vmem %s5, %s552
      // Predicated region
      $region41: #{_lambda_.7} parent=39 // pred_check
        %p554 = pneg %p144
      $region42: #{_lambda_.7} parent=39 // pred_check_branch
        %556 = sbr.rel (%p554) target = $region44
      $region43: #{_lambda_.7} parent=39 // pred_region
        %s557 = smul.u32 4, %s16
      $region44: #{_lambda_.7} parent=39 // pred_fallthru
        _
    $region40: #{_lambda_.7} parent=5 // pred_fallthru
      _
    %p558 = scmp.le.s32.totalorder 2, %s11
    // Predicated region
    $region45: #{_lambda_.7} parent=5 // pred_check
      %p559 = pneg %p558
    $region46: #{_lambda_.7} parent=5 // pred_check_branch
      %561 = sbr.rel (%p559) target = $region48
    $region47: #{_lambda_.7} parent=5 // pred_region
      %s562 = ssub.s32 %s11, 2
      // Predicated region
      $region49: #{_lambda_.7} parent=47 // pred_check
        %p563 = pneg %p150
      $region50: #{_lambda_.7} parent=47 // pred_check_branch
        %565 = sbr.rel (%p563) target = $region52
      $region51: #{_lambda_.7} parent=47 // pred_region
        %s566 = smul.u32 4, %s17
        %p567 = scmp.lt.s32.totalorder %s566, 7
        %s568 = scalar_select %p567, %s566, 7
        %s569 = smul.addr %s568, 4
        %s570 = scalar_lea.vmem %s5, %s569
      $region52: #{_lambda_.7} parent=47 // pred_fallthru
        _
    $region48: #{_lambda_.7} parent=5 // pred_fallthru
      _
  $region6: #{_lambda_.7} parent=0 // loop_footer
    %s15 = sadd.s32 1, %s11
  $region7: #{_lambda_.7} parent=0 // loop_footer_branch
    %10 = sbr.rel target = $region3
  $region8: #{_lambda_.7} parent=0 // loop_exit
    _

// kernel: _lambda_.8
$region0: #{_lambda_.8}
  #allocation0 [shape = 'u32[]', space=smem, size = 0x4, offset = 0x4, fixed_abs, tag = 'smem constant byte address 0x4 - core index']
  #allocation1 [shape = 'u32[144,128]{1,0:T(1,128)}', space=vmem, size = 0x12000, scoped, tag = 'internal scratch']
  %s0 = inlined_call_operand.vmem [shape: f32[128,3], index: 0, kind: input, shape index: {}]
  %s1 = inlined_call_operand.vmem [shape: f32[128,3], index: 1, kind: input, shape index: {}]
  %s2 = inlined_call_operand.vmem [shape: bf16[3,32], index: 2, kind: input, shape index: {}]
  %s3 = inlined_call_operand.vmem [shape: bf16[3,32], index: 3, kind: input, shape index: {}]
  %s4 = inlined_call_operand.vmem [shape: bf16[1,32], index: 4, kind: input, shape index: {}]
  %s5 = inlined_call_operand.vmem [shape: bf16[32,16], index: 5, kind: input, shape index: {}]
  %s6 = inlined_call_operand.vmem [shape: bf16[1,16], index: 6, kind: input, shape index: {}]
  %s7 = inlined_call_operand.vmem [shape: bf16[128,16], index: 7, kind: output, shape index: {}]
  %s8 = sld [smem:[#allocation0]]
  $region61: #{_lambda_.8} parent=0
    _
  %s10 = ssub.s32 1, %s8
  %s11 = scalar_select 0, %s10, %s8
  loop: start=0, step=1, limit=4
  $region2: #{_lambda_.8} parent=0 // loop_pre_header
    _
  $region3: #{_lambda_.8} parent=0 // loop_header
    %s13 = sphi 0, %s17
    %p14 = scmp.ge.s32.totalorder %s13, 4
    %s23 = sphi 0, %s25
    %s26 = sphi 0, %s23
    %s27 = sphi 0, %s26
    %s43 = sphi 0, %s27
    %s49 = sphi 0, %s51
    %s52 = sphi 0, %s49
    %s53 = sphi 0, %s52
    %s69 = sphi 0, %s53
    %s73 = sphi 0, %s73
    %s75 = sphi 0, %s73
    %s76 = sphi 0, %s75
    %s90 = sphi 0, %s76
    %s94 = sphi 0, %s94
    %s96 = sphi 0, %s94
    %s97 = sphi 0, %s96
    %s111 = sphi 0, %s97
    %s115 = sphi 0, %s115
    %s117 = sphi 0, %s115
    %s118 = sphi 0, %s117
    %s132 = sphi 0, %s118
    %s136 = sphi 0, %s136
    %s138 = sphi 0, %s136
    %s139 = sphi 0, %s138
    %s153 = sphi 0, %s139
    %s157 = sphi 0, %s157
    %s159 = sphi 0, %s157
    %s160 = sphi 0, %s159
    %s174 = sphi 0, %s160
    %s180 = sphi 0, %s182
    %s183 = sphi 0, %s180
    %s184 = sphi 0, %s183
    %s200 = sphi 0, %s184
  $region4: #{_lambda_.8} parent=0 // loop_header_branch
    %16 = sbr.rel (%p14) target = $region8
  $region5: #{_lambda_.8} parent=0 // loop_body
    %s18 = ssub.s32 %s13, 1
    %s19 = ssub.s32 %s13, 2
    %s20 = sadd.s32 %s13, 1
    %s21 = ssub.s32 %s13, %s20
    %p22 = scmp.eq.s32.totalorder %s21, 0
    %s24 = sadd.s32 %s23, 1
    %s25 = scalar_select %p22, %s23, %s24
    %p28 = pneg %p22
    %p29 = scmp.eq.s32.totalorder %s13, 1
    %p30 = por %p28, %p29
    %p31 = scmp.ne.s32.totalorder %s23, %s26
    %p32 = scmp.eq.s32.totalorder %s13, 0
    %p33 = por %p31, %p32
    %p34 = scmp.ne.s32.totalorder %s23, %s26
    %p35 = scmp.eq.s32.totalorder %s18, 1
    %p36 = por %p34, %p35
    %p37 = scmp.ne.s32.totalorder %s26, %s27
    %p38 = scmp.eq.s32.totalorder %s18, 0
    %p39 = por %p37, %p38
    %p40 = scmp.ne.s32.totalorder %s26, %s27
    %p41 = scmp.eq.s32.totalorder %s19, 1
    %p42 = por %p40, %p41
    %p44 = scmp.ne.s32.totalorder %s27, %s43
    %p45 = scmp.eq.s32.totalorder %s19, 0
    %p46 = por %p44, %p45
    %s47 = ssub.s32 %s13, %s20
    %p48 = scmp.eq.s32.totalorder %s47, 0
    %s50 = sadd.s32 %s49, 1
    %s51 = scalar_select %p48, %s49, %s50
    %p54 = pneg %p48
    %p55 = scmp.eq.s32.totalorder %s13, 1
    %p56 = por %p54, %p55
    %p57 = scmp.ne.s32.totalorder %s49, %s52
    %p58 = scmp.eq.s32.totalorder %s13, 0
    %p59 = por %p57, %p58
    %p60 = scmp.ne.s32.totalorder %s49, %s52
    %p61 = scmp.eq.s32.totalorder %s18, 1
    %p62 = por %p60, %p61
    %p63 = scmp.ne.s32.totalorder %s52, %s53
    %p64 = scmp.eq.s32.totalorder %s18, 0
    %p65 = por %p63, %p64
    %p66 = scmp.ne.s32.totalorder %s52, %s53
    %p67 = scmp.eq.s32.totalorder %s19, 1
    %p68 = por %p66, %p67
    %p70 = scmp.ne.s32.totalorder %s53, %s69
    %p71 = scmp.eq.s32.totalorder %s19, 0
    %p72 = por %p70, %p71
    %s74 = sadd.s32 %s73, 1
    %p77 = scmp.eq.s32.totalorder %s13, 1
    %p78 = scmp.ne.s32.totalorder %s73, %s75
    %p79 = scmp.eq.s32.totalorder %s13, 0
    %p80 = por %p78, %p79
    %p81 = scmp.ne.s32.totalorder %s73, %s75
    %p82 = scmp.eq.s32.totalorder %s18, 1
    %p83 = por %p81, %p82
    %p84 = scmp.ne.s32.totalorder %s75, %s76
    %p85 = scmp.eq.s32.totalorder %s18, 0
    %p86 = por %p84, %p85
    %p87 = scmp.ne.s32.totalorder %s75, %s76
    %p88 = scmp.eq.s32.totalorder %s19, 1
    %p89 = por %p87, %p88
    %p91 = scmp.ne.s32.totalorder %s76, %s90
    %p92 = scmp.eq.s32.totalorder %s19, 0
    %p93 = por %p91, %p92
    %s95 = sadd.s32 %s94, 1
    %p98 = scmp.eq.s32.totalorder %s13, 1
    %p99 = scmp.ne.s32.totalorder %s94, %s96
    %p100 = scmp.eq.s32.totalorder %s13, 0
    %p101 = por %p99, %p100
    %p102 = scmp.ne.s32.totalorder %s94, %s96
    %p103 = scmp.eq.s32.totalorder %s18, 1
    %p104 = por %p102, %p103
    %p105 = scmp.ne.s32.totalorder %s96, %s97
    %p106 = scmp.eq.s32.totalorder %s18, 0
    %p107 = por %p105, %p106
    %p108 = scmp.ne.s32.totalorder %s96, %s97
    %p109 = scmp.eq.s32.totalorder %s19, 1
    %p110 = por %p108, %p109
    %p112 = scmp.ne.s32.totalorder %s97, %s111
    %p113 = scmp.eq.s32.totalorder %s19, 0
    %p114 = por %p112, %p113
    %s116 = sadd.s32 %s115, 1
    %p119 = scmp.eq.s32.totalorder %s13, 1
    %p120 = scmp.ne.s32.totalorder %s115, %s117
    %p121 = scmp.eq.s32.totalorder %s13, 0
    %p122 = por %p120, %p121
    %p123 = scmp.ne.s32.totalorder %s115, %s117
    %p124 = scmp.eq.s32.totalorder %s18, 1
    %p125 = por %p123, %p124
    %p126 = scmp.ne.s32.totalorder %s117, %s118
    %p127 = scmp.eq.s32.totalorder %s18, 0
    %p128 = por %p126, %p127
    %p129 = scmp.ne.s32.totalorder %s117, %s118
    %p130 = scmp.eq.s32.totalorder %s19, 1
    %p131 = por %p129, %p130
    %p133 = scmp.ne.s32.totalorder %s118, %s132
    %p134 = scmp.eq.s32.totalorder %s19, 0
    %p135 = por %p133, %p134
    %s137 = sadd.s32 %s136, 1
    %p140 = scmp.eq.s32.totalorder %s13, 1
    %p141 = scmp.ne.s32.totalorder %s136, %s138
    %p142 = scmp.eq.s32.totalorder %s13, 0
    %p143 = por %p141, %p142
    %p144 = scmp.ne.s32.totalorder %s136, %s138
    %p145 = scmp.eq.s32.totalorder %s18, 1
    %p146 = por %p144, %p145
    %p147 = scmp.ne.s32.totalorder %s138, %s139
    %p148 = scmp.eq.s32.totalorder %s18, 0
    %p149 = por %p147, %p148
    %p150 = scmp.ne.s32.totalorder %s138, %s139
    %p151 = scmp.eq.s32.totalorder %s19, 1
    %p152 = por %p150, %p151
    %p154 = scmp.ne.s32.totalorder %s139, %s153
    %p155 = scmp.eq.s32.totalorder %s19, 0
    %p156 = por %p154, %p155
    %s158 = sadd.s32 %s157, 1
    %p161 = scmp.eq.s32.totalorder %s13, 1
    %p162 = scmp.ne.s32.totalorder %s157, %s159
    %p163 = scmp.eq.s32.totalorder %s13, 0
    %p164 = por %p162, %p163
    %p165 = scmp.ne.s32.totalorder %s157, %s159
    %p166 = scmp.eq.s32.totalorder %s18, 1
    %p167 = por %p165, %p166
    %p168 = scmp.ne.s32.totalorder %s159, %s160
    %p169 = scmp.eq.s32.totalorder %s18, 0
    %p170 = por %p168, %p169
    %p171 = scmp.ne.s32.totalorder %s159, %s160
    %p172 = scmp.eq.s32.totalorder %s19, 1
    %p173 = por %p171, %p172
    %p175 = scmp.ne.s32.totalorder %s160, %s174
    %p176 = scmp.eq.s32.totalorder %s19, 0
    %p177 = por %p175, %p176
    %s178 = ssub.s32 %s13, %s20
    %p179 = scmp.eq.s32.totalorder %s178, 0
    %s181 = sadd.s32 %s180, 1
    %s182 = scalar_select %p179, %s180, %s181
    %p185 = pneg %p179
    %p186 = scmp.eq.s32.totalorder %s13, 1
    %p187 = por %p185, %p186
    %p188 = scmp.ne.s32.totalorder %s180, %s183
    %p189 = scmp.eq.s32.totalorder %s13, 0
    %p190 = por %p188, %p189
    %p191 = scmp.ne.s32.totalorder %s180, %s183
    %p192 = scmp.eq.s32.totalorder %s18, 1
    %p193 = por %p191, %p192
    %p194 = scmp.ne.s32.totalorder %s183, %s184
    %p195 = scmp.eq.s32.totalorder %s18, 0
    %p196 = por %p194, %p195
    %p197 = scmp.ne.s32.totalorder %s183, %s184
    %p198 = scmp.eq.s32.totalorder %s19, 1
    %p199 = por %p197, %p198
    %p201 = scmp.ne.s32.totalorder %s184, %s200
    %p202 = scmp.eq.s32.totalorder %s19, 0
    %p203 = por %p201, %p202
    %p204 = scmp.le.s32.totalorder 1, %s13
    %p205 = scmp.lt.s32.totalorder %s13, 3
    %p206 = pnand %p204, %p205
    %p207 = pneg %p206
    // Predicated region
    $region9: #{_lambda_.8} parent=5 // pred_check
      _
    $region10: #{_lambda_.8} parent=5 // pred_check_branch
      %209 = sbr.rel (%p206) target = $region12
    $region11: #{_lambda_.8} parent=5 // pred_region
      %s210 = ssub.s32 %s13, 1
      // Predicated region
      $region13: #{_lambda_.8} parent=11 // pred_check
        %p211 = pneg %p86
      $region14: #{_lambda_.8} parent=11 // pred_check_branch
        %213 = sbr.rel (%p211) target = $region16
      $region15: #{_lambda_.8} parent=11 // pred_region
        _
      $region16: #{_lambda_.8} parent=11 // pred_fallthru
        _
      // Predicated region
      $region17: #{_lambda_.8} parent=11 // pred_check
        %p214 = pneg %p107
      $region18: #{_lambda_.8} parent=11 // pred_check_branch
        %216 = sbr.rel (%p214) target = $region20
      $region19: #{_lambda_.8} parent=11 // pred_region
        _
      $region20: #{_lambda_.8} parent=11 // pred_fallthru
        _
      // Predicated region
      $region21: #{_lambda_.8} parent=11 // pred_check
        %p217 = pneg %p128
      $region22: #{_lambda_.8} parent=11 // pred_check_branch
        %219 = sbr.rel (%p217) target = $region24
      $region23: #{_lambda_.8} parent=11 // pred_region
        _
      $region24: #{_lambda_.8} parent=11 // pred_fallthru
        _
      // Predicated region
      $region25: #{_lambda_.8} parent=11 // pred_check
        %p220 = pneg %p149
      $region26: #{_lambda_.8} parent=11 // pred_check_branch
        %222 = sbr.rel (%p220) target = $region28
      $region27: #{_lambda_.8} parent=11 // pred_region
        _
      $region28: #{_lambda_.8} parent=11 // pred_fallthru
        _
      // Predicated region
      $region29: #{_lambda_.8} parent=11 // pred_check
        %p223 = pneg %p170
      $region30: #{_lambda_.8} parent=11 // pred_check_branch
        %225 = sbr.rel (%p223) target = $region32
      $region31: #{_lambda_.8} parent=11 // pred_region
        _
      $region32: #{_lambda_.8} parent=11 // pred_fallthru
        _
    $region12: #{_lambda_.8} parent=5 // pred_fallthru
      _
    %p226 = scmp.lt.s32.totalorder %s13, 2
    // Predicated region
    $region33: #{_lambda_.8} parent=5 // pred_check
      %p227 = pneg %p226
    $region34: #{_lambda_.8} parent=5 // pred_check_branch
      %229 = sbr.rel (%p227) target = $region36
    $region35: #{_lambda_.8} parent=5 // pred_region
      // Predicated region
      $region37: #{_lambda_.8} parent=35 // pred_check
        %p230 = pneg %p33
      $region38: #{_lambda_.8} parent=35 // pred_check_branch
        %232 = sbr.rel (%p230) target = $region40
      $region39: #{_lambda_.8} parent=35 // pred_region
        %s233 = smul.u32 8, %s13
        %p234 = scmp.lt.s32.totalorder %s233, 15
        %s235 = scalar_select %p234, %s233, 15
        %s236 = smul.addr %s235, 8
        %s237 = scalar_lea.vmem %s0, %s236
        %s238 = smul.u32 8, %s13
      $region40: #{_lambda_.8} parent=35 // pred_fallthru
        _
      // Predicated region
      $region41: #{_lambda_.8} parent=35 // pred_check
        %p239 = pneg %p59
      $region42: #{_lambda_.8} parent=35 // pred_check_branch
        %241 = sbr.rel (%p239) target = $region44
      $region43: #{_lambda_.8} parent=35 // pred_region
        %s242 = smul.u32 8, %s13
        %p243 = scmp.lt.s32.totalorder %s242, 15
        %s244 = scalar_select %p243, %s242, 15
        %s245 = smul.addr %s244, 8
        %s246 = scalar_lea.vmem %s1, %s245
        %s247 = smul.u32 8, %s13
      $region44: #{_lambda_.8} parent=35 // pred_fallthru
        _
    $region36: #{_lambda_.8} parent=5 // pred_fallthru
      _
    %p248 = scmp.le.s32.totalorder 1, %s13
    %p249 = scmp.lt.s32.totalorder %s13, 3
    %p250 = pnand %p248, %p249
    %p251 = pneg %p250
    // Predicated region
    $region45: #{_lambda_.8} parent=5 // pred_check
      _
    $region46: #{_lambda_.8} parent=5 // pred_check_branch
      %253 = sbr.rel (%p250) target = $region48
    $region47: #{_lambda_.8} parent=5 // pred_region
      %s254 = ssub.s32 %s13, 1
      %s255 = smul.u32 8, %s18
      %p256 = scmp.lt.s32.totalorder %s255, 15
      %s257 = scalar_select %p256, %s255, 15
      %s258 = smul.addr %s257, 8
      %s259 = scalar_lea.vmem %s0, %s258
      %p260 = pneg %p39
      %p261 = pneg %p36
      %s262 = smul.u32 8, %s18
      %p263 = scmp.lt.s32.totalorder %s262, 15
      %s264 = scalar_select %p263, %s262, 15
      %s265 = smul.addr %s264, 8
      %s266 = scalar_lea.vmem %s1, %s265
      %p267 = pneg %p65
      %p268 = pneg %p62
      %p269 = pneg %p86
      %p270 = pneg %p83
      %p271 = pneg %p107
      %p272 = pneg %p104
      %p273 = pneg %p128
      %p274 = pneg %p125
      %p275 = pneg %p149
      %p276 = pneg %p146
      %p277 = pneg %p170
      %p278 = pneg %p167
      %p279 = pneg %p196
      %p280 = pneg %p193
      %s281 = smul.u32 8, %s18
      %p282 = scmp.lt.s32.totalorder %s281, 15
      %s283 = scalar_select %p282, %s281, 15
      %s284 = smul.addr %s283, 4
      %s285 = scalar_lea.vmem %s7, %s284
      %s286 = smul.u32 8, %s18
      %p287 = scmp.lt.s32.totalorder %s286, 15
      %s288 = scalar_select %p287, %s286, 15
      %s289 = smul.addr %s288, 8
      %s290 = scalar_lea.vmem %s0, %s289
      %s291 = smul.u32 8, %s18
      %s292 = smul.u32 8, %s18
      %p293 = scmp.lt.s32.totalorder %s292, 15
      %s294 = scalar_select %p293, %s292, 15
      %s295 = smul.addr %s294, 8
      %s296 = scalar_lea.vmem %s1, %s295
      %s297 = smul.u32 8, %s18
      %s298 = smul.u32 8, %s18
      %p299 = scmp.lt.s32.totalorder %s298, 15
      %s300 = scalar_select %p299, %s298, 15
      %s301 = smul.addr %s300, 4
      %s302 = scalar_lea.vmem %s7, %s301
      %s303 = smul.u32 8, %s18
      %v305 = vld [vmem:[%s290] sm:$0xff]
      %v306 = vld [vmem:[%s290 + $0x8] sm:$0xff]
      %v307 = vld [vmem:[%s290 + $0x10] sm:$0xff]
      %v308 = vld [vmem:[%s290 + $0x18] sm:$0xff]
      %v309 = vld [vmem:[%s290 + $0x20] sm:$0xff]
      %v310 = vld [vmem:[%s290 + $0x28] sm:$0xff]
      %v311 = vld [vmem:[%s290 + $0x30] sm:$0xff]
      %v312 = vld [vmem:[%s290 + $0x38] sm:$0xff]
      %v313 = vpack.c.bf16 %v306, %v305
      %v314 = vpack.c.bf16 %v308, %v307
      %v315 = vpack.c.bf16 %v310, %v309
      %v316 = vpack.c.bf16 %v312, %v311
      %v317 = vld [vmem:[%s296] sm:$0xff]
      %v318 = vld [vmem:[%s296 + $0x8] sm:$0xff]
      %v319 = vld [vmem:[%s296 + $0x10] sm:$0xff]
      %v320 = vld [vmem:[%s296 + $0x18] sm:$0xff]
      %v321 = vld [vmem:[%s296 + $0x20] sm:$0xff]
      %v322 = vld [vmem:[%s296 + $0x28] sm:$0xff]
      %v323 = vld [vmem:[%s296 + $0x30] sm:$0xff]
      %v324 = vld [vmem:[%s296 + $0x38] sm:$0xff]
      %v325 = vpack.c.bf16 %v318, %v317
      %v326 = vpack.c.bf16 %v320, %v319
      %v327 = vpack.c.bf16 %v322, %v321
      %v328 = vpack.c.bf16 %v324, %v323
      %v329 = vld [vmem:[%s4] sm:$0x1]
      %v330 = vunpack.c.l.bf16 %v329
      %v331 = vld [vmem:[%s2] sm:$0x3]
      %vm332 = vcmask 23552
      %v334 = vsel %vm332, %v313, 0
      %v337 = vsel %vm332, %v314, 0
      %v340 = vsel %vm332, %v315, 0
      %v343 = vsel %vm332, %v316, 0
      %vm345 = vcmask 1040384
      %vm346 = vcmask 1041408
      %v347 = vsel %vm345, 4294967295, 65535
      %v348 = vsel %vm346, %v347, 0
      %v350 = vand.u32 %v331, %v348
      %352 = vmatprep.subr.bf16.mxu0 0
      %353 = vmatpush1.bf16.msra.mxu0 %v350
      %354 = vmatprep.subr.bf16.mxu0 0
      %355 = vmatpush1.bf16.msra.mxu0 0
      %356 = vmatprep.subr.bf16.mxu0 0
      %357 = vmatpush1.bf16.msra.mxu0 0
      %358 = vmatprep.subr.bf16.mxu0 0
      %359 = vmatpush1.bf16.msra.mxu0 0
      %360 = vmatprep.subr.bf16.mxu0 0
      %361 = vmatpush1.bf16.msra.mxu0 0
      %362 = vmatprep.subr.bf16.mxu0 0
      %363 = vmatpush1.bf16.msra.mxu0 0
      %364 = vmatprep.subr.bf16.mxu0 0
      %365 = vmatpush1.bf16.msra.mxu0 0
      %366 = vmatprep.subr.bf16.mxu0 0
      %367 = vmatpush1.bf16.msra.mxu0 0
      %368 = vmatprep.subr.bf16.mxu0 0
      %369 = vmatpush1.bf16.msra.mxu0 0
      %370 = vmatprep.subr.bf16.mxu0 0
      %371 = vmatpush1.bf16.msra.mxu0 0
      %372 = vmatprep.subr.bf16.mxu0 0
      %373 = vmatpush1.bf16.msra.mxu0 0
      %374 = vmatprep.subr.bf16.mxu0 0
      %375 = vmatpush1.bf16.msra.mxu0 0
      %376 = vmatprep.subr.bf16.mxu0 0
      %377 = vmatpush1.bf16.msra.mxu0 0
      %378 = vmatprep.subr.bf16.mxu0 0
      %379 = vmatpush1.bf16.msra.mxu0 0
      %380 = vmatprep.subr.bf16.mxu0 0
      %381 = vmatpush1.bf16.msra.mxu0 0
      %382 = vmatprep.subr.bf16.mxu0 0
      %383 = vmatpush1.bf16.msra.mxu0 0
      %384 = vmatprep.mubr.bf16.mxu0 0
      %385 = vmatmul.mubr.bf16.gmra.mrb[0].mxu0 %v334
      %v386 = vpop.f32.mrb[0].mxu0
      %v387 = vadd.f32 0.0, %v386
      %v388 = vpop.f32.mrb[0].mxu0
      %v389 = vpop.f32.mrb[0].mxu0
      %v390 = vadd.f32 0.0, %v389
      %v391 = vpop.f32.mrb[0].mxu0
      %392 = vmatprep.mubr.bf16.mxu0 0
      %393 = vmatmul.mubr.bf16.gmra.mrb[0].mxu0 %v337
      %v394 = vpop.f32.mrb[0].mxu0
      %v395 = vadd.f32 0.0, %v394
      %v396 = vpop.f32.mrb[0].mxu0
      %v397 = vpop.f32.mrb[0].mxu0
      %v398 = vadd.f32 0.0, %v397
      %v399 = vpop.f32.mrb[0].mxu0
      %400 = vmatprep.mubr.bf16.mxu0 0
      %401 = vmatmul.mubr.bf16.gmra.mrb[0].mxu0 %v340
      %v402 = vpop.f32.mrb[0].mxu0
      %v403 = vadd.f32 0.0, %v402
      %v404 = vpop.f32.mrb[0].mxu0
      %v405 = vpop.f32.mrb[0].mxu0
      %v406 = vadd.f32 0.0, %v405
      %v407 = vpop.f32.mrb[0].mxu0
      %408 = vmatprep.mubr.bf16.mxu0 0
      %409 = vmatmul.mubr.bf16.gmra.mrb[0].mxu0 %v343
      %v410 = vpop.f32.mrb[0].mxu0
      %v411 = vadd.f32 0.0, %v410
      %v412 = vpop.f32.mrb[0].mxu0
      %v413 = vpop.f32.mrb[0].mxu0
      %v414 = vadd.f32 0.0, %v413
      %v415 = vpop.f32.mrb[0].mxu0
      %416 = vdwg.mxu0
      %v417 = vlaneseq
      %v418 = vshrl.u32 %v417, 7
      %v419 = vsub.s32 0, %v418
      %v420 = vrot.slane %v330, %v419
      %v421 = vadd.f32 %v420, %v387
      %v422 = vadd.f32 %v420, %v390
      %v423 = vadd.f32 %v420, %v395
      %v424 = vadd.f32 %v420, %v398
      %v425 = vadd.f32 %v420, %v403
      %v426 = vadd.f32 %v420, %v406
      %v427 = vadd.f32 %v420, %v411
      %v428 = vadd.f32 %v420, %v414
      %v429 = vld [vmem:[%s3] sm:$0x3]
      %v431 = vsel %vm332, %v325, 0
      %v434 = vsel %vm332, %v326, 0
      %v437 = vsel %vm332, %v327, 0
      %v440 = vsel %vm332, %v328, 0
      %v443 = vand.u32 %v429, %v348
      %445 = vmatprep.subr.bf16.mxu0 0
      %446 = vmatpush1.bf16.msra.mxu0 %v443
      %447 = vmatprep.subr.bf16.mxu0 0
      %448 = vmatpush1.bf16.msra.mxu0 0
      %449 = vmatprep.subr.bf16.mxu0 0
      %450 = vmatpush1.bf16.msra.mxu0 0
      %451 = vmatprep.subr.bf16.mxu0 0
      %452 = vmatpush1.bf16.msra.mxu0 0
      %453 = vmatprep.subr.bf16.mxu0 0
      %454 = vmatpush1.bf16.msra.mxu0 0
      %455 = vmatprep.subr.bf16.mxu0 0
      %456 = vmatpush1.bf16.msra.mxu0 0
      %457 = vmatprep.subr.bf16.mxu0 0
      %458 = vmatpush1.bf16.msra.mxu0 0
      %459 = vmatprep.subr.bf16.mxu0 0
      %460 = vmatpush1.bf16.msra.mxu0 0
      %461 = vmatprep.subr.bf16.mxu0 0
      %462 = vmatpush1.bf16.msra.mxu0 0
      %463 = vmatprep.subr.bf16.mxu0 0
      %464 = vmatpush1.bf16.msra.mxu0 0
      %465 = vmatprep.subr.bf16.mxu0 0
      %466 = vmatpush1.bf16.msra.mxu0 0
      %467 = vmatprep.subr.bf16.mxu0 0
      %468 = vmatpush1.bf16.msra.mxu0 0
      %469 = vmatprep.subr.bf16.mxu0 0
      %470 = vmatpush1.bf16.msra.mxu0 0
      %471 = vmatprep.subr.bf16.mxu0 0
      %472 = vmatpush1.bf16.msra.mxu0 0
      %473 = vmatprep.subr.bf16.mxu0 0
      %474 = vmatpush1.bf16.msra.mxu0 0
      %475 = vmatprep.subr.bf16.mxu0 0
      %476 = vmatpush1.bf16.msra.mxu0 0
      %477 = vmatprep.mubr.bf16.mxu0 0
      %478 = vmatmul.mubr.bf16.gmra.mrb[0].mxu0 %v431
      %v479 = vpop.f32.mrb[0].mxu0
      %v480 = vadd.f32 0.0, %v479
      %v481 = vpop.f32.mrb[0].mxu0
      %v482 = vpop.f32.mrb[0].mxu0
      %v483 = vadd.f32 0.0, %v482
      %v484 = vpop.f32.mrb[0].mxu0
      %485 = vmatprep.mubr.bf16.mxu0 0
      %486 = vmatmul.mubr.bf16.gmra.mrb[0].mxu0 %v434
      %v487 = vpop.f32.mrb[0].mxu0
      %v488 = vadd.f32 0.0, %v487
      %v489 = vpop.f32.mrb[0].mxu0
      %v490 = vpop.f32.mrb[0].mxu0
      %v491 = vadd.f32 0.0, %v490
      %v492 = vpop.f32.mrb[0].mxu0
      %493 = vmatprep.mubr.bf16.mxu0 0
      %494 = vmatmul.mubr.bf16.gmra.mrb[0].mxu0 %v437
      %v495 = vpop.f32.mrb[0].mxu0
      %v496 = vadd.f32 0.0, %v495
      %v497 = vpop.f32.mrb[0].mxu0
      %v498 = vpop.f32.mrb[0].mxu0
      %v499 = vadd.f32 0.0, %v498
      %v500 = vpop.f32.mrb[0].mxu0
      %501 = vmatprep.mubr.bf16.mxu0 0
      %502 = vmatmul.mubr.bf16.gmra.mrb[0].mxu0 %v440
      %v503 = vpop.f32.mrb[0].mxu0
      %v504 = vadd.f32 0.0, %v503
      %v505 = vpop.f32.mrb[0].mxu0
      %v506 = vpop.f32.mrb[0].mxu0
      %v507 = vadd.f32 0.0, %v506
      %v508 = vpop.f32.mrb[0].mxu0
      %509 = vdwg.mxu0
      %v510 = vadd.f32 %v421, %v480
      %v511 = vadd.f32 %v422, %v483
      %v512 = vadd.f32 %v423, %v488
      %v513 = vadd.f32 %v424, %v491
      %v514 = vadd.f32 %v425, %v496
      %v515 = vadd.f32 %v426, %v499
      %v516 = vadd.f32 %v427, %v504
      %v517 = vadd.f32 %v428, %v507
      %vm518 = vcmask 261120
      %v519 = vsel %vm518, %v510, 0.0
      %520 = vadd.xlane.f32.xlu0 %v519
      %v521 = vpop.xlane.xlu0 %520
      %v522 = vsel %vm518, %v511, 0.0
      %523 = vadd.xlane.f32.xlu0 %v522
      %v524 = vpop.xlane.xlu0 %523
      %v525 = vsel %vm518, %v512, 0.0
      %526 = vadd.xlane.f32.xlu0 %v525
      %v527 = vpop.xlane.xlu0 %526
      %v528 = vsel %vm518, %v513, 0.0
      %529 = vadd.xlane.f32.xlu0 %v528
      %v530 = vpop.xlane.xlu0 %529
      %v531 = vsel %vm518, %v514, 0.0
      %532 = vadd.xlane.f32.xlu0 %v531
      %v533 = vpop.xlane.xlu0 %532
      %v534 = vsel %vm518, %v515, 0.0
      %535 = vadd.xlane.f32.xlu0 %v534
      %v536 = vpop.xlane.xlu0 %535
      %v537 = vsel %vm518, %v516, 0.0
      %538 = vadd.xlane.f32.xlu0 %v537
      %v539 = vpop.xlane.xlu0 %538
      %v540 = vsel %vm518, %v517, 0.0
      %541 = vadd.xlane.f32.xlu0 %v540
      %v542 = vpop.xlane.xlu0 %541
      %v543 = vrcp.pop 32.0
      %v544 = vmul.f32 %v521, %v543
      %v545 = vmul.f32 %v524, %v543
      %v546 = vmul.f32 %v527, %v543
      %v547 = vmul.f32 %v530, %v543
      %v548 = vmul.f32 %v533, %v543
      %v549 = vmul.f32 %v536, %v543
      %v550 = vmul.f32 %v539, %v543
      %v551 = vmul.f32 %v542, %v543
      %v552 = vmul.f32 %v510, %v510
      %v553 = vmul.f32 %v511, %v511
      %v554 = vmul.f32 %v512, %v512
      %v555 = vmul.f32 %v513, %v513
      %v556 = vmul.f32 %v514, %v514
      %v557 = vmul.f32 %v515, %v515
      %v558 = vmul.f32 %v516, %v516
      %v559 = vmul.f32 %v517, %v517
      %v560 = vsel %vm518, %v552, 0.0
      %561 = vadd.xlane.f32.xlu0 %v560
      %v562 = vpop.xlane.xlu0 %561
      %v563 = vsel %vm518, %v553, 0.0
      %564 = vadd.xlane.f32.xlu0 %v563
      %v565 = vpop.xlane.xlu0 %564
      %v566 = vsel %vm518, %v554, 0.0
      %567 = vadd.xlane.f32.xlu0 %v566
      %v568 = vpop.xlane.xlu0 %567
      %v569 = vsel %vm518, %v555, 0.0
      %570 = vadd.xlane.f32.xlu0 %v569
      %v571 = vpop.xlane.xlu0 %570
      %v572 = vsel %vm518, %v556, 0.0
      %573 = vadd.xlane.f32.xlu0 %v572
      %v574 = vpop.xlane.xlu0 %573
      %v575 = vsel %vm518, %v557, 0.0
      %576 = vadd.xlane.f32.xlu0 %v575
      %v577 = vpop.xlane.xlu0 %576
      %v578 = vsel %vm518, %v558, 0.0
      %579 = vadd.xlane.f32.xlu0 %v578
      %v580 = vpop.xlane.xlu0 %579
      %v581 = vsel %vm518, %v559, 0.0
      %582 = vadd.xlane.f32.xlu0 %v581
      %v583 = vpop.xlane.xlu0 %582
      %v584 = vmul.f32 %v562, %v543
      %v585 = vmul.f32 %v565, %v543
      %v586 = vmul.f32 %v568, %v543
      %v587 = vmul.f32 %v571, %v543
      %v588 = vmul.f32 %v574, %v543
      %v589 = vmul.f32 %v577, %v543
      %v590 = vmul.f32 %v580, %v543
      %v591 = vmul.f32 %v583, %v543
      %v592 = vmul.f32 %v544, %v544
      %v593 = vmul.f32 %v545, %v545
      %v594 = vmul.f32 %v546, %v546
      %v595 = vmul.f32 %v547, %v547
      %v596 = vmul.f32 %v548, %v548
      %v597 = vmul.f32 %v549, %v549
      %v598 = vmul.f32 %v550, %v550
      %v599 = vmul.f32 %v551, %v551
      %v600 = vsub.f32 %v584, %v592
      %v601 = vsub.f32 %v585, %v593
      %v602 = vsub.f32 %v586, %v594
      %v603 = vsub.f32 %v587, %v595
      %v604 = vsub.f32 %v588, %v596
      %v605 = vsub.f32 %v589, %v597
      %v606 = vsub.f32 %v590, %v598
      %v607 = vsub.f32 %v591, %v599
      %v608 = vmax.f32 %v600, 0.0
      %v609 = vmax.f32 %v601, 0.0
      %v610 = vmax.f32 %v602, 0.0
      %v611 = vmax.f32 %v603, 0.0
      %v612 = vmax.f32 %v604, 0.0
      %v613 = vmax.f32 %v605, 0.0
      %v614 = vmax.f32 %v606, 0.0
      %v615 = vmax.f32 %v607, 0.0
      %v616 = vsub.f32 %v510, %v544
      %v617 = vsub.f32 %v511, %v545
      %v618 = vsub.f32 %v512, %v546
      %v619 = vsub.f32 %v513, %v547
      %v620 = vsub.f32 %v514, %v548
      %v621 = vsub.f32 %v515, %v549
      %v622 = vsub.f32 %v516, %v550
      %v623 = vsub.f32 %v517, %v551
      %v624 = vadd.f32 %v608, 1e-05
      %v625 = vadd.f32 %v609, 1e-05
      %v626 = vadd.f32 %v610, 1e-05
      %v627 = vadd.f32 %v611, 1e-05
      %v628 = vadd.f32 %v612, 1e-05
      %v629 = vadd.f32 %v613, 1e-05
      %v630 = vadd.f32 %v614, 1e-05
      %v631 = vadd.f32 %v615, 1e-05
      %v632 = vrsqrt.pop %v624
      %v633 = vrsqrt.pop %v625
      %v634 = vrsqrt.pop %v626
      %v635 = vrsqrt.pop %v627
      %v636 = vrsqrt.pop %v628
      %v637 = vrsqrt.pop %v629
      %v638 = vrsqrt.pop %v630
      %v639 = vrsqrt.pop %v631
      %v640 = vmul.f32 %v616, %v632
      %v641 = vmul.f32 %v617, %v633
      %v642 = vmul.f32 %v618, %v634
      %v643 = vmul.f32 %v619, %v635
      %v644 = vmul.f32 %v620, %v636
      %v645 = vmul.f32 %v621, %v637
      %v646 = vmul.f32 %v622, %v638
      %v647 = vmul.f32 %v623, %v639
      %v648 = vmax.f32 %v640, 0.0
      %v649 = vmax.f32 %v641, 0.0
      %v650 = vmax.f32 %v642, 0.0
      %v651 = vmax.f32 %v643, 0.0
      %v652 = vmax.f32 %v644, 0.0
      %v653 = vmax.f32 %v645, 0.0
      %v654 = vmax.f32 %v646, 0.0
      %v655 = vmax.f32 %v647, 0.0
      %v656 = vld [vmem:[%s5] sm:$0xf]
      %v657 = vld [vmem:[%s5 + $0x4] sm:$0xf]
      %v658 = vld [vmem:[%s5 + $0x8] sm:$0xf]
      %v659 = vld [vmem:[%s5 + $0xc] sm:$0xf]
      %v660 = vld [vmem:[%s6] sm:$0x1]
      %v661 = vunpack.c.l.bf16 %v660
      %v662 = vpack.c.bf16 %v649, %v648
      %v663 = vpack.c.bf16 %v651, %v650
      %v664 = vpack.c.bf16 %v653, %v652
      %v665 = vpack.c.bf16 %v655, %v654
      %v666 = vlaneseq
      %v667 = vshrl.u32 %v666, 7
      %v668 = vsub.s32 0, %v667
      %v669 = vrot.slane %v661, %v668
      %v674 = vunpack.c.l.b16 %v656
      %v675 = vunpack.c.l.b16 %v657
      %v676 = vunpack.c.l.b16 %v658
      %v677 = vunpack.c.l.b16 %v659
      %v678 = vpack.c.b16 %v675, %v674
      %v679 = vpack.c.b16 %v677, %v676
      %v683 = vsel %vm518, %v662, 0
      %v686 = vsel %vm518, %v663, 0
      %v689 = vsel %vm518, %v664, 0
      %v692 = vsel %vm518, %v665, 0
      %694 = vmatprep.subr.bf16.mxu0 0
      %695 = vmatpush1.bf16.msra.mxu0 %v678
      %696 = vmatprep.subr.bf16.mxu0 0
      %697 = vmatpush1.bf16.msra.mxu0 %v679
      %698 = vmatprep.subr.bf16.mxu0 0
      %699 = vmatpush1.bf16.msra.mxu0 0
      %700 = vmatprep.subr.bf16.mxu0 0
      %701 = vmatpush1.bf16.msra.mxu0 0
      %702 = vmatprep.subr.bf16.mxu0 0
      %703 = vmatpush1.bf16.msra.mxu0 0
      %704 = vmatprep.subr.bf16.mxu0 0
      %705 = vmatpush1.bf16.msra.mxu0 0
      %706 = vmatprep.subr.bf16.mxu0 0
      %707 = vmatpush1.bf16.msra.mxu0 0
      %708 = vmatprep.subr.bf16.mxu0 0
      %709 = vmatpush1.bf16.msra.mxu0 0
      %710 = vmatprep.subr.bf16.mxu0 0
      %711 = vmatpush1.bf16.msra.mxu0 0
      %712 = vmatprep.subr.bf16.mxu0 0
      %713 = vmatpush1.bf16.msra.mxu0 0
      %714 = vmatprep.subr.bf16.mxu0 0
      %715 = vmatpush1.bf16.msra.mxu0 0
      %716 = vmatprep.subr.bf16.mxu0 0
      %717 = vmatpush1.bf16.msra.mxu0 0
      %718 = vmatprep.subr.bf16.mxu0 0
      %719 = vmatpush1.bf16.msra.mxu0 0
      %720 = vmatprep.subr.bf16.mxu0 0
      %721 = vmatpush1.bf16.msra.mxu0 0
      %722 = vmatprep.subr.bf16.mxu0 0
      %723 = vmatpush1.bf16.msra.mxu0 0
      %724 = vmatprep.subr.bf16.mxu0 0
      %725 = vmatpush1.bf16.msra.mxu0 0
      %726 = vmatprep.mubr.bf16.mxu0 0
      %727 = vmatmul.mubr.bf16.gmra.mrb[0].mxu0 %v683
      %v728 = vpop.f32.mrb[0].mxu0
      %v729 = vadd.f32 %v669, %v728
      %v730 = vpop.f32.mrb[0].mxu0
      %v731 = vpop.f32.mrb[0].mxu0
      %v732 = vadd.f32 %v669, %v731
      %v733 = vpop.f32.mrb[0].mxu0
      %734 = vmatprep.mubr.bf16.mxu0 0
      %735 = vmatmul.mubr.bf16.gmra.mrb[0].mxu0 %v686
      %v736 = vpop.f32.mrb[0].mxu0
      %v737 = vadd.f32 %v669, %v736
      %v738 = vpop.f32.mrb[0].mxu0
      %v739 = vpop.f32.mrb[0].mxu0
      %v740 = vadd.f32 %v669, %v739
      %v741 = vpop.f32.mrb[0].mxu0
      %742 = vmatprep.mubr.bf16.mxu0 0
      %743 = vmatmul.mubr.bf16.gmra.mrb[0].mxu0 %v689
      %v744 = vpop.f32.mrb[0].mxu0
      %v745 = vadd.f32 %v669, %v744
      %v746 = vpop.f32.mrb[0].mxu0
      %v747 = vpop.f32.mrb[0].mxu0
      %v748 = vadd.f32 %v669, %v747
      %v749 = vpop.f32.mrb[0].mxu0
      %750 = vmatprep.mubr.bf16.mxu0 0
      %751 = vmatmul.mubr.bf16.gmra.mrb[0].mxu0 %v692
      %v752 = vpop.f32.mrb[0].mxu0
      %v753 = vadd.f32 %v669, %v752
      %v754 = vpop.f32.mrb[0].mxu0
      %v755 = vpop.f32.mrb[0].mxu0
      %v756 = vadd.f32 %v669, %v755
      %v757 = vpop.f32.mrb[0].mxu0
      %758 = vdwg.mxu0
      %vm759 = vcmask 130048
      %v760 = vsel %vm759, %v729, 0.0
      %761 = vadd.xlane.f32.xlu0 %v760
      %v762 = vpop.xlane.xlu0 %761
      %v763 = vsel %vm759, %v732, 0.0
      %764 = vadd.xlane.f32.xlu0 %v763
      %v765 = vpop.xlane.xlu0 %764
      %v766 = vsel %vm759, %v737, 0.0
      %767 = vadd.xlane.f32.xlu0 %v766
      %v768 = vpop.xlane.xlu0 %767
      %v769 = vsel %vm759, %v740, 0.0
      %770 = vadd.xlane.f32.xlu0 %v769
      %v771 = vpop.xlane.xlu0 %770
      %v772 = vsel %vm759, %v745, 0.0
      %773 = vadd.xlane.f32.xlu0 %v772
      %v774 = vpop.xlane.xlu0 %773
      %v775 = vsel %vm759, %v748, 0.0
      %776 = vadd.xlane.f32.xlu0 %v775
      %v777 = vpop.xlane.xlu0 %776
      %v778 = vsel %vm759, %v753, 0.0
      %779 = vadd.xlane.f32.xlu0 %v778
      %v780 = vpop.xlane.xlu0 %779
      %v781 = vsel %vm759, %v756, 0.0
      %782 = vadd.xlane.f32.xlu0 %v781
      %v783 = vpop.xlane.xlu0 %782
      %v784 = vrcp.pop 16.0
      %v785 = vmul.f32 %v762, %v784
      %v786 = vmul.f32 %v765, %v784
      %v787 = vmul.f32 %v768, %v784
      %v788 = vmul.f32 %v771, %v784
      %v789 = vmul.f32 %v774, %v784
      %v790 = vmul.f32 %v777, %v784
      %v791 = vmul.f32 %v780, %v784
      %v792 = vmul.f32 %v783, %v784
      %v793 = vmul.f32 %v729, %v729
      %v794 = vmul.f32 %v732, %v732
      %v795 = vmul.f32 %v737, %v737
      %v796 = vmul.f32 %v740, %v740
      %v797 = vmul.f32 %v745, %v745
      %v798 = vmul.f32 %v748, %v748
      %v799 = vmul.f32 %v753, %v753
      %v800 = vmul.f32 %v756, %v756
      %v801 = vsel %vm759, %v793, 0.0
      %802 = vadd.xlane.f32.xlu0 %v801
      %v803 = vpop.xlane.xlu0 %802
      %v804 = vsel %vm759, %v794, 0.0
      %805 = vadd.xlane.f32.xlu0 %v804
      %v806 = vpop.xlane.xlu0 %805
      %v807 = vsel %vm759, %v795, 0.0
      %808 = vadd.xlane.f32.xlu0 %v807
      %v809 = vpop.xlane.xlu0 %808
      %v810 = vsel %vm759, %v796, 0.0
      %811 = vadd.xlane.f32.xlu0 %v810
      %v812 = vpop.xlane.xlu0 %811
      %v813 = vsel %vm759, %v797, 0.0
      %814 = vadd.xlane.f32.xlu0 %v813
      %v815 = vpop.xlane.xlu0 %814
      %v816 = vsel %vm759, %v798, 0.0
      %817 = vadd.xlane.f32.xlu0 %v816
      %v818 = vpop.xlane.xlu0 %817
      %v819 = vsel %vm759, %v799, 0.0
      %820 = vadd.xlane.f32.xlu0 %v819
      %v821 = vpop.xlane.xlu0 %820
      %v822 = vsel %vm759, %v800, 0.0
      %823 = vadd.xlane.f32.xlu0 %v822
      %v824 = vpop.xlane.xlu0 %823
      %v825 = vmul.f32 %v803, %v784
      %v826 = vmul.f32 %v806, %v784
      %v827 = vmul.f32 %v809, %v784
      %v828 = vmul.f32 %v812, %v784
      %v829 = vmul.f32 %v815, %v784
      %v830 = vmul.f32 %v818, %v784
      %v831 = vmul.f32 %v821, %v784
      %v832 = vmul.f32 %v824, %v784
      %v833 = vmul.f32 %v785, %v785
      %v834 = vmul.f32 %v786, %v786
      %v835 = vmul.f32 %v787, %v787
      %v836 = vmul.f32 %v788, %v788
      %v837 = vmul.f32 %v789, %v789
      %v838 = vmul.f32 %v790, %v790
      %v839 = vmul.f32 %v791, %v791
      %v840 = vmul.f32 %v792, %v792
      %v841 = vsub.f32 %v825, %v833
      %v842 = vsub.f32 %v826, %v834
      %v843 = vsub.f32 %v827, %v835
      %v844 = vsub.f32 %v828, %v836
      %v845 = vsub.f32 %v829, %v837
      %v846 = vsub.f32 %v830, %v838
      %v847 = vsub.f32 %v831, %v839
      %v848 = vsub.f32 %v832, %v840
      %v849 = vmax.f32 %v841, 0.0
      %v850 = vmax.f32 %v842, 0.0
      %v851 = vmax.f32 %v843, 0.0
      %v852 = vmax.f32 %v844, 0.0
      %v853 = vmax.f32 %v845, 0.0
      %v854 = vmax.f32 %v846, 0.0
      %v855 = vmax.f32 %v847, 0.0
      %v856 = vmax.f32 %v848, 0.0
      %v857 = vsub.f32 %v729, %v785
      %v858 = vsub.f32 %v732, %v786
      %v859 = vsub.f32 %v737, %v787
      %v860 = vsub.f32 %v740, %v788
      %v861 = vsub.f32 %v745, %v789
      %v862 = vsub.f32 %v748, %v790
      %v863 = vsub.f32 %v753, %v791
      %v864 = vsub.f32 %v756, %v792
      %v865 = vadd.f32 %v849, 1e-05
      %v866 = vadd.f32 %v850, 1e-05
      %v867 = vadd.f32 %v851, 1e-05
      %v868 = vadd.f32 %v852, 1e-05
      %v869 = vadd.f32 %v853, 1e-05
      %v870 = vadd.f32 %v854, 1e-05
      %v871 = vadd.f32 %v855, 1e-05
      %v872 = vadd.f32 %v856, 1e-05
      %v873 = vrsqrt.pop %v865
      %v874 = vrsqrt.pop %v866
      %v875 = vrsqrt.pop %v867
      %v876 = vrsqrt.pop %v868
      %v877 = vrsqrt.pop %v869
      %v878 = vrsqrt.pop %v870
      %v879 = vrsqrt.pop %v871
      %v880 = vrsqrt.pop %v872
      %v881 = vmul.f32 %v857, %v873
      %v882 = vmul.f32 %v858, %v874
      %v883 = vmul.f32 %v859, %v875
      %v884 = vmul.f32 %v860, %v876
      %v885 = vmul.f32 %v861, %v877
      %v886 = vmul.f32 %v862, %v878
      %v887 = vmul.f32 %v863, %v879
      %v888 = vmul.f32 %v864, %v880
      %v889 = vmax.f32 %v881, 0.0
      %v890 = vmax.f32 %v882, 0.0
      %v891 = vmax.f32 %v883, 0.0
      %v892 = vmax.f32 %v884, 0.0
      %v893 = vmax.f32 %v885, 0.0
      %v894 = vmax.f32 %v886, 0.0
      %v895 = vmax.f32 %v887, 0.0
      %v896 = vmax.f32 %v888, 0.0
      %v897 = vpack.c.bf16 %v890, %v889
      %v898 = vpack.c.bf16 %v892, %v891
      %v899 = vpack.c.bf16 %v894, %v893
      %v900 = vpack.c.bf16 %v896, %v895
      %v905 = vunpack.c.l.b16 %v897
      %v906 = vunpack.c.h.b16 %v897
      %v907 = vunpack.c.l.b16 %v898
      %v908 = vunpack.c.h.b16 %v898
      %v909 = vunpack.c.l.b16 %v899
      %v910 = vunpack.c.h.b16 %v899
      %v911 = vunpack.c.l.b16 %v900
      %v912 = vunpack.c.h.b16 %v900
      %v913 = vpack.c.b16 %v905, %v905
      %v914 = vpack.c.b16 %v906, %v906
      %v915 = vpack.c.b16 %v907, %v907
      %v916 = vpack.c.b16 %v908, %v908
      %v917 = vpack.c.b16 %v909, %v909
      %v918 = vpack.c.b16 %v910, %v910
      %v919 = vpack.c.b16 %v911, %v911
      %v920 = vpack.c.b16 %v912, %v912
      %vm929 = vcmask 125952
      %930 = vst.msk [vmem:[%s302] sm:$0xf] %vm929, %v913
      %931 = vst.msk [vmem:[%s302 + $0x4] sm:$0xf] %vm929, %v914
      %932 = vst.msk [vmem:[%s302 + $0x8] sm:$0xf] %vm929, %v915
      %933 = vst.msk [vmem:[%s302 + $0xc] sm:$0xf] %vm929, %v916
      %934 = vst.msk [vmem:[%s302 + $0x10] sm:$0xf] %vm929, %v917
      %935 = vst.msk [vmem:[%s302 + $0x14] sm:$0xf] %vm929, %v918
      %936 = vst.msk [vmem:[%s302 + $0x18] sm:$0xf] %vm929, %v919
      %937 = vst.msk [vmem:[%s302 + $0x1c] sm:$0xf] %vm929, %v920
      %s938 = smul.u32 8, %s18
      %p939 = scmp.lt.s32.totalorder %s938, 15
      %s940 = scalar_select %p939, %s938, 15
      %s941 = smul.addr %s940, 4
      %s942 = scalar_lea.vmem %s7, %s941
      // Predicated region
      $region49: #{_lambda_.8} parent=47 // pred_check
        %p943 = pneg %p193
      $region50: #{_lambda_.8} parent=47 // pred_check_branch
        %945 = sbr.rel (%p943) target = $region52
      $region51: #{_lambda_.8} parent=47 // pred_region
        %s946 = smul.u32 8, %s18
      $region52: #{_lambda_.8} parent=47 // pred_fallthru
        _
    $region48: #{_lambda_.8} parent=5 // pred_fallthru
      _
    %p947 = scmp.le.s32.totalorder 2, %s13
    // Predicated region
    $region53: #{_lambda_.8} parent=5 // pred_check
      %p948 = pneg %p947
    $region54: #{_lambda_.8} parent=5 // pred_check_branch
      %950 = sbr.rel (%p948) target = $region56
    $region55: #{_lambda_.8} parent=5 // pred_region
      %s951 = ssub.s32 %s13, 2
      // Predicated region
      $region57: #{_lambda_.8} parent=55 // pred_check
        %p952 = pneg %p199
      $region58: #{_lambda_.8} parent=55 // pred_check_branch
        %954 = sbr.rel (%p952) target = $region60
      $region59: #{_lambda_.8} parent=55 // pred_region
        %s955 = smul.u32 8, %s19
        %p956 = scmp.lt.s32.totalorder %s955, 15
        %s957 = scalar_select %p956, %s955, 15
        %s958 = smul.addr %s957, 4
        %s959 = scalar_lea.vmem %s7, %s958
      $region60: #{_lambda_.8} parent=55 // pred_fallthru
        _
    $region56: #{_lambda_.8} parent=5 // pred_fallthru
      _
  $region6: #{_lambda_.8} parent=0 // loop_footer
    %s17 = sadd.s32 1, %s13
  $region7: #{_lambda_.8} parent=0 // loop_footer_branch
    %12 = sbr.rel target = $region3
  $region8: #{_lambda_.8} parent=0 // loop_exit
    _

// kernel: _lambda_.9
$region0: #{_lambda_.9}
  #allocation0 [shape = 'u32[]', space=smem, size = 0x4, offset = 0x4, fixed_abs, tag = 'smem constant byte address 0x4 - core index']
  #allocation1 [shape = 'u32[144,128]{1,0:T(1,128)}', space=vmem, size = 0x12000, scoped, tag = 'internal scratch']
  %s0 = inlined_call_operand.vmem [shape: bf16[64,16], index: 0, kind: input, shape index: {}]
  %s1 = inlined_call_operand.vmem [shape: f32[64,16], index: 1, kind: input, shape index: {}]
  %s2 = inlined_call_operand.vmem [shape: bf16[16,32], index: 2, kind: input, shape index: {}]
  %s3 = inlined_call_operand.vmem [shape: bf16[16,32], index: 3, kind: input, shape index: {}]
  %s4 = inlined_call_operand.vmem [shape: bf16[1,32], index: 4, kind: input, shape index: {}]
  %s5 = inlined_call_operand.vmem [shape: bf16[32,16], index: 5, kind: input, shape index: {}]
  %s6 = inlined_call_operand.vmem [shape: bf16[1,16], index: 6, kind: input, shape index: {}]
  %s7 = inlined_call_operand.vmem [shape: bf16[64,16], index: 7, kind: output, shape index: {}]
  %s8 = sld [smem:[#allocation0]]
  $region61: #{_lambda_.9} parent=0
    _
  %s10 = ssub.s32 1, %s8
  %s11 = scalar_select 0, %s10, %s8
  loop: start=0, step=1, limit=4
  $region2: #{_lambda_.9} parent=0 // loop_pre_header
    _
  $region3: #{_lambda_.9} parent=0 // loop_header
    %s13 = sphi 0, %s17
    %p14 = scmp.ge.s32.totalorder %s13, 4
    %s23 = sphi 0, %s25
    %s26 = sphi 0, %s23
    %s27 = sphi 0, %s26
    %s43 = sphi 0, %s27
    %s49 = sphi 0, %s51
    %s52 = sphi 0, %s49
    %s53 = sphi 0, %s52
    %s69 = sphi 0, %s53
    %s73 = sphi 0, %s73
    %s75 = sphi 0, %s73
    %s76 = sphi 0, %s75
    %s90 = sphi 0, %s76
    %s94 = sphi 0, %s94
    %s96 = sphi 0, %s94
    %s97 = sphi 0, %s96
    %s111 = sphi 0, %s97
    %s115 = sphi 0, %s115
    %s117 = sphi 0, %s115
    %s118 = sphi 0, %s117
    %s132 = sphi 0, %s118
    %s136 = sphi 0, %s136
    %s138 = sphi 0, %s136
    %s139 = sphi 0, %s138
    %s153 = sphi 0, %s139
    %s157 = sphi 0, %s157
    %s159 = sphi 0, %s157
    %s160 = sphi 0, %s159
    %s174 = sphi 0, %s160
    %s180 = sphi 0, %s182
    %s183 = sphi 0, %s180
    %s184 = sphi 0, %s183
    %s200 = sphi 0, %s184
  $region4: #{_lambda_.9} parent=0 // loop_header_branch
    %16 = sbr.rel (%p14) target = $region8
  $region5: #{_lambda_.9} parent=0 // loop_body
    %s18 = ssub.s32 %s13, 1
    %s19 = ssub.s32 %s13, 2
    %s20 = sadd.s32 %s13, 1
    %s21 = ssub.s32 %s13, %s20
    %p22 = scmp.eq.s32.totalorder %s21, 0
    %s24 = sadd.s32 %s23, 1
    %s25 = scalar_select %p22, %s23, %s24
    %p28 = pneg %p22
    %p29 = scmp.eq.s32.totalorder %s13, 1
    %p30 = por %p28, %p29
    %p31 = scmp.ne.s32.totalorder %s23, %s26
    %p32 = scmp.eq.s32.totalorder %s13, 0
    %p33 = por %p31, %p32
    %p34 = scmp.ne.s32.totalorder %s23, %s26
    %p35 = scmp.eq.s32.totalorder %s18, 1
    %p36 = por %p34, %p35
    %p37 = scmp.ne.s32.totalorder %s26, %s27
    %p38 = scmp.eq.s32.totalorder %s18, 0
    %p39 = por %p37, %p38
    %p40 = scmp.ne.s32.totalorder %s26, %s27
    %p41 = scmp.eq.s32.totalorder %s19, 1
    %p42 = por %p40, %p41
    %p44 = scmp.ne.s32.totalorder %s27, %s43
    %p45 = scmp.eq.s32.totalorder %s19, 0
    %p46 = por %p44, %p45
    %s47 = ssub.s32 %s13, %s20
    %p48 = scmp.eq.s32.totalorder %s47, 0
    %s50 = sadd.s32 %s49, 1
    %s51 = scalar_select %p48, %s49, %s50
    %p54 = pneg %p48
    %p55 = scmp.eq.s32.totalorder %s13, 1
    %p56 = por %p54, %p55
    %p57 = scmp.ne.s32.totalorder %s49, %s52
    %p58 = scmp.eq.s32.totalorder %s13, 0
    %p59 = por %p57, %p58
    %p60 = scmp.ne.s32.totalorder %s49, %s52
    %p61 = scmp.eq.s32.totalorder %s18, 1
    %p62 = por %p60, %p61
    %p63 = scmp.ne.s32.totalorder %s52, %s53
    %p64 = scmp.eq.s32.totalorder %s18, 0
    %p65 = por %p63, %p64
    %p66 = scmp.ne.s32.totalorder %s52, %s53
    %p67 = scmp.eq.s32.totalorder %s19, 1
    %p68 = por %p66, %p67
    %p70 = scmp.ne.s32.totalorder %s53, %s69
    %p71 = scmp.eq.s32.totalorder %s19, 0
    %p72 = por %p70, %p71
    %s74 = sadd.s32 %s73, 1
    %p77 = scmp.eq.s32.totalorder %s13, 1
    %p78 = scmp.ne.s32.totalorder %s73, %s75
    %p79 = scmp.eq.s32.totalorder %s13, 0
    %p80 = por %p78, %p79
    %p81 = scmp.ne.s32.totalorder %s73, %s75
    %p82 = scmp.eq.s32.totalorder %s18, 1
    %p83 = por %p81, %p82
    %p84 = scmp.ne.s32.totalorder %s75, %s76
    %p85 = scmp.eq.s32.totalorder %s18, 0
    %p86 = por %p84, %p85
    %p87 = scmp.ne.s32.totalorder %s75, %s76
    %p88 = scmp.eq.s32.totalorder %s19, 1
    %p89 = por %p87, %p88
    %p91 = scmp.ne.s32.totalorder %s76, %s90
    %p92 = scmp.eq.s32.totalorder %s19, 0
    %p93 = por %p91, %p92
    %s95 = sadd.s32 %s94, 1
    %p98 = scmp.eq.s32.totalorder %s13, 1
    %p99 = scmp.ne.s32.totalorder %s94, %s96
    %p100 = scmp.eq.s32.totalorder %s13, 0
    %p101 = por %p99, %p100
    %p102 = scmp.ne.s32.totalorder %s94, %s96
    %p103 = scmp.eq.s32.totalorder %s18, 1
    %p104 = por %p102, %p103
    %p105 = scmp.ne.s32.totalorder %s96, %s97
    %p106 = scmp.eq.s32.totalorder %s18, 0
    %p107 = por %p105, %p106
    %p108 = scmp.ne.s32.totalorder %s96, %s97
    %p109 = scmp.eq.s32.totalorder %s19, 1
    %p110 = por %p108, %p109
    %p112 = scmp.ne.s32.totalorder %s97, %s111
    %p113 = scmp.eq.s32.totalorder %s19, 0
    %p114 = por %p112, %p113
    %s116 = sadd.s32 %s115, 1
    %p119 = scmp.eq.s32.totalorder %s13, 1
    %p120 = scmp.ne.s32.totalorder %s115, %s117
    %p121 = scmp.eq.s32.totalorder %s13, 0
    %p122 = por %p120, %p121
    %p123 = scmp.ne.s32.totalorder %s115, %s117
    %p124 = scmp.eq.s32.totalorder %s18, 1
    %p125 = por %p123, %p124
    %p126 = scmp.ne.s32.totalorder %s117, %s118
    %p127 = scmp.eq.s32.totalorder %s18, 0
    %p128 = por %p126, %p127
    %p129 = scmp.ne.s32.totalorder %s117, %s118
    %p130 = scmp.eq.s32.totalorder %s19, 1
    %p131 = por %p129, %p130
    %p133 = scmp.ne.s32.totalorder %s118, %s132
    %p134 = scmp.eq.s32.totalorder %s19, 0
    %p135 = por %p133, %p134
    %s137 = sadd.s32 %s136, 1
    %p140 = scmp.eq.s32.totalorder %s13, 1
    %p141 = scmp.ne.s32.totalorder %s136, %s138
    %p142 = scmp.eq.s32.totalorder %s13, 0
    %p143 = por %p141, %p142
    %p144 = scmp.ne.s32.totalorder %s136, %s138
    %p145 = scmp.eq.s32.totalorder %s18, 1
    %p146 = por %p144, %p145
    %p147 = scmp.ne.s32.totalorder %s138, %s139
    %p148 = scmp.eq.s32.totalorder %s18, 0
    %p149 = por %p147, %p148
    %p150 = scmp.ne.s32.totalorder %s138, %s139
    %p151 = scmp.eq.s32.totalorder %s19, 1
    %p152 = por %p150, %p151
    %p154 = scmp.ne.s32.totalorder %s139, %s153
    %p155 = scmp.eq.s32.totalorder %s19, 0
    %p156 = por %p154, %p155
    %s158 = sadd.s32 %s157, 1
    %p161 = scmp.eq.s32.totalorder %s13, 1
    %p162 = scmp.ne.s32.totalorder %s157, %s159
    %p163 = scmp.eq.s32.totalorder %s13, 0
    %p164 = por %p162, %p163
    %p165 = scmp.ne.s32.totalorder %s157, %s159
    %p166 = scmp.eq.s32.totalorder %s18, 1
    %p167 = por %p165, %p166
    %p168 = scmp.ne.s32.totalorder %s159, %s160
    %p169 = scmp.eq.s32.totalorder %s18, 0
    %p170 = por %p168, %p169
    %p171 = scmp.ne.s32.totalorder %s159, %s160
    %p172 = scmp.eq.s32.totalorder %s19, 1
    %p173 = por %p171, %p172
    %p175 = scmp.ne.s32.totalorder %s160, %s174
    %p176 = scmp.eq.s32.totalorder %s19, 0
    %p177 = por %p175, %p176
    %s178 = ssub.s32 %s13, %s20
    %p179 = scmp.eq.s32.totalorder %s178, 0
    %s181 = sadd.s32 %s180, 1
    %s182 = scalar_select %p179, %s180, %s181
    %p185 = pneg %p179
    %p186 = scmp.eq.s32.totalorder %s13, 1
    %p187 = por %p185, %p186
    %p188 = scmp.ne.s32.totalorder %s180, %s183
    %p189 = scmp.eq.s32.totalorder %s13, 0
    %p190 = por %p188, %p189
    %p191 = scmp.ne.s32.totalorder %s180, %s183
    %p192 = scmp.eq.s32.totalorder %s18, 1
    %p193 = por %p191, %p192
    %p194 = scmp.ne.s32.totalorder %s183, %s184
    %p195 = scmp.eq.s32.totalorder %s18, 0
    %p196 = por %p194, %p195
    %p197 = scmp.ne.s32.totalorder %s183, %s184
    %p198 = scmp.eq.s32.totalorder %s19, 1
    %p199 = por %p197, %p198
    %p201 = scmp.ne.s32.totalorder %s184, %s200
    %p202 = scmp.eq.s32.totalorder %s19, 0
    %p203 = por %p201, %p202
    %p204 = scmp.le.s32.totalorder 1, %s13
    %p205 = scmp.lt.s32.totalorder %s13, 3
    %p206 = pnand %p204, %p205
    %p207 = pneg %p206
    // Predicated region
    $region9: #{_lambda_.9} parent=5 // pred_check
      _
    $region10: #{_lambda_.9} parent=5 // pred_check_branch
      %209 = sbr.rel (%p206) target = $region12
    $region11: #{_lambda_.9} parent=5 // pred_region
      %s210 = ssub.s32 %s13, 1
      // Predicated region
      $region13: #{_lambda_.9} parent=11 // pred_check
        %p211 = pneg %p86
      $region14: #{_lambda_.9} parent=11 // pred_check_branch
        %213 = sbr.rel (%p211) target = $region16
      $region15: #{_lambda_.9} parent=11 // pred_region
        _
      $region16: #{_lambda_.9} parent=11 // pred_fallthru
        _
      // Predicated region
      $region17: #{_lambda_.9} parent=11 // pred_check
        %p214 = pneg %p107
      $region18: #{_lambda_.9} parent=11 // pred_check_branch
        %216 = sbr.rel (%p214) target = $region20
      $region19: #{_lambda_.9} parent=11 // pred_region
        _
      $region20: #{_lambda_.9} parent=11 // pred_fallthru
        _
      // Predicated region
      $region21: #{_lambda_.9} parent=11 // pred_check
        %p217 = pneg %p128
      $region22: #{_lambda_.9} parent=11 // pred_check_branch
        %219 = sbr.rel (%p217) target = $region24
      $region23: #{_lambda_.9} parent=11 // pred_region
        _
      $region24: #{_lambda_.9} parent=11 // pred_fallthru
        _
      // Predicated region
      $region25: #{_lambda_.9} parent=11 // pred_check
        %p220 = pneg %p149
      $region26: #{_lambda_.9} parent=11 // pred_check_branch
        %222 = sbr.rel (%p220) target = $region28
      $region27: #{_lambda_.9} parent=11 // pred_region
        _
      $region28: #{_lambda_.9} parent=11 // pred_fallthru
        _
      // Predicated region
      $region29: #{_lambda_.9} parent=11 // pred_check
        %p223 = pneg %p170
      $region30: #{_lambda_.9} parent=11 // pred_check_branch
        %225 = sbr.rel (%p223) target = $region32
      $region31: #{_lambda_.9} parent=11 // pred_region
        _
      $region32: #{_lambda_.9} parent=11 // pred_fallthru
        _
    $region12: #{_lambda_.9} parent=5 // pred_fallthru
      _
    %p226 = scmp.lt.s32.totalorder %s13, 2
    // Predicated region
    $region33: #{_lambda_.9} parent=5 // pred_check
      %p227 = pneg %p226
    $region34: #{_lambda_.9} parent=5 // pred_check_branch
      %229 = sbr.rel (%p227) target = $region36
    $region35: #{_lambda_.9} parent=5 // pred_region
      // Predicated region
      $region37: #{_lambda_.9} parent=35 // pred_check
        %p230 = pneg %p33
      $region38: #{_lambda_.9} parent=35 // pred_check_branch
        %232 = sbr.rel (%p230) target = $region40
      $region39: #{_lambda_.9} parent=35 // pred_region
        %s233 = smul.u32 4, %s13
        %p234 = scmp.lt.s32.totalorder %s233, 7
        %s235 = scalar_select %p234, %s233, 7
        %s236 = smul.addr %s235, 4
        %s237 = scalar_lea.vmem %s0, %s236
        %s238 = smul.u32 4, %s13
      $region40: #{_lambda_.9} parent=35 // pred_fallthru
        _
      // Predicated region
      $region41: #{_lambda_.9} parent=35 // pred_check
        %p239 = pneg %p59
      $region42: #{_lambda_.9} parent=35 // pred_check_branch
        %241 = sbr.rel (%p239) target = $region44
      $region43: #{_lambda_.9} parent=35 // pred_region
        %s242 = smul.u32 4, %s13
        %p243 = scmp.lt.s32.totalorder %s242, 7
        %s244 = scalar_select %p243, %s242, 7
        %s245 = smul.addr %s244, 8
        %s246 = scalar_lea.vmem %s1, %s245
        %s247 = smul.u32 4, %s13
      $region44: #{_lambda_.9} parent=35 // pred_fallthru
        _
    $region36: #{_lambda_.9} parent=5 // pred_fallthru
      _
    %p248 = scmp.le.s32.totalorder 1, %s13
    %p249 = scmp.lt.s32.totalorder %s13, 3
    %p250 = pnand %p248, %p249
    %p251 = pneg %p250
    // Predicated region
    $region45: #{_lambda_.9} parent=5 // pred_check
      _
    $region46: #{_lambda_.9} parent=5 // pred_check_branch
      %253 = sbr.rel (%p250) target = $region48
    $region47: #{_lambda_.9} parent=5 // pred_region
      %s254 = ssub.s32 %s13, 1
      %s255 = smul.u32 4, %s18
      %p256 = scmp.lt.s32.totalorder %s255, 7
      %s257 = scalar_select %p256, %s255, 7
      %s258 = smul.addr %s257, 4
      %s259 = scalar_lea.vmem %s0, %s258
      %p260 = pneg %p39
      %p261 = pneg %p36
      %s262 = smul.u32 4, %s18
      %p263 = scmp.lt.s32.totalorder %s262, 7
      %s264 = scalar_select %p263, %s262, 7
      %s265 = smul.addr %s264, 8
      %s266 = scalar_lea.vmem %s1, %s265
      %p267 = pneg %p65
      %p268 = pneg %p62
      %p269 = pneg %p86
      %p270 = pneg %p83
      %p271 = pneg %p107
      %p272 = pneg %p104
      %p273 = pneg %p128
      %p274 = pneg %p125
      %p275 = pneg %p149
      %p276 = pneg %p146
      %p277 = pneg %p170
      %p278 = pneg %p167
      %p279 = pneg %p196
      %p280 = pneg %p193
      %s281 = smul.u32 4, %s18
      %p282 = scmp.lt.s32.totalorder %s281, 7
      %s283 = scalar_select %p282, %s281, 7
      %s284 = smul.addr %s283, 4
      %s285 = scalar_lea.vmem %s7, %s284
      %s286 = smul.u32 4, %s18
      %p287 = scmp.lt.s32.totalorder %s286, 7
      %s288 = scalar_select %p287, %s286, 7
      %s289 = smul.addr %s288, 4
      %s290 = scalar_lea.vmem %s0, %s289
      %s291 = smul.u32 4, %s18
      %s292 = smul.u32 4, %s18
      %p293 = scmp.lt.s32.totalorder %s292, 7
      %s294 = scalar_select %p293, %s292, 7
      %s295 = smul.addr %s294, 8
      %s296 = scalar_lea.vmem %s1, %s295
      %s297 = smul.u32 4, %s18
      %s298 = smul.u32 4, %s18
      %p299 = scmp.lt.s32.totalorder %s298, 7
      %s300 = scalar_select %p299, %s298, 7
      %s301 = smul.addr %s300, 4
      %s302 = scalar_lea.vmem %s7, %s301
      %s303 = smul.u32 4, %s18
      %v305 = vld [vmem:[%s290] sm:$0xf]
      %v306 = vld [vmem:[%s290 + $0x4] sm:$0xf]
      %v307 = vld [vmem:[%s290 + $0x8] sm:$0xf]
      %v308 = vld [vmem:[%s290 + $0xc] sm:$0xf]
      %v309 = vld [vmem:[%s296] sm:$0xff]
      %v310 = vld [vmem:[%s296 + $0x8] sm:$0xff]
      %v311 = vld [vmem:[%s296 + $0x10] sm:$0xff]
      %v312 = vld [vmem:[%s296 + $0x18] sm:$0xff]
      %v313 = vpack.c.bf16 %v310, %v309
      %v314 = vpack.c.bf16 %v312, %v311
      %v315 = vld [vmem:[%s4] sm:$0x1]
      %v316 = vunpack.c.l.bf16 %v315
      %v317 = vld [vmem:[%s2] sm:$0xf]
      %v318 = vld [vmem:[%s2 + $0x4] sm:$0xf]
      %v323 = vunpack.c.l.b16 %v305
      %v324 = vunpack.c.l.b16 %v306
      %v325 = vunpack.c.l.b16 %v307
      %v326 = vunpack.c.l.b16 %v308
      %v327 = vpack.c.b16 %v324, %v323
      %v328 = vpack.c.b16 %v326, %v325
      %v331 = vunpack.c.l.b16 %v317
      %v332 = vunpack.c.l.b16 %v318
      %v333 = vpack.c.b16 %v332, %v331
      %vm335 = vcmask 130048
      %v337 = vsel %vm335, %v327, 0
      %v340 = vsel %vm335, %v328, 0
      %342 = vmatprep.subr.bf16.mxu0 0
      %343 = vmatpush1.bf16.msra.mxu0 %v333
      %344 = vmatprep.subr.bf16.mxu0 0
      %345 = vmatpush1.bf16.msra.mxu0 0
      %346 = vmatprep.subr.bf16.mxu0 0
      %347 = vmatpush1.bf16.msra.mxu0 0
      %348 = vmatprep.subr.bf16.mxu0 0
      %349 = vmatpush1.bf16.msra.mxu0 0
      %350 = vmatprep.subr.bf16.mxu0 0
      %351 = vmatpush1.bf16.msra.mxu0 0
      %352 = vmatprep.subr.bf16.mxu0 0
      %353 = vmatpush1.bf16.msra.mxu0 0
      %354 = vmatprep.subr.bf16.mxu0 0
      %355 = vmatpush1.bf16.msra.mxu0 0
      %356 = vmatprep.subr.bf16.mxu0 0
      %357 = vmatpush1.bf16.msra.mxu0 0
      %358 = vmatprep.subr.bf16.mxu0 0
      %359 = vmatpush1.bf16.msra.mxu0 0
      %360 = vmatprep.subr.bf16.mxu0 0
      %361 = vmatpush1.bf16.msra.mxu0 0
      %362 = vmatprep.subr.bf16.mxu0 0
      %363 = vmatpush1.bf16.msra.mxu0 0
      %364 = vmatprep.subr.bf16.mxu0 0
      %365 = vmatpush1.bf16.msra.mxu0 0
      %366 = vmatprep.subr.bf16.mxu0 0
      %367 = vmatpush1.bf16.msra.mxu0 0
      %368 = vmatprep.subr.bf16.mxu0 0
      %369 = vmatpush1.bf16.msra.mxu0 0
      %370 = vmatprep.subr.bf16.mxu0 0
      %371 = vmatpush1.bf16.msra.mxu0 0
      %372 = vmatprep.subr.bf16.mxu0 0
      %373 = vmatpush1.bf16.msra.mxu0 0
      %374 = vmatprep.mubr.bf16.mxu0 0
      %375 = vmatmul.mubr.bf16.gmra.mrb[0].mxu0 %v337
      %v376 = vpop.f32.mrb[0].mxu0
      %v377 = vadd.f32 0.0, %v376
      %v378 = vpop.f32.mrb[0].mxu0
      %v379 = vpop.f32.mrb[0].mxu0
      %v380 = vadd.f32 0.0, %v379
      %v381 = vpop.f32.mrb[0].mxu0
      %382 = vmatprep.mubr.bf16.mxu0 0
      %383 = vmatmul.mubr.bf16.gmra.mrb[0].mxu0 %v340
      %v384 = vpop.f32.mrb[0].mxu0
      %v385 = vadd.f32 0.0, %v384
      %v386 = vpop.f32.mrb[0].mxu0
      %v387 = vpop.f32.mrb[0].mxu0
      %v388 = vadd.f32 0.0, %v387
      %v389 = vpop.f32.mrb[0].mxu0
      %390 = vdwg.mxu0
      %v391 = vlaneseq
      %v392 = vshrl.u32 %v391, 7
      %v393 = vsub.s32 0, %v392
      %v394 = vrot.slane %v316, %v393
      %v395 = vadd.f32 %v394, %v377
      %v396 = vadd.f32 %v394, %v380
      %v397 = vadd.f32 %v394, %v385
      %v398 = vadd.f32 %v394, %v388
      %v399 = vld [vmem:[%s3] sm:$0xf]
      %v400 = vld [vmem:[%s3 + $0x4] sm:$0xf]
      %v403 = vunpack.c.l.b16 %v399
      %v404 = vunpack.c.l.b16 %v400
      %v405 = vpack.c.b16 %v404, %v403
      %v408 = vsel %vm335, %v313, 0
      %v411 = vsel %vm335, %v314, 0
      %413 = vmatprep.subr.bf16.mxu0 0
      %414 = vmatpush1.bf16.msra.mxu0 %v405
      %415 = vmatprep.subr.bf16.mxu0 0
      %416 = vmatpush1.bf16.msra.mxu0 0
      %417 = vmatprep.subr.bf16.mxu0 0
      %418 = vmatpush1.bf16.msra.mxu0 0
      %419 = vmatprep.subr.bf16.mxu0 0
      %420 = vmatpush1.bf16.msra.mxu0 0
      %421 = vmatprep.subr.bf16.mxu0 0
      %422 = vmatpush1.bf16.msra.mxu0 0
      %423 = vmatprep.subr.bf16.mxu0 0
      %424 = vmatpush1.bf16.msra.mxu0 0
      %425 = vmatprep.subr.bf16.mxu0 0
      %426 = vmatpush1.bf16.msra.mxu0 0
      %427 = vmatprep.subr.bf16.mxu0 0
      %428 = vmatpush1.bf16.msra.mxu0 0
      %429 = vmatprep.subr.bf16.mxu0 0
      %430 = vmatpush1.bf16.msra.mxu0 0
      %431 = vmatprep.subr.bf16.mxu0 0
      %432 = vmatpush1.bf16.msra.mxu0 0
      %433 = vmatprep.subr.bf16.mxu0 0
      %434 = vmatpush1.bf16.msra.mxu0 0
      %435 = vmatprep.subr.bf16.mxu0 0
      %436 = vmatpush1.bf16.msra.mxu0 0
      %437 = vmatprep.subr.bf16.mxu0 0
      %438 = vmatpush1.bf16.msra.mxu0 0
      %439 = vmatprep.subr.bf16.mxu0 0
      %440 = vmatpush1.bf16.msra.mxu0 0
      %441 = vmatprep.subr.bf16.mxu0 0
      %442 = vmatpush1.bf16.msra.mxu0 0
      %443 = vmatprep.subr.bf16.mxu0 0
      %444 = vmatpush1.bf16.msra.mxu0 0
      %445 = vmatprep.mubr.bf16.mxu0 0
      %446 = vmatmul.mubr.bf16.gmra.mrb[0].mxu0 %v408
      %v447 = vpop.f32.mrb[0].mxu0
      %v448 = vadd.f32 0.0, %v447
      %v449 = vpop.f32.mrb[0].mxu0
      %v450 = vpop.f32.mrb[0].mxu0
      %v451 = vadd.f32 0.0, %v450
      %v452 = vpop.f32.mrb[0].mxu0
      %453 = vmatprep.mubr.bf16.mxu0 0
      %454 = vmatmul.mubr.bf16.gmra.mrb[0].mxu0 %v411
      %v455 = vpop.f32.mrb[0].mxu0
      %v456 = vadd.f32 0.0, %v455
      %v457 = vpop.f32.mrb[0].mxu0
      %v458 = vpop.f32.mrb[0].mxu0
      %v459 = vadd.f32 0.0, %v458
      %v460 = vpop.f32.mrb[0].mxu0
      %461 = vdwg.mxu0
      %v462 = vadd.f32 %v395, %v448
      %v463 = vadd.f32 %v396, %v451
      %v464 = vadd.f32 %v397, %v456
      %v465 = vadd.f32 %v398, %v459
      %vm466 = vcmask 261120
      %v467 = vsel %vm466, %v462, 0.0
      %468 = vadd.xlane.f32.xlu0 %v467
      %v469 = vpop.xlane.xlu0 %468
      %v470 = vsel %vm466, %v463, 0.0
      %471 = vadd.xlane.f32.xlu0 %v470
      %v472 = vpop.xlane.xlu0 %471
      %v473 = vsel %vm466, %v464, 0.0
      %474 = vadd.xlane.f32.xlu0 %v473
      %v475 = vpop.xlane.xlu0 %474
      %v476 = vsel %vm466, %v465, 0.0
      %477 = vadd.xlane.f32.xlu0 %v476
      %v478 = vpop.xlane.xlu0 %477
      %v479 = vrcp.pop 32.0
      %v480 = vmul.f32 %v469, %v479
      %v481 = vmul.f32 %v472, %v479
      %v482 = vmul.f32 %v475, %v479
      %v483 = vmul.f32 %v478, %v479
      %v484 = vmul.f32 %v462, %v462
      %v485 = vmul.f32 %v463, %v463
      %v486 = vmul.f32 %v464, %v464
      %v487 = vmul.f32 %v465, %v465
      %v488 = vsel %vm466, %v484, 0.0
      %489 = vadd.xlane.f32.xlu0 %v488
      %v490 = vpop.xlane.xlu0 %489
      %v491 = vsel %vm466, %v485, 0.0
      %492 = vadd.xlane.f32.xlu0 %v491
      %v493 = vpop.xlane.xlu0 %492
      %v494 = vsel %vm466, %v486, 0.0
      %495 = vadd.xlane.f32.xlu0 %v494
      %v496 = vpop.xlane.xlu0 %495
      %v497 = vsel %vm466, %v487, 0.0
      %498 = vadd.xlane.f32.xlu0 %v497
      %v499 = vpop.xlane.xlu0 %498
      %v500 = vmul.f32 %v490, %v479
      %v501 = vmul.f32 %v493, %v479
      %v502 = vmul.f32 %v496, %v479
      %v503 = vmul.f32 %v499, %v479
      %v504 = vmul.f32 %v480, %v480
      %v505 = vmul.f32 %v481, %v481
      %v506 = vmul.f32 %v482, %v482
      %v507 = vmul.f32 %v483, %v483
      %v508 = vsub.f32 %v500, %v504
      %v509 = vsub.f32 %v501, %v505
      %v510 = vsub.f32 %v502, %v506
      %v511 = vsub.f32 %v503, %v507
      %v512 = vmax.f32 %v508, 0.0
      %v513 = vmax.f32 %v509, 0.0
      %v514 = vmax.f32 %v510, 0.0
      %v515 = vmax.f32 %v511, 0.0
      %v516 = vsub.f32 %v462, %v480
      %v517 = vsub.f32 %v463, %v481
      %v518 = vsub.f32 %v464, %v482
      %v519 = vsub.f32 %v465, %v483
      %v520 = vadd.f32 %v512, 1e-05
      %v521 = vadd.f32 %v513, 1e-05
      %v522 = vadd.f32 %v514, 1e-05
      %v523 = vadd.f32 %v515, 1e-05
      %v524 = vrsqrt.pop %v520
      %v525 = vrsqrt.pop %v521
      %v526 = vrsqrt.pop %v522
      %v527 = vrsqrt.pop %v523
      %v528 = vmul.f32 %v516, %v524
      %v529 = vmul.f32 %v517, %v525
      %v530 = vmul.f32 %v518, %v526
      %v531 = vmul.f32 %v519, %v527
      %v532 = vmax.f32 %v528, 0.0
      %v533 = vmax.f32 %v529, 0.0
      %v534 = vmax.f32 %v530, 0.0
      %v535 = vmax.f32 %v531, 0.0
      %v536 = vld [vmem:[%s5] sm:$0xf]
      %v537 = vld [vmem:[%s5 + $0x4] sm:$0xf]
      %v538 = vld [vmem:[%s5 + $0x8] sm:$0xf]
      %v539 = vld [vmem:[%s5 + $0xc] sm:$0xf]
      %v540 = vld [vmem:[%s6] sm:$0x1]
      %v541 = vunpack.c.l.bf16 %v540
      %v542 = vpack.c.bf16 %v533, %v532
      %v543 = vpack.c.bf16 %v535, %v534
      %v544 = vlaneseq
      %v545 = vshrl.u32 %v544, 7
      %v546 = vsub.s32 0, %v545
      %v547 = vrot.slane %v541, %v546
      %v552 = vunpack.c.l.b16 %v536
      %v553 = vunpack.c.l.b16 %v537
      %v554 = vunpack.c.l.b16 %v538
      %v555 = vunpack.c.l.b16 %v539
      %v556 = vpack.c.b16 %v553, %v552
      %v557 = vpack.c.b16 %v555, %v554
      %v561 = vsel %vm466, %v542, 0
      %v564 = vsel %vm466, %v543, 0
      %566 = vmatprep.subr.bf16.mxu0 0
      %567 = vmatpush1.bf16.msra.mxu0 %v556
      %568 = vmatprep.subr.bf16.mxu0 0
      %569 = vmatpush1.bf16.msra.mxu0 %v557
      %570 = vmatprep.subr.bf16.mxu0 0
      %571 = vmatpush1.bf16.msra.mxu0 0
      %572 = vmatprep.subr.bf16.mxu0 0
      %573 = vmatpush1.bf16.msra.mxu0 0
      %574 = vmatprep.subr.bf16.mxu0 0
      %575 = vmatpush1.bf16.msra.mxu0 0
      %576 = vmatprep.subr.bf16.mxu0 0
      %577 = vmatpush1.bf16.msra.mxu0 0
      %578 = vmatprep.subr.bf16.mxu0 0
      %579 = vmatpush1.bf16.msra.mxu0 0
      %580 = vmatprep.subr.bf16.mxu0 0
      %581 = vmatpush1.bf16.msra.mxu0 0
      %582 = vmatprep.subr.bf16.mxu0 0
      %583 = vmatpush1.bf16.msra.mxu0 0
      %584 = vmatprep.subr.bf16.mxu0 0
      %585 = vmatpush1.bf16.msra.mxu0 0
      %586 = vmatprep.subr.bf16.mxu0 0
      %587 = vmatpush1.bf16.msra.mxu0 0
      %588 = vmatprep.subr.bf16.mxu0 0
      %589 = vmatpush1.bf16.msra.mxu0 0
      %590 = vmatprep.subr.bf16.mxu0 0
      %591 = vmatpush1.bf16.msra.mxu0 0
      %592 = vmatprep.subr.bf16.mxu0 0
      %593 = vmatpush1.bf16.msra.mxu0 0
      %594 = vmatprep.subr.bf16.mxu0 0
      %595 = vmatpush1.bf16.msra.mxu0 0
      %596 = vmatprep.subr.bf16.mxu0 0
      %597 = vmatpush1.bf16.msra.mxu0 0
      %598 = vmatprep.mubr.bf16.mxu0 0
      %599 = vmatmul.mubr.bf16.gmra.mrb[0].mxu0 %v561
      %v600 = vpop.f32.mrb[0].mxu0
      %v601 = vadd.f32 %v547, %v600
      %v602 = vpop.f32.mrb[0].mxu0
      %v603 = vpop.f32.mrb[0].mxu0
      %v604 = vadd.f32 %v547, %v603
      %v605 = vpop.f32.mrb[0].mxu0
      %606 = vmatprep.mubr.bf16.mxu0 0
      %607 = vmatmul.mubr.bf16.gmra.mrb[0].mxu0 %v564
      %v608 = vpop.f32.mrb[0].mxu0
      %v609 = vadd.f32 %v547, %v608
      %v610 = vpop.f32.mrb[0].mxu0
      %v611 = vpop.f32.mrb[0].mxu0
      %v612 = vadd.f32 %v547, %v611
      %v613 = vpop.f32.mrb[0].mxu0
      %614 = vdwg.mxu0
      %v615 = vsel %vm335, %v601, 0.0
      %616 = vadd.xlane.f32.xlu0 %v615
      %v617 = vpop.xlane.xlu0 %616
      %v618 = vsel %vm335, %v604, 0.0
      %619 = vadd.xlane.f32.xlu0 %v618
      %v620 = vpop.xlane.xlu0 %619
      %v621 = vsel %vm335, %v609, 0.0
      %622 = vadd.xlane.f32.xlu0 %v621
      %v623 = vpop.xlane.xlu0 %622
      %v624 = vsel %vm335, %v612, 0.0
      %625 = vadd.xlane.f32.xlu0 %v624
      %v626 = vpop.xlane.xlu0 %625
      %v627 = vrcp.pop 16.0
      %v628 = vmul.f32 %v617, %v627
      %v629 = vmul.f32 %v620, %v627
      %v630 = vmul.f32 %v623, %v627
      %v631 = vmul.f32 %v626, %v627
      %v632 = vmul.f32 %v601, %v601
      %v633 = vmul.f32 %v604, %v604
      %v634 = vmul.f32 %v609, %v609
      %v635 = vmul.f32 %v612, %v612
      %v636 = vsel %vm335, %v632, 0.0
      %637 = vadd.xlane.f32.xlu0 %v636
      %v638 = vpop.xlane.xlu0 %637
      %v639 = vsel %vm335, %v633, 0.0
      %640 = vadd.xlane.f32.xlu0 %v639
      %v641 = vpop.xlane.xlu0 %640
      %v642 = vsel %vm335, %v634, 0.0
      %643 = vadd.xlane.f32.xlu0 %v642
      %v644 = vpop.xlane.xlu0 %643
      %v645 = vsel %vm335, %v635, 0.0
      %646 = vadd.xlane.f32.xlu0 %v645
      %v647 = vpop.xlane.xlu0 %646
      %v648 = vmul.f32 %v638, %v627
      %v649 = vmul.f32 %v641, %v627
      %v650 = vmul.f32 %v644, %v627
      %v651 = vmul.f32 %v647, %v627
      %v652 = vmul.f32 %v628, %v628
      %v653 = vmul.f32 %v629, %v629
      %v654 = vmul.f32 %v630, %v630
      %v655 = vmul.f32 %v631, %v631
      %v656 = vsub.f32 %v648, %v652
      %v657 = vsub.f32 %v649, %v653
      %v658 = vsub.f32 %v650, %v654
      %v659 = vsub.f32 %v651, %v655
      %v660 = vmax.f32 %v656, 0.0
      %v661 = vmax.f32 %v657, 0.0
      %v662 = vmax.f32 %v658, 0.0
      %v663 = vmax.f32 %v659, 0.0
      %v664 = vsub.f32 %v601, %v628
      %v665 = vsub.f32 %v604, %v629
      %v666 = vsub.f32 %v609, %v630
      %v667 = vsub.f32 %v612, %v631
      %v668 = vadd.f32 %v660, 1e-05
      %v669 = vadd.f32 %v661, 1e-05
      %v670 = vadd.f32 %v662, 1e-05
      %v671 = vadd.f32 %v663, 1e-05
      %v672 = vrsqrt.pop %v668
      %v673 = vrsqrt.pop %v669
      %v674 = vrsqrt.pop %v670
      %v675 = vrsqrt.pop %v671
      %v676 = vmul.f32 %v664, %v672
      %v677 = vmul.f32 %v665, %v673
      %v678 = vmul.f32 %v666, %v674
      %v679 = vmul.f32 %v667, %v675
      %v680 = vmax.f32 %v676, 0.0
      %v681 = vmax.f32 %v677, 0.0
      %v682 = vmax.f32 %v678, 0.0
      %v683 = vmax.f32 %v679, 0.0
      %v684 = vunpack.c.l.bf16 %v305
      %v685 = vunpack.c.l.bf16 %v306
      %v686 = vunpack.c.l.bf16 %v307
      %v687 = vunpack.c.l.bf16 %v308
      %v688 = vadd.f32 %v680, %v684
      %v689 = vadd.f32 %v681, %v685
      %v690 = vadd.f32 %v682, %v686
      %v691 = vadd.f32 %v683, %v687
      %v692 = vpack.c.bf16 %v689, %v688
      %v693 = vpack.c.bf16 %v691, %v690
      %v696 = vunpack.c.l.b16 %v692
      %v697 = vunpack.c.h.b16 %v692
      %v698 = vunpack.c.l.b16 %v693
      %v699 = vunpack.c.h.b16 %v693
      %v700 = vpack.c.b16 %v696, %v696
      %v701 = vpack.c.b16 %v697, %v697
      %v702 = vpack.c.b16 %v698, %v698
      %v703 = vpack.c.b16 %v699, %v699
      %vm708 = vcmask 125952
      %709 = vst.msk [vmem:[%s302] sm:$0xf] %vm708, %v700
      %710 = vst.msk [vmem:[%s302 + $0x4] sm:$0xf] %vm708, %v701
      %711 = vst.msk [vmem:[%s302 + $0x8] sm:$0xf] %vm708, %v702
      %712 = vst.msk [vmem:[%s302 + $0xc] sm:$0xf] %vm708, %v703
      %s713 = smul.u32 4, %s18
      %p714 = scmp.lt.s32.totalorder %s713, 7
      %s715 = scalar_select %p714, %s713, 7
      %s716 = smul.addr %s715, 4
      %s717 = scalar_lea.vmem %s7, %s716
      // Predicated region
      $region49: #{_lambda_.9} parent=47 // pred_check
        %p718 = pneg %p193
      $region50: #{_lambda_.9} parent=47 // pred_check_branch
        %720 = sbr.rel (%p718) target = $region52
      $region51: #{_lambda_.9} parent=47 // pred_region
        %s721 = smul.u32 4, %s18
      $region52: #{_lambda_.9} parent=47 // pred_fallthru
        _
    $region48: #{_lambda_.9} parent=5 // pred_fallthru
      _
    %p722 = scmp.le.s32.totalorder 2, %s13
    // Predicated region
    $region53: #{_lambda_.9} parent=5 // pred_check
      %p723 = pneg %p722
    $region54: #{_lambda_.9} parent=5 // pred_check_branch
      %725 = sbr.rel (%p723) target = $region56
    $region55: #{_lambda_.9} parent=5 // pred_region
      %s726 = ssub.s32 %s13, 2
      // Predicated region
      $region57: #{_lambda_.9} parent=55 // pred_check
        %p727 = pneg %p199
      $region58: #{_lambda_.9} parent=55 // pred_check_branch
        %729 = sbr.rel (%p727) target = $region60
      $region59: #{_lambda_.9} parent=55 // pred_region
        %s730 = smul.u32 4, %s19
        %p731 = scmp.lt.s32.totalorder %s730, 7
        %s732 = scalar_select %p731, %s730, 7
        %s733 = smul.addr %s732, 4
        %s734 = scalar_lea.vmem %s7, %s733
      $region60: #{_lambda_.9} parent=55 // pred_fallthru
        _
    $region56: #{_lambda_.9} parent=5 // pred_fallthru
      _
  $region6: #{_lambda_.9} parent=0 // loop_footer
    %s17 = sadd.s32 1, %s13
  $region7: #{_lambda_.9} parent=0 // loop_footer_branch
    %12 = sbr.rel target = $region3
  $region8: #{_lambda_.9} parent=0 // loop_exit
    _

// kernel: _lambda_.13
$region0: #{_lambda_.13}
  #allocation0 [shape = 'u32[]', space=smem, size = 0x4, offset = 0x4, fixed_abs, tag = 'smem constant byte address 0x4 - core index']
  #allocation1 [shape = 'u32[144,128]{1,0:T(1,128)}', space=vmem, size = 0x12000, scoped, tag = 'internal scratch']
  %s0 = inlined_call_operand.vmem [shape: bf16[64,16], index: 0, kind: input, shape index: {}]
  %s1 = inlined_call_operand.vmem [shape: bf16[16,32], index: 1, kind: input, shape index: {}]
  %s2 = inlined_call_operand.vmem [shape: bf16[1,32], index: 2, kind: input, shape index: {}]
  %s3 = inlined_call_operand.vmem [shape: bf16[32,8], index: 3, kind: input, shape index: {}]
  %s4 = inlined_call_operand.vmem [shape: bf16[1,8], index: 4, kind: input, shape index: {}]
  %s5 = inlined_call_operand.vmem [shape: f32[64,8], index: 5, kind: output, shape index: {}]
  %s6 = sld [smem:[#allocation0]]
  $region53: #{_lambda_.13} parent=0
    _
  %s8 = ssub.s32 1, %s6
  %s9 = scalar_select 0, %s8, %s6
  loop: start=0, step=1, limit=4
  $region2: #{_lambda_.13} parent=0 // loop_pre_header
    _
  $region3: #{_lambda_.13} parent=0 // loop_header
    %s11 = sphi 0, %s15
    %p12 = scmp.ge.s32.totalorder %s11, 4
    %s21 = sphi 0, %s23
    %s24 = sphi 0, %s21
    %s25 = sphi 0, %s24
    %s41 = sphi 0, %s25
    %s45 = sphi 0, %s45
    %s47 = sphi 0, %s45
    %s48 = sphi 0, %s47
    %s62 = sphi 0, %s48
    %s66 = sphi 0, %s66
    %s68 = sphi 0, %s66
    %s69 = sphi 0, %s68
    %s83 = sphi 0, %s69
    %s87 = sphi 0, %s87
    %s89 = sphi 0, %s87
    %s90 = sphi 0, %s89
    %s104 = sphi 0, %s90
    %s108 = sphi 0, %s108
    %s110 = sphi 0, %s108
    %s111 = sphi 0, %s110
    %s125 = sphi 0, %s111
    %s131 = sphi 0, %s133
    %s134 = sphi 0, %s131
    %s135 = sphi 0, %s134
    %s151 = sphi 0, %s135
  $region4: #{_lambda_.13} parent=0 // loop_header_branch
    %14 = sbr.rel (%p12) target = $region8
  $region5: #{_lambda_.13} parent=0 // loop_body
    %s16 = ssub.s32 %s11, 1
    %s17 = ssub.s32 %s11, 2
    %s18 = sadd.s32 %s11, 1
    %s19 = ssub.s32 %s11, %s18
    %p20 = scmp.eq.s32.totalorder %s19, 0
    %s22 = sadd.s32 %s21, 1
    %s23 = scalar_select %p20, %s21, %s22
    %p26 = pneg %p20
    %p27 = scmp.eq.s32.totalorder %s11, 1
    %p28 = por %p26, %p27
    %p29 = scmp.ne.s32.totalorder %s21, %s24
    %p30 = scmp.eq.s32.totalorder %s11, 0
    %p31 = por %p29, %p30
    %p32 = scmp.ne.s32.totalorder %s21, %s24
    %p33 = scmp.eq.s32.totalorder %s16, 1
    %p34 = por %p32, %p33
    %p35 = scmp.ne.s32.totalorder %s24, %s25
    %p36 = scmp.eq.s32.totalorder %s16, 0
    %p37 = por %p35, %p36
    %p38 = scmp.ne.s32.totalorder %s24, %s25
    %p39 = scmp.eq.s32.totalorder %s17, 1
    %p40 = por %p38, %p39
    %p42 = scmp.ne.s32.totalorder %s25, %s41
    %p43 = scmp.eq.s32.totalorder %s17, 0
    %p44 = por %p42, %p43
    %s46 = sadd.s32 %s45, 1
    %p49 = scmp.eq.s32.totalorder %s11, 1
    %p50 = scmp.ne.s32.totalorder %s45, %s47
    %p51 = scmp.eq.s32.totalorder %s11, 0
    %p52 = por %p50, %p51
    %p53 = scmp.ne.s32.totalorder %s45, %s47
    %p54 = scmp.eq.s32.totalorder %s16, 1
    %p55 = por %p53, %p54
    %p56 = scmp.ne.s32.totalorder %s47, %s48
    %p57 = scmp.eq.s32.totalorder %s16, 0
    %p58 = por %p56, %p57
    %p59 = scmp.ne.s32.totalorder %s47, %s48
    %p60 = scmp.eq.s32.totalorder %s17, 1
    %p61 = por %p59, %p60
    %p63 = scmp.ne.s32.totalorder %s48, %s62
    %p64 = scmp.eq.s32.totalorder %s17, 0
    %p65 = por %p63, %p64
    %s67 = sadd.s32 %s66, 1
    %p70 = scmp.eq.s32.totalorder %s11, 1
    %p71 = scmp.ne.s32.totalorder %s66, %s68
    %p72 = scmp.eq.s32.totalorder %s11, 0
    %p73 = por %p71, %p72
    %p74 = scmp.ne.s32.totalorder %s66, %s68
    %p75 = scmp.eq.s32.totalorder %s16, 1
    %p76 = por %p74, %p75
    %p77 = scmp.ne.s32.totalorder %s68, %s69
    %p78 = scmp.eq.s32.totalorder %s16, 0
    %p79 = por %p77, %p78
    %p80 = scmp.ne.s32.totalorder %s68, %s69
    %p81 = scmp.eq.s32.totalorder %s17, 1
    %p82 = por %p80, %p81
    %p84 = scmp.ne.s32.totalorder %s69, %s83
    %p85 = scmp.eq.s32.totalorder %s17, 0
    %p86 = por %p84, %p85
    %s88 = sadd.s32 %s87, 1
    %p91 = scmp.eq.s32.totalorder %s11, 1
    %p92 = scmp.ne.s32.totalorder %s87, %s89
    %p93 = scmp.eq.s32.totalorder %s11, 0
    %p94 = por %p92, %p93
    %p95 = scmp.ne.s32.totalorder %s87, %s89
    %p96 = scmp.eq.s32.totalorder %s16, 1
    %p97 = por %p95, %p96
    %p98 = scmp.ne.s32.totalorder %s89, %s90
    %p99 = scmp.eq.s32.totalorder %s16, 0
    %p100 = por %p98, %p99
    %p101 = scmp.ne.s32.totalorder %s89, %s90
    %p102 = scmp.eq.s32.totalorder %s17, 1
    %p103 = por %p101, %p102
    %p105 = scmp.ne.s32.totalorder %s90, %s104
    %p106 = scmp.eq.s32.totalorder %s17, 0
    %p107 = por %p105, %p106
    %s109 = sadd.s32 %s108, 1
    %p112 = scmp.eq.s32.totalorder %s11, 1
    %p113 = scmp.ne.s32.totalorder %s108, %s110
    %p114 = scmp.eq.s32.totalorder %s11, 0
    %p115 = por %p113, %p114
    %p116 = scmp.ne.s32.totalorder %s108, %s110
    %p117 = scmp.eq.s32.totalorder %s16, 1
    %p118 = por %p116, %p117
    %p119 = scmp.ne.s32.totalorder %s110, %s111
    %p120 = scmp.eq.s32.totalorder %s16, 0
    %p121 = por %p119, %p120
    %p122 = scmp.ne.s32.totalorder %s110, %s111
    %p123 = scmp.eq.s32.totalorder %s17, 1
    %p124 = por %p122, %p123
    %p126 = scmp.ne.s32.totalorder %s111, %s125
    %p127 = scmp.eq.s32.totalorder %s17, 0
    %p128 = por %p126, %p127
    %s129 = ssub.s32 %s11, %s18
    %p130 = scmp.eq.s32.totalorder %s129, 0
    %s132 = sadd.s32 %s131, 1
    %s133 = scalar_select %p130, %s131, %s132
    %p136 = pneg %p130
    %p137 = scmp.eq.s32.totalorder %s11, 1
    %p138 = por %p136, %p137
    %p139 = scmp.ne.s32.totalorder %s131, %s134
    %p140 = scmp.eq.s32.totalorder %s11, 0
    %p141 = por %p139, %p140
    %p142 = scmp.ne.s32.totalorder %s131, %s134
    %p143 = scmp.eq.s32.totalorder %s16, 1
    %p144 = por %p142, %p143
    %p145 = scmp.ne.s32.totalorder %s134, %s135
    %p146 = scmp.eq.s32.totalorder %s16, 0
    %p147 = por %p145, %p146
    %p148 = scmp.ne.s32.totalorder %s134, %s135
    %p149 = scmp.eq.s32.totalorder %s17, 1
    %p150 = por %p148, %p149
    %p152 = scmp.ne.s32.totalorder %s135, %s151
    %p153 = scmp.eq.s32.totalorder %s17, 0
    %p154 = por %p152, %p153
    %p155 = scmp.le.s32.totalorder 1, %s11
    %p156 = scmp.lt.s32.totalorder %s11, 3
    %p157 = pnand %p155, %p156
    %p158 = pneg %p157
    // Predicated region
    $region9: #{_lambda_.13} parent=5 // pred_check
      _
    $region10: #{_lambda_.13} parent=5 // pred_check_branch
      %160 = sbr.rel (%p157) target = $region12
    $region11: #{_lambda_.13} parent=5 // pred_region
      %s161 = ssub.s32 %s11, 1
      // Predicated region
      $region13: #{_lambda_.13} parent=11 // pred_check
        %p162 = pneg %p58
      $region14: #{_lambda_.13} parent=11 // pred_check_branch
        %164 = sbr.rel (%p162) target = $region16
      $region15: #{_lambda_.13} parent=11 // pred_region
        _
      $region16: #{_lambda_.13} parent=11 // pred_fallthru
        _
      // Predicated region
      $region17: #{_lambda_.13} parent=11 // pred_check
        %p165 = pneg %p79
      $region18: #{_lambda_.13} parent=11 // pred_check_branch
        %167 = sbr.rel (%p165) target = $region20
      $region19: #{_lambda_.13} parent=11 // pred_region
        _
      $region20: #{_lambda_.13} parent=11 // pred_fallthru
        _
      // Predicated region
      $region21: #{_lambda_.13} parent=11 // pred_check
        %p168 = pneg %p100
      $region22: #{_lambda_.13} parent=11 // pred_check_branch
        %170 = sbr.rel (%p168) target = $region24
      $region23: #{_lambda_.13} parent=11 // pred_region
        _
      $region24: #{_lambda_.13} parent=11 // pred_fallthru
        _
      // Predicated region
      $region25: #{_lambda_.13} parent=11 // pred_check
        %p171 = pneg %p121
      $region26: #{_lambda_.13} parent=11 // pred_check_branch
        %173 = sbr.rel (%p171) target = $region28
      $region27: #{_lambda_.13} parent=11 // pred_region
        _
      $region28: #{_lambda_.13} parent=11 // pred_fallthru
        _
    $region12: #{_lambda_.13} parent=5 // pred_fallthru
      _
    %p174 = scmp.lt.s32.totalorder %s11, 2
    // Predicated region
    $region29: #{_lambda_.13} parent=5 // pred_check
      %p175 = pneg %p174
    $region30: #{_lambda_.13} parent=5 // pred_check_branch
      %177 = sbr.rel (%p175) target = $region32
    $region31: #{_lambda_.13} parent=5 // pred_region
      // Predicated region
      $region33: #{_lambda_.13} parent=31 // pred_check
        %p178 = pneg %p31
      $region34: #{_lambda_.13} parent=31 // pred_check_branch
        %180 = sbr.rel (%p178) target = $region36
      $region35: #{_lambda_.13} parent=31 // pred_region
        %s181 = smul.u32 4, %s11
        %p182 = scmp.lt.s32.totalorder %s181, 7
        %s183 = scalar_select %p182, %s181, 7
        %s184 = smul.addr %s183, 4
        %s185 = scalar_lea.vmem %s0, %s184
        %s186 = smul.u32 4, %s11
      $region36: #{_lambda_.13} parent=31 // pred_fallthru
        _
    $region32: #{_lambda_.13} parent=5 // pred_fallthru
      _
    %p187 = scmp.le.s32.totalorder 1, %s11
    %p188 = scmp.lt.s32.totalorder %s11, 3
    %p189 = pnand %p187, %p188
    %p190 = pneg %p189
    // Predicated region
    $region37: #{_lambda_.13} parent=5 // pred_check
      _
    $region38: #{_lambda_.13} parent=5 // pred_check_branch
      %192 = sbr.rel (%p189) target = $region40
    $region39: #{_lambda_.13} parent=5 // pred_region
      %s193 = ssub.s32 %s11, 1
      %s194 = smul.u32 4, %s16
      %p195 = scmp.lt.s32.totalorder %s194, 7
      %s196 = scalar_select %p195, %s194, 7
      %s197 = smul.addr %s196, 4
      %s198 = scalar_lea.vmem %s0, %s197
      %p199 = pneg %p37
      %p200 = pneg %p34
      %p201 = pneg %p58
      %p202 = pneg %p55
      %p203 = pneg %p79
      %p204 = pneg %p76
      %p205 = pneg %p100
      %p206 = pneg %p97
      %p207 = pneg %p121
      %p208 = pneg %p118
      %p209 = pneg %p147
      %p210 = pneg %p144
      %s211 = smul.u32 4, %s16
      %p212 = scmp.lt.s32.totalorder %s211, 7
      %s213 = scalar_select %p212, %s211, 7
      %s214 = smul.addr %s213, 8
      %s215 = scalar_lea.vmem %s5, %s214
      %s216 = smul.u32 4, %s16
      %p217 = scmp.lt.s32.totalorder %s216, 7
      %s218 = scalar_select %p217, %s216, 7
      %s219 = smul.addr %s218, 4
      %s220 = scalar_lea.vmem %s0, %s219
      %s221 = smul.u32 4, %s16
      %s222 = smul.u32 4, %s16
      %p223 = scmp.lt.s32.totalorder %s222, 7
      %s224 = scalar_select %p223, %s222, 7
      %s225 = smul.addr %s224, 8
      %s226 = scalar_lea.vmem %s5, %s225
      %s227 = smul.u32 4, %s16
      %v229 = vld [vmem:[%s220] sm:$0xf]
      %v230 = vld [vmem:[%s220 + $0x4] sm:$0xf]
      %v231 = vld [vmem:[%s220 + $0x8] sm:$0xf]
      %v232 = vld [vmem:[%s220 + $0xc] sm:$0xf]
      %v233 = vld [vmem:[%s2] sm:$0x1]
      %v234 = vunpack.c.l.bf16 %v233
      %v235 = vld [vmem:[%s1] sm:$0xf]
      %v236 = vld [vmem:[%s1 + $0x4] sm:$0xf]
      %v241 = vunpack.c.l.b16 %v229
      %v242 = vunpack.c.l.b16 %v230
      %v243 = vunpack.c.l.b16 %v231
      %v244 = vunpack.c.l.b16 %v232
      %v245 = vpack.c.b16 %v242, %v241
      %v246 = vpack.c.b16 %v244, %v243
      %v249 = vunpack.c.l.b16 %v235
      %v250 = vunpack.c.l.b16 %v236
      %v251 = vpack.c.b16 %v250, %v249
      %vm253 = vcmask 130048
      %v255 = vsel %vm253, %v245, 0
      %v258 = vsel %vm253, %v246, 0
      %260 = vmatprep.subr.bf16.mxu0 0
      %261 = vmatpush1.bf16.msra.mxu0 %v251
      %262 = vmatprep.subr.bf16.mxu0 0
      %263 = vmatpush1.bf16.msra.mxu0 0
      %264 = vmatprep.subr.bf16.mxu0 0
      %265 = vmatpush1.bf16.msra.mxu0 0
      %266 = vmatprep.subr.bf16.mxu0 0
      %267 = vmatpush1.bf16.msra.mxu0 0
      %268 = vmatprep.subr.bf16.mxu0 0
      %269 = vmatpush1.bf16.msra.mxu0 0
      %270 = vmatprep.subr.bf16.mxu0 0
      %271 = vmatpush1.bf16.msra.mxu0 0
      %272 = vmatprep.subr.bf16.mxu0 0
      %273 = vmatpush1.bf16.msra.mxu0 0
      %274 = vmatprep.subr.bf16.mxu0 0
      %275 = vmatpush1.bf16.msra.mxu0 0
      %276 = vmatprep.subr.bf16.mxu0 0
      %277 = vmatpush1.bf16.msra.mxu0 0
      %278 = vmatprep.subr.bf16.mxu0 0
      %279 = vmatpush1.bf16.msra.mxu0 0
      %280 = vmatprep.subr.bf16.mxu0 0
      %281 = vmatpush1.bf16.msra.mxu0 0
      %282 = vmatprep.subr.bf16.mxu0 0
      %283 = vmatpush1.bf16.msra.mxu0 0
      %284 = vmatprep.subr.bf16.mxu0 0
      %285 = vmatpush1.bf16.msra.mxu0 0
      %286 = vmatprep.subr.bf16.mxu0 0
      %287 = vmatpush1.bf16.msra.mxu0 0
      %288 = vmatprep.subr.bf16.mxu0 0
      %289 = vmatpush1.bf16.msra.mxu0 0
      %290 = vmatprep.subr.bf16.mxu0 0
      %291 = vmatpush1.bf16.msra.mxu0 0
      %292 = vmatprep.mubr.bf16.mxu0 0
      %293 = vmatmul.mubr.bf16.gmra.mrb[0].mxu0 %v255
      %v294 = vpop.f32.mrb[0].mxu0
      %v295 = vadd.f32 0.0, %v294
      %v296 = vpop.f32.mrb[0].mxu0
      %v297 = vpop.f32.mrb[0].mxu0
      %v298 = vadd.f32 0.0, %v297
      %v299 = vpop.f32.mrb[0].mxu0
      %300 = vmatprep.mubr.bf16.mxu0 0
      %301 = vmatmul.mubr.bf16.gmra.mrb[0].mxu0 %v258
      %v302 = vpop.f32.mrb[0].mxu0
      %v303 = vadd.f32 0.0, %v302
      %v304 = vpop.f32.mrb[0].mxu0
      %v305 = vpop.f32.mrb[0].mxu0
      %v306 = vadd.f32 0.0, %v305
      %v307 = vpop.f32.mrb[0].mxu0
      %308 = vdwg.mxu0
      %v309 = vlaneseq
      %v310 = vshrl.u32 %v309, 7
      %v311 = vsub.s32 0, %v310
      %v312 = vrot.slane %v234, %v311
      %v313 = vadd.f32 %v312, %v295
      %v314 = vadd.f32 %v312, %v298
      %v315 = vadd.f32 %v312, %v303
      %v316 = vadd.f32 %v312, %v306
      %vm317 = vcmask 261120
      %v318 = vsel %vm317, %v313, 0.0
      %319 = vadd.xlane.f32.xlu0 %v318
      %v320 = vpop.xlane.xlu0 %319
      %v321 = vsel %vm317, %v314, 0.0
      %322 = vadd.xlane.f32.xlu0 %v321
      %v323 = vpop.xlane.xlu0 %322
      %v324 = vsel %vm317, %v315, 0.0
      %325 = vadd.xlane.f32.xlu0 %v324
      %v326 = vpop.xlane.xlu0 %325
      %v327 = vsel %vm317, %v316, 0.0
      %328 = vadd.xlane.f32.xlu0 %v327
      %v329 = vpop.xlane.xlu0 %328
      %v330 = vrcp.pop 32.0
      %v331 = vmul.f32 %v320, %v330
      %v332 = vmul.f32 %v323, %v330
      %v333 = vmul.f32 %v326, %v330
      %v334 = vmul.f32 %v329, %v330
      %v335 = vmul.f32 %v313, %v313
      %v336 = vmul.f32 %v314, %v314
      %v337 = vmul.f32 %v315, %v315
      %v338 = vmul.f32 %v316, %v316
      %v339 = vsel %vm317, %v335, 0.0
      %340 = vadd.xlane.f32.xlu0 %v339
      %v341 = vpop.xlane.xlu0 %340
      %v342 = vsel %vm317, %v336, 0.0
      %343 = vadd.xlane.f32.xlu0 %v342
      %v344 = vpop.xlane.xlu0 %343
      %v345 = vsel %vm317, %v337, 0.0
      %346 = vadd.xlane.f32.xlu0 %v345
      %v347 = vpop.xlane.xlu0 %346
      %v348 = vsel %vm317, %v338, 0.0
      %349 = vadd.xlane.f32.xlu0 %v348
      %v350 = vpop.xlane.xlu0 %349
      %v351 = vmul.f32 %v341, %v330
      %v352 = vmul.f32 %v344, %v330
      %v353 = vmul.f32 %v347, %v330
      %v354 = vmul.f32 %v350, %v330
      %v355 = vmul.f32 %v331, %v331
      %v356 = vmul.f32 %v332, %v332
      %v357 = vmul.f32 %v333, %v333
      %v358 = vmul.f32 %v334, %v334
      %v359 = vsub.f32 %v351, %v355
      %v360 = vsub.f32 %v352, %v356
      %v361 = vsub.f32 %v353, %v357
      %v362 = vsub.f32 %v354, %v358
      %v363 = vmax.f32 %v359, 0.0
      %v364 = vmax.f32 %v360, 0.0
      %v365 = vmax.f32 %v361, 0.0
      %v366 = vmax.f32 %v362, 0.0
      %v367 = vsub.f32 %v313, %v331
      %v368 = vsub.f32 %v314, %v332
      %v369 = vsub.f32 %v315, %v333
      %v370 = vsub.f32 %v316, %v334
      %v371 = vadd.f32 %v363, 1e-05
      %v372 = vadd.f32 %v364, 1e-05
      %v373 = vadd.f32 %v365, 1e-05
      %v374 = vadd.f32 %v366, 1e-05
      %v375 = vrsqrt.pop %v371
      %v376 = vrsqrt.pop %v372
      %v377 = vrsqrt.pop %v373
      %v378 = vrsqrt.pop %v374
      %v379 = vmul.f32 %v367, %v375
      %v380 = vmul.f32 %v368, %v376
      %v381 = vmul.f32 %v369, %v377
      %v382 = vmul.f32 %v370, %v378
      %v383 = vmax.f32 %v379, 0.0
      %v384 = vmax.f32 %v380, 0.0
      %v385 = vmax.f32 %v381, 0.0
      %v386 = vmax.f32 %v382, 0.0
      %v387 = vld [vmem:[%s3] sm:$0xf]
      %v388 = vld [vmem:[%s3 + $0x4] sm:$0xf]
      %v389 = vld [vmem:[%s3 + $0x8] sm:$0xf]
      %v390 = vld [vmem:[%s3 + $0xc] sm:$0xf]
      %v391 = vld [vmem:[%s4] sm:$0x1]
      %v392 = vunpack.c.l.bf16 %v391
      %v393 = vpack.c.bf16 %v384, %v383
      %v394 = vpack.c.bf16 %v386, %v385
      %v395 = vlaneseq
      %v396 = vshrl.u32 %v395, 7
      %v397 = vsub.s32 0, %v396
      %v398 = vrot.slane %v392, %v397
      %v403 = vunpack.c.l.b16 %v387
      %v404 = vunpack.c.l.b16 %v388
      %v405 = vunpack.c.l.b16 %v389
      %v406 = vunpack.c.l.b16 %v390
      %v407 = vpack.c.b16 %v404, %v403
      %v408 = vpack.c.b16 %v406, %v405
      %v412 = vsel %vm317, %v393, 0
      %v415 = vsel %vm317, %v394, 0
      %417 = vmatprep.subr.bf16.mxu0 0
      %418 = vmatpush1.bf16.msra.mxu0 %v407
      %419 = vmatprep.subr.bf16.mxu0 0
      %420 = vmatpush1.bf16.msra.mxu0 %v408
      %421 = vmatprep.subr.bf16.mxu0 0
      %422 = vmatpush1.bf16.msra.mxu0 0
      %423 = vmatprep.subr.bf16.mxu0 0
      %424 = vmatpush1.bf16.msra.mxu0 0
      %425 = vmatprep.subr.bf16.mxu0 0
      %426 = vmatpush1.bf16.msra.mxu0 0
      %427 = vmatprep.subr.bf16.mxu0 0
      %428 = vmatpush1.bf16.msra.mxu0 0
      %429 = vmatprep.subr.bf16.mxu0 0
      %430 = vmatpush1.bf16.msra.mxu0 0
      %431 = vmatprep.subr.bf16.mxu0 0
      %432 = vmatpush1.bf16.msra.mxu0 0
      %433 = vmatprep.subr.bf16.mxu0 0
      %434 = vmatpush1.bf16.msra.mxu0 0
      %435 = vmatprep.subr.bf16.mxu0 0
      %436 = vmatpush1.bf16.msra.mxu0 0
      %437 = vmatprep.subr.bf16.mxu0 0
      %438 = vmatpush1.bf16.msra.mxu0 0
      %439 = vmatprep.subr.bf16.mxu0 0
      %440 = vmatpush1.bf16.msra.mxu0 0
      %441 = vmatprep.subr.bf16.mxu0 0
      %442 = vmatpush1.bf16.msra.mxu0 0
      %443 = vmatprep.subr.bf16.mxu0 0
      %444 = vmatpush1.bf16.msra.mxu0 0
      %445 = vmatprep.subr.bf16.mxu0 0
      %446 = vmatpush1.bf16.msra.mxu0 0
      %447 = vmatprep.subr.bf16.mxu0 0
      %448 = vmatpush1.bf16.msra.mxu0 0
      %449 = vmatprep.mubr.bf16.mxu0 0
      %450 = vmatmul.mubr.bf16.gmra.mrb[0].mxu0 %v412
      %v451 = vpop.f32.mrb[0].mxu0
      %v452 = vadd.f32 %v398, %v451
      %v453 = vpop.f32.mrb[0].mxu0
      %v454 = vpop.f32.mrb[0].mxu0
      %v455 = vadd.f32 %v398, %v454
      %v456 = vpop.f32.mrb[0].mxu0
      %457 = vmatprep.mubr.bf16.mxu0 0
      %458 = vmatmul.mubr.bf16.gmra.mrb[0].mxu0 %v415
      %v459 = vpop.f32.mrb[0].mxu0
      %v460 = vadd.f32 %v398, %v459
      %v461 = vpop.f32.mrb[0].mxu0
      %v462 = vpop.f32.mrb[0].mxu0
      %v463 = vadd.f32 %v398, %v462
      %v464 = vpop.f32.mrb[0].mxu0
      %465 = vdwg.mxu0
      %v466 = vmul.f32 %v452, %v452
      %v467 = vmul.f32 %v455, %v455
      %v468 = vmul.f32 %v460, %v460
      %v469 = vmul.f32 %v463, %v463
      %vm470 = vcmask 64512
      %v471 = vsel %vm470, %v466, 0.0
      %472 = vadd.xlane.f32.xlu0 %v471
      %v473 = vpop.xlane.xlu0 %472
      %v474 = vsel %vm470, %v467, 0.0
      %475 = vadd.xlane.f32.xlu0 %v474
      %v476 = vpop.xlane.xlu0 %475
      %v477 = vsel %vm470, %v468, 0.0
      %478 = vadd.xlane.f32.xlu0 %v477
      %v479 = vpop.xlane.xlu0 %478
      %v480 = vsel %vm470, %v469, 0.0
      %481 = vadd.xlane.f32.xlu0 %v480
      %v482 = vpop.xlane.xlu0 %481
      %v483 = vmax.f32 %v473, 1e-24
      %v484 = vmax.f32 %v476, 1e-24
      %v485 = vmax.f32 %v479, 1e-24
      %v486 = vmax.f32 %v482, 1e-24
      %v487 = vrsqrt.pop %v483
      %v488 = vrsqrt.pop %v484
      %v489 = vrsqrt.pop %v485
      %v490 = vrsqrt.pop %v486
      %v491 = vmul.f32 %v452, %v487
      %v492 = vmul.f32 %v455, %v488
      %v493 = vmul.f32 %v460, %v489
      %v494 = vmul.f32 %v463, %v490
      %495 = vst.msk [vmem:[%s226] sm:$0xff] %vm470, %v491
      %496 = vst.msk [vmem:[%s226 + $0x8] sm:$0xff] %vm470, %v492
      %497 = vst.msk [vmem:[%s226 + $0x10] sm:$0xff] %vm470, %v493
      %498 = vst.msk [vmem:[%s226 + $0x18] sm:$0xff] %vm470, %v494
      %s499 = smul.u32 4, %s16
      %p500 = scmp.lt.s32.totalorder %s499, 7
      %s501 = scalar_select %p500, %s499, 7
      %s502 = smul.addr %s501, 8
      %s503 = scalar_lea.vmem %s5, %s502
      // Predicated region
      $region41: #{_lambda_.13} parent=39 // pred_check
        %p504 = pneg %p144
      $region42: #{_lambda_.13} parent=39 // pred_check_branch
        %506 = sbr.rel (%p504) target = $region44
      $region43: #{_lambda_.13} parent=39 // pred_region
        %s507 = smul.u32 4, %s16
      $region44: #{_lambda_.13} parent=39 // pred_fallthru
        _
    $region40: #{_lambda_.13} parent=5 // pred_fallthru
      _
    %p508 = scmp.le.s32.totalorder 2, %s11
    // Predicated region
    $region45: #{_lambda_.13} parent=5 // pred_check
      %p509 = pneg %p508
    $region46: #{_lambda_.13} parent=5 // pred_check_branch
      %511 = sbr.rel (%p509) target = $region48
    $region47: #{_lambda_.13} parent=5 // pred_region
      %s512 = ssub.s32 %s11, 2
      // Predicated region
      $region49: #{_lambda_.13} parent=47 // pred_check
        %p513 = pneg %p150
      $region50: #{_lambda_.13} parent=47 // pred_check_branch
        %515 = sbr.rel (%p513) target = $region52
      $region51: #{_lambda_.13} parent=47 // pred_region
        %s516 = smul.u32 4, %s17
        %p517 = scmp.lt.s32.totalorder %s516, 7
        %s518 = scalar_select %p517, %s516, 7
        %s519 = smul.addr %s518, 8
        %s520 = scalar_lea.vmem %s5, %s519
      $region52: #{_lambda_.13} parent=47 // pred_fallthru
        _
    $region48: #{_lambda_.13} parent=5 // pred_fallthru
      _
  $region6: #{_lambda_.13} parent=0 // loop_footer
    %s15 = sadd.s32 1, %s11
  $region7: #{_lambda_.13} parent=0 // loop_footer_branch
    %10 = sbr.rel target = $region3
  $region8: #{_lambda_.13} parent=0 // loop_exit
    _

// kernel: _lambda_.10
$region0: #{_lambda_.10}
  #allocation0 [shape = 'u32[]', space=smem, size = 0x4, offset = 0x4, fixed_abs, tag = 'smem constant byte address 0x4 - core index']
  #allocation1 [shape = 'u32[144,128]{1,0:T(1,128)}', space=vmem, size = 0x12000, scoped, tag = 'internal scratch']
  %s0 = inlined_call_operand.vmem [shape: bf16[128,16], index: 0, kind: input, shape index: {}]
  %s1 = inlined_call_operand.vmem [shape: bf16[128,16], index: 1, kind: input, shape index: {}]
  %s2 = inlined_call_operand.vmem [shape: bf16[128,16], index: 2, kind: input, shape index: {}]
  %s3 = inlined_call_operand.vmem [shape: bf16[16,32], index: 3, kind: input, shape index: {}]
  %s4 = inlined_call_operand.vmem [shape: bf16[16,32], index: 4, kind: input, shape index: {}]
  %s5 = inlined_call_operand.vmem [shape: bf16[16,32], index: 5, kind: input, shape index: {}]
  %s6 = inlined_call_operand.vmem [shape: bf16[1,32], index: 6, kind: input, shape index: {}]
  %s7 = inlined_call_operand.vmem [shape: bf16[32,16], index: 7, kind: input, shape index: {}]
  %s8 = inlined_call_operand.vmem [shape: bf16[1,16], index: 8, kind: input, shape index: {}]
  %s9 = inlined_call_operand.vmem [shape: bf16[128,16], index: 9, kind: output, shape index: {}]
  %s10 = sld [smem:[#allocation0]]
  $region69: #{_lambda_.10} parent=0
    _
  %s12 = ssub.s32 1, %s10
  %s13 = scalar_select 0, %s12, %s10
  loop: start=0, step=1, limit=4
  $region2: #{_lambda_.10} parent=0 // loop_pre_header
    _
  $region3: #{_lambda_.10} parent=0 // loop_header
    %s15 = sphi 0, %s19
    %p16 = scmp.ge.s32.totalorder %s15, 4
    %s25 = sphi 0, %s27
    %s28 = sphi 0, %s25
    %s29 = sphi 0, %s28
    %s45 = sphi 0, %s29
    %s51 = sphi 0, %s53
    %s54 = sphi 0, %s51
    %s55 = sphi 0, %s54
    %s71 = sphi 0, %s55
    %s77 = sphi 0, %s79
    %s80 = sphi 0, %s77
    %s81 = sphi 0, %s80
    %s97 = sphi 0, %s81
    %s101 = sphi 0, %s101
    %s103 = sphi 0, %s101
    %s104 = sphi 0, %s103
    %s118 = sphi 0, %s104
    %s122 = sphi 0, %s122
    %s124 = sphi 0, %s122
    %s125 = sphi 0, %s124
    %s139 = sphi 0, %s125
    %s143 = sphi 0, %s143
    %s145 = sphi 0, %s143
    %s146 = sphi 0, %s145
    %s160 = sphi 0, %s146
    %s164 = sphi 0, %s164
    %s166 = sphi 0, %s164
    %s167 = sphi 0, %s166
    %s181 = sphi 0, %s167
    %s185 = sphi 0, %s185
    %s187 = sphi 0, %s185
    %s188 = sphi 0, %s187
    %s202 = sphi 0, %s188
    %s206 = sphi 0, %s206
    %s208 = sphi 0, %s206
    %s209 = sphi 0, %s208
    %s223 = sphi 0, %s209
    %s229 = sphi 0, %s231
    %s232 = sphi 0, %s229
    %s233 = sphi 0, %s232
    %s249 = sphi 0, %s233
  $region4: #{_lambda_.10} parent=0 // loop_header_branch
    %18 = sbr.rel (%p16) target = $region8
  $region5: #{_lambda_.10} parent=0 // loop_body
    %s20 = ssub.s32 %s15, 1
    %s21 = ssub.s32 %s15, 2
    %s22 = sadd.s32 %s15, 1
    %s23 = ssub.s32 %s15, %s22
    %p24 = scmp.eq.s32.totalorder %s23, 0
    %s26 = sadd.s32 %s25, 1
    %s27 = scalar_select %p24, %s25, %s26
    %p30 = pneg %p24
    %p31 = scmp.eq.s32.totalorder %s15, 1
    %p32 = por %p30, %p31
    %p33 = scmp.ne.s32.totalorder %s25, %s28
    %p34 = scmp.eq.s32.totalorder %s15, 0
    %p35 = por %p33, %p34
    %p36 = scmp.ne.s32.totalorder %s25, %s28
    %p37 = scmp.eq.s32.totalorder %s20, 1
    %p38 = por %p36, %p37
    %p39 = scmp.ne.s32.totalorder %s28, %s29
    %p40 = scmp.eq.s32.totalorder %s20, 0
    %p41 = por %p39, %p40
    %p42 = scmp.ne.s32.totalorder %s28, %s29
    %p43 = scmp.eq.s32.totalorder %s21, 1
    %p44 = por %p42, %p43
    %p46 = scmp.ne.s32.totalorder %s29, %s45
    %p47 = scmp.eq.s32.totalorder %s21, 0
    %p48 = por %p46, %p47
    %s49 = ssub.s32 %s15, %s22
    %p50 = scmp.eq.s32.totalorder %s49, 0
    %s52 = sadd.s32 %s51, 1
    %s53 = scalar_select %p50, %s51, %s52
    %p56 = pneg %p50
    %p57 = scmp.eq.s32.totalorder %s15, 1
    %p58 = por %p56, %p57
    %p59 = scmp.ne.s32.totalorder %s51, %s54
    %p60 = scmp.eq.s32.totalorder %s15, 0
    %p61 = por %p59, %p60
    %p62 = scmp.ne.s32.totalorder %s51, %s54
    %p63 = scmp.eq.s32.totalorder %s20, 1
    %p64 = por %p62, %p63
    %p65 = scmp.ne.s32.totalorder %s54, %s55
    %p66 = scmp.eq.s32.totalorder %s20, 0
    %p67 = por %p65, %p66
    %p68 = scmp.ne.s32.totalorder %s54, %s55
    %p69 = scmp.eq.s32.totalorder %s21, 1
    %p70 = por %p68, %p69
    %p72 = scmp.ne.s32.totalorder %s55, %s71
    %p73 = scmp.eq.s32.totalorder %s21, 0
    %p74 = por %p72, %p73
    %s75 = ssub.s32 %s15, %s22
    %p76 = scmp.eq.s32.totalorder %s75, 0
    %s78 = sadd.s32 %s77, 1
    %s79 = scalar_select %p76, %s77, %s78
    %p82 = pneg %p76
    %p83 = scmp.eq.s32.totalorder %s15, 1
    %p84 = por %p82, %p83
    %p85 = scmp.ne.s32.totalorder %s77, %s80
    %p86 = scmp.eq.s32.totalorder %s15, 0
    %p87 = por %p85, %p86
    %p88 = scmp.ne.s32.totalorder %s77, %s80
    %p89 = scmp.eq.s32.totalorder %s20, 1
    %p90 = por %p88, %p89
    %p91 = scmp.ne.s32.totalorder %s80, %s81
    %p92 = scmp.eq.s32.totalorder %s20, 0
    %p93 = por %p91, %p92
    %p94 = scmp.ne.s32.totalorder %s80, %s81
    %p95 = scmp.eq.s32.totalorder %s21, 1
    %p96 = por %p94, %p95
    %p98 = scmp.ne.s32.totalorder %s81, %s97
    %p99 = scmp.eq.s32.totalorder %s21, 0
    %p100 = por %p98, %p99
    %s102 = sadd.s32 %s101, 1
    %p105 = scmp.eq.s32.totalorder %s15, 1
    %p106 = scmp.ne.s32.totalorder %s101, %s103
    %p107 = scmp.eq.s32.totalorder %s15, 0
    %p108 = por %p106, %p107
    %p109 = scmp.ne.s32.totalorder %s101, %s103
    %p110 = scmp.eq.s32.totalorder %s20, 1
    %p111 = por %p109, %p110
    %p112 = scmp.ne.s32.totalorder %s103, %s104
    %p113 = scmp.eq.s32.totalorder %s20, 0
    %p114 = por %p112, %p113
    %p115 = scmp.ne.s32.totalorder %s103, %s104
    %p116 = scmp.eq.s32.totalorder %s21, 1
    %p117 = por %p115, %p116
    %p119 = scmp.ne.s32.totalorder %s104, %s118
    %p120 = scmp.eq.s32.totalorder %s21, 0
    %p121 = por %p119, %p120
    %s123 = sadd.s32 %s122, 1
    %p126 = scmp.eq.s32.totalorder %s15, 1
    %p127 = scmp.ne.s32.totalorder %s122, %s124
    %p128 = scmp.eq.s32.totalorder %s15, 0
    %p129 = por %p127, %p128
    %p130 = scmp.ne.s32.totalorder %s122, %s124
    %p131 = scmp.eq.s32.totalorder %s20, 1
    %p132 = por %p130, %p131
    %p133 = scmp.ne.s32.totalorder %s124, %s125
    %p134 = scmp.eq.s32.totalorder %s20, 0
    %p135 = por %p133, %p134
    %p136 = scmp.ne.s32.totalorder %s124, %s125
    %p137 = scmp.eq.s32.totalorder %s21, 1
    %p138 = por %p136, %p137
    %p140 = scmp.ne.s32.totalorder %s125, %s139
    %p141 = scmp.eq.s32.totalorder %s21, 0
    %p142 = por %p140, %p141
    %s144 = sadd.s32 %s143, 1
    %p147 = scmp.eq.s32.totalorder %s15, 1
    %p148 = scmp.ne.s32.totalorder %s143, %s145
    %p149 = scmp.eq.s32.totalorder %s15, 0
    %p150 = por %p148, %p149
    %p151 = scmp.ne.s32.totalorder %s143, %s145
    %p152 = scmp.eq.s32.totalorder %s20, 1
    %p153 = por %p151, %p152
    %p154 = scmp.ne.s32.totalorder %s145, %s146
    %p155 = scmp.eq.s32.totalorder %s20, 0
    %p156 = por %p154, %p155
    %p157 = scmp.ne.s32.totalorder %s145, %s146
    %p158 = scmp.eq.s32.totalorder %s21, 1
    %p159 = por %p157, %p158
    %p161 = scmp.ne.s32.totalorder %s146, %s160
    %p162 = scmp.eq.s32.totalorder %s21, 0
    %p163 = por %p161, %p162
    %s165 = sadd.s32 %s164, 1
    %p168 = scmp.eq.s32.totalorder %s15, 1
    %p169 = scmp.ne.s32.totalorder %s164, %s166
    %p170 = scmp.eq.s32.totalorder %s15, 0
    %p171 = por %p169, %p170
    %p172 = scmp.ne.s32.totalorder %s164, %s166
    %p173 = scmp.eq.s32.totalorder %s20, 1
    %p174 = por %p172, %p173
    %p175 = scmp.ne.s32.totalorder %s166, %s167
    %p176 = scmp.eq.s32.totalorder %s20, 0
    %p177 = por %p175, %p176
    %p178 = scmp.ne.s32.totalorder %s166, %s167
    %p179 = scmp.eq.s32.totalorder %s21, 1
    %p180 = por %p178, %p179
    %p182 = scmp.ne.s32.totalorder %s167, %s181
    %p183 = scmp.eq.s32.totalorder %s21, 0
    %p184 = por %p182, %p183
    %s186 = sadd.s32 %s185, 1
    %p189 = scmp.eq.s32.totalorder %s15, 1
    %p190 = scmp.ne.s32.totalorder %s185, %s187
    %p191 = scmp.eq.s32.totalorder %s15, 0
    %p192 = por %p190, %p191
    %p193 = scmp.ne.s32.totalorder %s185, %s187
    %p194 = scmp.eq.s32.totalorder %s20, 1
    %p195 = por %p193, %p194
    %p196 = scmp.ne.s32.totalorder %s187, %s188
    %p197 = scmp.eq.s32.totalorder %s20, 0
    %p198 = por %p196, %p197
    %p199 = scmp.ne.s32.totalorder %s187, %s188
    %p200 = scmp.eq.s32.totalorder %s21, 1
    %p201 = por %p199, %p200
    %p203 = scmp.ne.s32.totalorder %s188, %s202
    %p204 = scmp.eq.s32.totalorder %s21, 0
    %p205 = por %p203, %p204
    %s207 = sadd.s32 %s206, 1
    %p210 = scmp.eq.s32.totalorder %s15, 1
    %p211 = scmp.ne.s32.totalorder %s206, %s208
    %p212 = scmp.eq.s32.totalorder %s15, 0
    %p213 = por %p211, %p212
    %p214 = scmp.ne.s32.totalorder %s206, %s208
    %p215 = scmp.eq.s32.totalorder %s20, 1
    %p216 = por %p214, %p215
    %p217 = scmp.ne.s32.totalorder %s208, %s209
    %p218 = scmp.eq.s32.totalorder %s20, 0
    %p219 = por %p217, %p218
    %p220 = scmp.ne.s32.totalorder %s208, %s209
    %p221 = scmp.eq.s32.totalorder %s21, 1
    %p222 = por %p220, %p221
    %p224 = scmp.ne.s32.totalorder %s209, %s223
    %p225 = scmp.eq.s32.totalorder %s21, 0
    %p226 = por %p224, %p225
    %s227 = ssub.s32 %s15, %s22
    %p228 = scmp.eq.s32.totalorder %s227, 0
    %s230 = sadd.s32 %s229, 1
    %s231 = scalar_select %p228, %s229, %s230
    %p234 = pneg %p228
    %p235 = scmp.eq.s32.totalorder %s15, 1
    %p236 = por %p234, %p235
    %p237 = scmp.ne.s32.totalorder %s229, %s232
    %p238 = scmp.eq.s32.totalorder %s15, 0
    %p239 = por %p237, %p238
    %p240 = scmp.ne.s32.totalorder %s229, %s232
    %p241 = scmp.eq.s32.totalorder %s20, 1
    %p242 = por %p240, %p241
    %p243 = scmp.ne.s32.totalorder %s232, %s233
    %p244 = scmp.eq.s32.totalorder %s20, 0
    %p245 = por %p243, %p244
    %p246 = scmp.ne.s32.totalorder %s232, %s233
    %p247 = scmp.eq.s32.totalorder %s21, 1
    %p248 = por %p246, %p247
    %p250 = scmp.ne.s32.totalorder %s233, %s249
    %p251 = scmp.eq.s32.totalorder %s21, 0
    %p252 = por %p250, %p251
    %p253 = scmp.le.s32.totalorder 1, %s15
    %p254 = scmp.lt.s32.totalorder %s15, 3
    %p255 = pnand %p253, %p254
    %p256 = pneg %p255
    // Predicated region
    $region9: #{_lambda_.10} parent=5 // pred_check
      _
    $region10: #{_lambda_.10} parent=5 // pred_check_branch
      %258 = sbr.rel (%p255) target = $region12
    $region11: #{_lambda_.10} parent=5 // pred_region
      %s259 = ssub.s32 %s15, 1
      // Predicated region
      $region13: #{_lambda_.10} parent=11 // pred_check
        %p260 = pneg %p114
      $region14: #{_lambda_.10} parent=11 // pred_check_branch
        %262 = sbr.rel (%p260) target = $region16
      $region15: #{_lambda_.10} parent=11 // pred_region
        _
      $region16: #{_lambda_.10} parent=11 // pred_fallthru
        _
      // Predicated region
      $region17: #{_lambda_.10} parent=11 // pred_check
        %p263 = pneg %p135
      $region18: #{_lambda_.10} parent=11 // pred_check_branch
        %265 = sbr.rel (%p263) target = $region20
      $region19: #{_lambda_.10} parent=11 // pred_region
        _
      $region20: #{_lambda_.10} parent=11 // pred_fallthru
        _
      // Predicated region
      $region21: #{_lambda_.10} parent=11 // pred_check
        %p266 = pneg %p156
      $region22: #{_lambda_.10} parent=11 // pred_check_branch
        %268 = sbr.rel (%p266) target = $region24
      $region23: #{_lambda_.10} parent=11 // pred_region
        _
      $region24: #{_lambda_.10} parent=11 // pred_fallthru
        _
      // Predicated region
      $region25: #{_lambda_.10} parent=11 // pred_check
        %p269 = pneg %p177
      $region26: #{_lambda_.10} parent=11 // pred_check_branch
        %271 = sbr.rel (%p269) target = $region28
      $region27: #{_lambda_.10} parent=11 // pred_region
        _
      $region28: #{_lambda_.10} parent=11 // pred_fallthru
        _
      // Predicated region
      $region29: #{_lambda_.10} parent=11 // pred_check
        %p272 = pneg %p198
      $region30: #{_lambda_.10} parent=11 // pred_check_branch
        %274 = sbr.rel (%p272) target = $region32
      $region31: #{_lambda_.10} parent=11 // pred_region
        _
      $region32: #{_lambda_.10} parent=11 // pred_fallthru
        _
      // Predicated region
      $region33: #{_lambda_.10} parent=11 // pred_check
        %p275 = pneg %p219
      $region34: #{_lambda_.10} parent=11 // pred_check_branch
        %277 = sbr.rel (%p275) target = $region36
      $region35: #{_lambda_.10} parent=11 // pred_region
        _
      $region36: #{_lambda_.10} parent=11 // pred_fallthru
        _
    $region12: #{_lambda_.10} parent=5 // pred_fallthru
      _
    %p278 = scmp.lt.s32.totalorder %s15, 2
    // Predicated region
    $region37: #{_lambda_.10} parent=5 // pred_check
      %p279 = pneg %p278
    $region38: #{_lambda_.10} parent=5 // pred_check_branch
      %281 = sbr.rel (%p279) target = $region40
    $region39: #{_lambda_.10} parent=5 // pred_region
      // Predicated region
      $region41: #{_lambda_.10} parent=39 // pred_check
        %p282 = pneg %p35
      $region42: #{_lambda_.10} parent=39 // pred_check_branch
        %284 = sbr.rel (%p282) target = $region44
      $region43: #{_lambda_.10} parent=39 // pred_region
        %s285 = smul.u32 8, %s15
        %p286 = scmp.lt.s32.totalorder %s285, 15
        %s287 = scalar_select %p286, %s285, 15
        %s288 = smul.addr %s287, 4
        %s289 = scalar_lea.vmem %s0, %s288
        %s290 = smul.u32 8, %s15
      $region44: #{_lambda_.10} parent=39 // pred_fallthru
        _
      // Predicated region
      $region45: #{_lambda_.10} parent=39 // pred_check
        %p291 = pneg %p61
      $region46: #{_lambda_.10} parent=39 // pred_check_branch
        %293 = sbr.rel (%p291) target = $region48
      $region47: #{_lambda_.10} parent=39 // pred_region
        %s294 = smul.u32 8, %s15
        %p295 = scmp.lt.s32.totalorder %s294, 15
        %s296 = scalar_select %p295, %s294, 15
        %s297 = smul.addr %s296, 4
        %s298 = scalar_lea.vmem %s1, %s297
        %s299 = smul.u32 8, %s15
      $region48: #{_lambda_.10} parent=39 // pred_fallthru
        _
      // Predicated region
      $region49: #{_lambda_.10} parent=39 // pred_check
        %p300 = pneg %p87
      $region50: #{_lambda_.10} parent=39 // pred_check_branch
        %302 = sbr.rel (%p300) target = $region52
      $region51: #{_lambda_.10} parent=39 // pred_region
        %s303 = smul.u32 8, %s15
        %p304 = scmp.lt.s32.totalorder %s303, 15
        %s305 = scalar_select %p304, %s303, 15
        %s306 = smul.addr %s305, 4
        %s307 = scalar_lea.vmem %s2, %s306
        %s308 = smul.u32 8, %s15
      $region52: #{_lambda_.10} parent=39 // pred_fallthru
        _
    $region40: #{_lambda_.10} parent=5 // pred_fallthru
      _
    %p309 = scmp.le.s32.totalorder 1, %s15
    %p310 = scmp.lt.s32.totalorder %s15, 3
    %p311 = pnand %p309, %p310
    %p312 = pneg %p311
    // Predicated region
    $region53: #{_lambda_.10} parent=5 // pred_check
      _
    $region54: #{_lambda_.10} parent=5 // pred_check_branch
      %314 = sbr.rel (%p311) target = $region56
    $region55: #{_lambda_.10} parent=5 // pred_region
      %s315 = ssub.s32 %s15, 1
      %s316 = smul.u32 8, %s20
      %p317 = scmp.lt.s32.totalorder %s316, 15
      %s318 = scalar_select %p317, %s316, 15
      %s319 = smul.addr %s318, 4
      %s320 = scalar_lea.vmem %s0, %s319
      %p321 = pneg %p41
      %p322 = pneg %p38
      %s323 = smul.u32 8, %s20
      %p324 = scmp.lt.s32.totalorder %s323, 15
      %s325 = scalar_select %p324, %s323, 15
      %s326 = smul.addr %s325, 4
      %s327 = scalar_lea.vmem %s1, %s326
      %p328 = pneg %p67
      %p329 = pneg %p64
      %s330 = smul.u32 8, %s20
      %p331 = scmp.lt.s32.totalorder %s330, 15
      %s332 = scalar_select %p331, %s330, 15
      %s333 = smul.addr %s332, 4
      %s334 = scalar_lea.vmem %s2, %s333
      %p335 = pneg %p93
      %p336 = pneg %p90
      %p337 = pneg %p114
      %p338 = pneg %p111
      %p339 = pneg %p135
      %p340 = pneg %p132
      %p341 = pneg %p156
      %p342 = pneg %p153
      %p343 = pneg %p177
      %p344 = pneg %p174
      %p345 = pneg %p198
      %p346 = pneg %p195
      %p347 = pneg %p219
      %p348 = pneg %p216
      %p349 = pneg %p245
      %p350 = pneg %p242
      %s351 = smul.u32 8, %s20
      %p352 = scmp.lt.s32.totalorder %s351, 15
      %s353 = scalar_select %p352, %s351, 15
      %s354 = smul.addr %s353, 4
      %s355 = scalar_lea.vmem %s9, %s354
      %s356 = smul.u32 8, %s20
      %p357 = scmp.lt.s32.totalorder %s356, 15
      %s358 = scalar_select %p357, %s356, 15
      %s359 = smul.addr %s358, 4
      %s360 = scalar_lea.vmem %s0, %s359
      %s361 = smul.u32 8, %s20
      %s362 = smul.u32 8, %s20
      %p363 = scmp.lt.s32.totalorder %s362, 15
      %s364 = scalar_select %p363, %s362, 15
      %s365 = smul.addr %s364, 4
      %s366 = scalar_lea.vmem %s1, %s365
      %s367 = smul.u32 8, %s20
      %s368 = smul.u32 8, %s20
      %p369 = scmp.lt.s32.totalorder %s368, 15
      %s370 = scalar_select %p369, %s368, 15
      %s371 = smul.addr %s370, 4
      %s372 = scalar_lea.vmem %s2, %s371
      %s373 = smul.u32 8, %s20
      %s374 = smul.u32 8, %s20
      %p375 = scmp.lt.s32.totalorder %s374, 15
      %s376 = scalar_select %p375, %s374, 15
      %s377 = smul.addr %s376, 4
      %s378 = scalar_lea.vmem %s9, %s377
      %s379 = smul.u32 8, %s20
      %v381 = vld [vmem:[%s360] sm:$0xf]
      %v382 = vld [vmem:[%s360 + $0x4] sm:$0xf]
      %v383 = vld [vmem:[%s360 + $0x8] sm:$0xf]
      %v384 = vld [vmem:[%s360 + $0xc] sm:$0xf]
      %v385 = vld [vmem:[%s360 + $0x10] sm:$0xf]
      %v386 = vld [vmem:[%s360 + $0x14] sm:$0xf]
      %v387 = vld [vmem:[%s360 + $0x18] sm:$0xf]
      %v388 = vld [vmem:[%s360 + $0x1c] sm:$0xf]
      %v389 = vld [vmem:[%s366] sm:$0xf]
      %v390 = vld [vmem:[%s366 + $0x4] sm:$0xf]
      %v391 = vld [vmem:[%s366 + $0x8] sm:$0xf]
      %v392 = vld [vmem:[%s366 + $0xc] sm:$0xf]
      %v393 = vld [vmem:[%s366 + $0x10] sm:$0xf]
      %v394 = vld [vmem:[%s366 + $0x14] sm:$0xf]
      %v395 = vld [vmem:[%s366 + $0x18] sm:$0xf]
      %v396 = vld [vmem:[%s366 + $0x1c] sm:$0xf]
      %v397 = vld [vmem:[%s372] sm:$0xf]
      %v398 = vld [vmem:[%s372 + $0x4] sm:$0xf]
      %v399 = vld [vmem:[%s372 + $0x8] sm:$0xf]
      %v400 = vld [vmem:[%s372 + $0xc] sm:$0xf]
      %v401 = vld [vmem:[%s372 + $0x10] sm:$0xf]
      %v402 = vld [vmem:[%s372 + $0x14] sm:$0xf]
      %v403 = vld [vmem:[%s372 + $0x18] sm:$0xf]
      %v404 = vld [vmem:[%s372 + $0x1c] sm:$0xf]
      %v405 = vld [vmem:[%s6] sm:$0x1]
      %v406 = vunpack.c.l.bf16 %v405
      %v407 = vld [vmem:[%s3] sm:$0xf]
      %v408 = vld [vmem:[%s3 + $0x4] sm:$0xf]
      %v417 = vunpack.c.l.b16 %v381
      %v418 = vunpack.c.l.b16 %v382
      %v419 = vunpack.c.l.b16 %v383
      %v420 = vunpack.c.l.b16 %v384
      %v421 = vunpack.c.l.b16 %v385
      %v422 = vunpack.c.l.b16 %v386
      %v423 = vunpack.c.l.b16 %v387
      %v424 = vunpack.c.l.b16 %v388
      %v425 = vpack.c.b16 %v418, %v417
      %v426 = vpack.c.b16 %v420, %v419
      %v427 = vpack.c.b16 %v422, %v421
      %v428 = vpack.c.b16 %v424, %v423
      %v431 = vunpack.c.l.b16 %v407
      %v432 = vunpack.c.l.b16 %v408
      %v433 = vpack.c.b16 %v432, %v431
      %vm435 = vcmask 130048
      %v437 = vsel %vm435, %v425, 0
      %v440 = vsel %vm435, %v426, 0
      %v443 = vsel %vm435, %v427, 0
      %v446 = vsel %vm435, %v428, 0
      %448 = vmatprep.subr.bf16.mxu0 0
      %449 = vmatpush1.bf16.msra.mxu0 %v433
      %450 = vmatprep.subr.bf16.mxu0 0
      %451 = vmatpush1.bf16.msra.mxu0 0
      %452 = vmatprep.subr.bf16.mxu0 0
      %453 = vmatpush1.bf16.msra.mxu0 0
      %454 = vmatprep.subr.bf16.mxu0 0
      %455 = vmatpush1.bf16.msra.mxu0 0
      %456 = vmatprep.subr.bf16.mxu0 0
      %457 = vmatpush1.bf16.msra.mxu0 0
      %458 = vmatprep.subr.bf16.mxu0 0
      %459 = vmatpush1.bf16.msra.mxu0 0
      %460 = vmatprep.subr.bf16.mxu0 0
      %461 = vmatpush1.bf16.msra.mxu0 0
      %462 = vmatprep.subr.bf16.mxu0 0
      %463 = vmatpush1.bf16.msra.mxu0 0
      %464 = vmatprep.subr.bf16.mxu0 0
      %465 = vmatpush1.bf16.msra.mxu0 0
      %466 = vmatprep.subr.bf16.mxu0 0
      %467 = vmatpush1.bf16.msra.mxu0 0
      %468 = vmatprep.subr.bf16.mxu0 0
      %469 = vmatpush1.bf16.msra.mxu0 0
      %470 = vmatprep.subr.bf16.mxu0 0
      %471 = vmatpush1.bf16.msra.mxu0 0
      %472 = vmatprep.subr.bf16.mxu0 0
      %473 = vmatpush1.bf16.msra.mxu0 0
      %474 = vmatprep.subr.bf16.mxu0 0
      %475 = vmatpush1.bf16.msra.mxu0 0
      %476 = vmatprep.subr.bf16.mxu0 0
      %477 = vmatpush1.bf16.msra.mxu0 0
      %478 = vmatprep.subr.bf16.mxu0 0
      %479 = vmatpush1.bf16.msra.mxu0 0
      %480 = vmatprep.mubr.bf16.mxu0 0
      %481 = vmatmul.mubr.bf16.gmra.mrb[0].mxu0 %v437
      %v482 = vpop.f32.mrb[0].mxu0
      %v483 = vadd.f32 0.0, %v482
      %v484 = vpop.f32.mrb[0].mxu0
      %v485 = vpop.f32.mrb[0].mxu0
      %v486 = vadd.f32 0.0, %v485
      %v487 = vpop.f32.mrb[0].mxu0
      %488 = vmatprep.mubr.bf16.mxu0 0
      %489 = vmatmul.mubr.bf16.gmra.mrb[0].mxu0 %v440
      %v490 = vpop.f32.mrb[0].mxu0
      %v491 = vadd.f32 0.0, %v490
      %v492 = vpop.f32.mrb[0].mxu0
      %v493 = vpop.f32.mrb[0].mxu0
      %v494 = vadd.f32 0.0, %v493
      %v495 = vpop.f32.mrb[0].mxu0
      %496 = vmatprep.mubr.bf16.mxu0 0
      %497 = vmatmul.mubr.bf16.gmra.mrb[0].mxu0 %v443
      %v498 = vpop.f32.mrb[0].mxu0
      %v499 = vadd.f32 0.0, %v498
      %v500 = vpop.f32.mrb[0].mxu0
      %v501 = vpop.f32.mrb[0].mxu0
      %v502 = vadd.f32 0.0, %v501
      %v503 = vpop.f32.mrb[0].mxu0
      %504 = vmatprep.mubr.bf16.mxu0 0
      %505 = vmatmul.mubr.bf16.gmra.mrb[0].mxu0 %v446
      %v506 = vpop.f32.mrb[0].mxu0
      %v507 = vadd.f32 0.0, %v506
      %v508 = vpop.f32.mrb[0].mxu0
      %v509 = vpop.f32.mrb[0].mxu0
      %v510 = vadd.f32 0.0, %v509
      %v511 = vpop.f32.mrb[0].mxu0
      %512 = vdwg.mxu0
      %v513 = vlaneseq
      %v514 = vshrl.u32 %v513, 7
      %v515 = vsub.s32 0, %v514
      %v516 = vrot.slane %v406, %v515
      %v517 = vadd.f32 %v516, %v483
      %v518 = vadd.f32 %v516, %v486
      %v519 = vadd.f32 %v516, %v491
      %v520 = vadd.f32 %v516, %v494
      %v521 = vadd.f32 %v516, %v499
      %v522 = vadd.f32 %v516, %v502
      %v523 = vadd.f32 %v516, %v507
      %v524 = vadd.f32 %v516, %v510
      %v525 = vld [vmem:[%s4] sm:$0xf]
      %v526 = vld [vmem:[%s4 + $0x4] sm:$0xf]
      %v535 = vunpack.c.l.b16 %v389
      %v536 = vunpack.c.l.b16 %v390
      %v537 = vunpack.c.l.b16 %v391
      %v538 = vunpack.c.l.b16 %v392
      %v539 = vunpack.c.l.b16 %v393
      %v540 = vunpack.c.l.b16 %v394
      %v541 = vunpack.c.l.b16 %v395
      %v542 = vunpack.c.l.b16 %v396
      %v543 = vpack.c.b16 %v536, %v535
      %v544 = vpack.c.b16 %v538, %v537
      %v545 = vpack.c.b16 %v540, %v539
      %v546 = vpack.c.b16 %v542, %v541
      %v549 = vunpack.c.l.b16 %v525
      %v550 = vunpack.c.l.b16 %v526
      %v551 = vpack.c.b16 %v550, %v549
      %v554 = vsel %vm435, %v543, 0
      %v557 = vsel %vm435, %v544, 0
      %v560 = vsel %vm435, %v545, 0
      %v563 = vsel %vm435, %v546, 0
      %565 = vmatprep.subr.bf16.mxu0 0
      %566 = vmatpush1.bf16.msra.mxu0 %v551
      %567 = vmatprep.subr.bf16.mxu0 0
      %568 = vmatpush1.bf16.msra.mxu0 0
      %569 = vmatprep.subr.bf16.mxu0 0
      %570 = vmatpush1.bf16.msra.mxu0 0
      %571 = vmatprep.subr.bf16.mxu0 0
      %572 = vmatpush1.bf16.msra.mxu0 0
      %573 = vmatprep.subr.bf16.mxu0 0
      %574 = vmatpush1.bf16.msra.mxu0 0
      %575 = vmatprep.subr.bf16.mxu0 0
      %576 = vmatpush1.bf16.msra.mxu0 0
      %577 = vmatprep.subr.bf16.mxu0 0
      %578 = vmatpush1.bf16.msra.mxu0 0
      %579 = vmatprep.subr.bf16.mxu0 0
      %580 = vmatpush1.bf16.msra.mxu0 0
      %581 = vmatprep.subr.bf16.mxu0 0
      %582 = vmatpush1.bf16.msra.mxu0 0
      %583 = vmatprep.subr.bf16.mxu0 0
      %584 = vmatpush1.bf16.msra.mxu0 0
      %585 = vmatprep.subr.bf16.mxu0 0
      %586 = vmatpush1.bf16.msra.mxu0 0
      %587 = vmatprep.subr.bf16.mxu0 0
      %588 = vmatpush1.bf16.msra.mxu0 0
      %589 = vmatprep.subr.bf16.mxu0 0
      %590 = vmatpush1.bf16.msra.mxu0 0
      %591 = vmatprep.subr.bf16.mxu0 0
      %592 = vmatpush1.bf16.msra.mxu0 0
      %593 = vmatprep.subr.bf16.mxu0 0
      %594 = vmatpush1.bf16.msra.mxu0 0
      %595 = vmatprep.subr.bf16.mxu0 0
      %596 = vmatpush1.bf16.msra.mxu0 0
      %597 = vmatprep.mubr.bf16.mxu0 0
      %598 = vmatmul.mubr.bf16.gmra.mrb[0].mxu0 %v554
      %v599 = vpop.f32.mrb[0].mxu0
      %v600 = vadd.f32 0.0, %v599
      %v601 = vpop.f32.mrb[0].mxu0
      %v602 = vpop.f32.mrb[0].mxu0
      %v603 = vadd.f32 0.0, %v602
      %v604 = vpop.f32.mrb[0].mxu0
      %605 = vmatprep.mubr.bf16.mxu0 0
      %606 = vmatmul.mubr.bf16.gmra.mrb[0].mxu0 %v557
      %v607 = vpop.f32.mrb[0].mxu0
      %v608 = vadd.f32 0.0, %v607
      %v609 = vpop.f32.mrb[0].mxu0
      %v610 = vpop.f32.mrb[0].mxu0
      %v611 = vadd.f32 0.0, %v610
      %v612 = vpop.f32.mrb[0].mxu0
      %613 = vmatprep.mubr.bf16.mxu0 0
      %614 = vmatmul.mubr.bf16.gmra.mrb[0].mxu0 %v560
      %v615 = vpop.f32.mrb[0].mxu0
      %v616 = vadd.f32 0.0, %v615
      %v617 = vpop.f32.mrb[0].mxu0
      %v618 = vpop.f32.mrb[0].mxu0
      %v619 = vadd.f32 0.0, %v618
      %v620 = vpop.f32.mrb[0].mxu0
      %621 = vmatprep.mubr.bf16.mxu0 0
      %622 = vmatmul.mubr.bf16.gmra.mrb[0].mxu0 %v563
      %v623 = vpop.f32.mrb[0].mxu0
      %v624 = vadd.f32 0.0, %v623
      %v625 = vpop.f32.mrb[0].mxu0
      %v626 = vpop.f32.mrb[0].mxu0
      %v627 = vadd.f32 0.0, %v626
      %v628 = vpop.f32.mrb[0].mxu0
      %629 = vdwg.mxu0
      %v630 = vadd.f32 %v517, %v600
      %v631 = vadd.f32 %v518, %v603
      %v632 = vadd.f32 %v519, %v608
      %v633 = vadd.f32 %v520, %v611
      %v634 = vadd.f32 %v521, %v616
      %v635 = vadd.f32 %v522, %v619
      %v636 = vadd.f32 %v523, %v624
      %v637 = vadd.f32 %v524, %v627
      %v638 = vld [vmem:[%s5] sm:$0xf]
      %v639 = vld [vmem:[%s5 + $0x4] sm:$0xf]
      %v648 = vunpack.c.l.b16 %v397
      %v649 = vunpack.c.l.b16 %v398
      %v650 = vunpack.c.l.b16 %v399
      %v651 = vunpack.c.l.b16 %v400
      %v652 = vunpack.c.l.b16 %v401
      %v653 = vunpack.c.l.b16 %v402
      %v654 = vunpack.c.l.b16 %v403
      %v655 = vunpack.c.l.b16 %v404
      %v656 = vpack.c.b16 %v649, %v648
      %v657 = vpack.c.b16 %v651, %v650
      %v658 = vpack.c.b16 %v653, %v652
      %v659 = vpack.c.b16 %v655, %v654
      %v662 = vunpack.c.l.b16 %v638
      %v663 = vunpack.c.l.b16 %v639
      %v664 = vpack.c.b16 %v663, %v662
      %v667 = vsel %vm435, %v656, 0
      %v670 = vsel %vm435, %v657, 0
      %v673 = vsel %vm435, %v658, 0
      %v676 = vsel %vm435, %v659, 0
      %678 = vmatprep.subr.bf16.mxu0 0
      %679 = vmatpush1.bf16.msra.mxu0 %v664
      %680 = vmatprep.subr.bf16.mxu0 0
      %681 = vmatpush1.bf16.msra.mxu0 0
      %682 = vmatprep.subr.bf16.mxu0 0
      %683 = vmatpush1.bf16.msra.mxu0 0
      %684 = vmatprep.subr.bf16.mxu0 0
      %685 = vmatpush1.bf16.msra.mxu0 0
      %686 = vmatprep.subr.bf16.mxu0 0
      %687 = vmatpush1.bf16.msra.mxu0 0
      %688 = vmatprep.subr.bf16.mxu0 0
      %689 = vmatpush1.bf16.msra.mxu0 0
      %690 = vmatprep.subr.bf16.mxu0 0
      %691 = vmatpush1.bf16.msra.mxu0 0
      %692 = vmatprep.subr.bf16.mxu0 0
      %693 = vmatpush1.bf16.msra.mxu0 0
      %694 = vmatprep.subr.bf16.mxu0 0
      %695 = vmatpush1.bf16.msra.mxu0 0
      %696 = vmatprep.subr.bf16.mxu0 0
      %697 = vmatpush1.bf16.msra.mxu0 0
      %698 = vmatprep.subr.bf16.mxu0 0
      %699 = vmatpush1.bf16.msra.mxu0 0
      %700 = vmatprep.subr.bf16.mxu0 0
      %701 = vmatpush1.bf16.msra.mxu0 0
      %702 = vmatprep.subr.bf16.mxu0 0
      %703 = vmatpush1.bf16.msra.mxu0 0
      %704 = vmatprep.subr.bf16.mxu0 0
      %705 = vmatpush1.bf16.msra.mxu0 0
      %706 = vmatprep.subr.bf16.mxu0 0
      %707 = vmatpush1.bf16.msra.mxu0 0
      %708 = vmatprep.subr.bf16.mxu0 0
      %709 = vmatpush1.bf16.msra.mxu0 0
      %710 = vmatprep.mubr.bf16.mxu0 0
      %711 = vmatmul.mubr.bf16.gmra.mrb[0].mxu0 %v667
      %v712 = vpop.f32.mrb[0].mxu0
      %v713 = vadd.f32 0.0, %v712
      %v714 = vpop.f32.mrb[0].mxu0
      %v715 = vpop.f32.mrb[0].mxu0
      %v716 = vadd.f32 0.0, %v715
      %v717 = vpop.f32.mrb[0].mxu0
      %718 = vmatprep.mubr.bf16.mxu0 0
      %719 = vmatmul.mubr.bf16.gmra.mrb[0].mxu0 %v670
      %v720 = vpop.f32.mrb[0].mxu0
      %v721 = vadd.f32 0.0, %v720
      %v722 = vpop.f32.mrb[0].mxu0
      %v723 = vpop.f32.mrb[0].mxu0
      %v724 = vadd.f32 0.0, %v723
      %v725 = vpop.f32.mrb[0].mxu0
      %726 = vmatprep.mubr.bf16.mxu0 0
      %727 = vmatmul.mubr.bf16.gmra.mrb[0].mxu0 %v673
      %v728 = vpop.f32.mrb[0].mxu0
      %v729 = vadd.f32 0.0, %v728
      %v730 = vpop.f32.mrb[0].mxu0
      %v731 = vpop.f32.mrb[0].mxu0
      %v732 = vadd.f32 0.0, %v731
      %v733 = vpop.f32.mrb[0].mxu0
      %734 = vmatprep.mubr.bf16.mxu0 0
      %735 = vmatmul.mubr.bf16.gmra.mrb[0].mxu0 %v676
      %v736 = vpop.f32.mrb[0].mxu0
      %v737 = vadd.f32 0.0, %v736
      %v738 = vpop.f32.mrb[0].mxu0
      %v739 = vpop.f32.mrb[0].mxu0
      %v740 = vadd.f32 0.0, %v739
      %v741 = vpop.f32.mrb[0].mxu0
      %742 = vdwg.mxu0
      %v743 = vadd.f32 %v630, %v713
      %v744 = vadd.f32 %v631, %v716
      %v745 = vadd.f32 %v632, %v721
      %v746 = vadd.f32 %v633, %v724
      %v747 = vadd.f32 %v634, %v729
      %v748 = vadd.f32 %v635, %v732
      %v749 = vadd.f32 %v636, %v737
      %v750 = vadd.f32 %v637, %v740
      %vm751 = vcmask 261120
      %v752 = vsel %vm751, %v743, 0.0
      %753 = vadd.xlane.f32.xlu0 %v752
      %v754 = vpop.xlane.xlu0 %753
      %v755 = vsel %vm751, %v744, 0.0
      %756 = vadd.xlane.f32.xlu0 %v755
      %v757 = vpop.xlane.xlu0 %756
      %v758 = vsel %vm751, %v745, 0.0
      %759 = vadd.xlane.f32.xlu0 %v758
      %v760 = vpop.xlane.xlu0 %759
      %v761 = vsel %vm751, %v746, 0.0
      %762 = vadd.xlane.f32.xlu0 %v761
      %v763 = vpop.xlane.xlu0 %762
      %v764 = vsel %vm751, %v747, 0.0
      %765 = vadd.xlane.f32.xlu0 %v764
      %v766 = vpop.xlane.xlu0 %765
      %v767 = vsel %vm751, %v748, 0.0
      %768 = vadd.xlane.f32.xlu0 %v767
      %v769 = vpop.xlane.xlu0 %768
      %v770 = vsel %vm751, %v749, 0.0
      %771 = vadd.xlane.f32.xlu0 %v770
      %v772 = vpop.xlane.xlu0 %771
      %v773 = vsel %vm751, %v750, 0.0
      %774 = vadd.xlane.f32.xlu0 %v773
      %v775 = vpop.xlane.xlu0 %774
      %v776 = vrcp.pop 32.0
      %v777 = vmul.f32 %v754, %v776
      %v778 = vmul.f32 %v757, %v776
      %v779 = vmul.f32 %v760, %v776
      %v780 = vmul.f32 %v763, %v776
      %v781 = vmul.f32 %v766, %v776
      %v782 = vmul.f32 %v769, %v776
      %v783 = vmul.f32 %v772, %v776
      %v784 = vmul.f32 %v775, %v776
      %v785 = vmul.f32 %v743, %v743
      %v786 = vmul.f32 %v744, %v744
      %v787 = vmul.f32 %v745, %v745
      %v788 = vmul.f32 %v746, %v746
      %v789 = vmul.f32 %v747, %v747
      %v790 = vmul.f32 %v748, %v748
      %v791 = vmul.f32 %v749, %v749
      %v792 = vmul.f32 %v750, %v750
      %v793 = vsel %vm751, %v785, 0.0
      %794 = vadd.xlane.f32.xlu0 %v793
      %v795 = vpop.xlane.xlu0 %794
      %v796 = vsel %vm751, %v786, 0.0
      %797 = vadd.xlane.f32.xlu0 %v796
      %v798 = vpop.xlane.xlu0 %797
      %v799 = vsel %vm751, %v787, 0.0
      %800 = vadd.xlane.f32.xlu0 %v799
      %v801 = vpop.xlane.xlu0 %800
      %v802 = vsel %vm751, %v788, 0.0
      %803 = vadd.xlane.f32.xlu0 %v802
      %v804 = vpop.xlane.xlu0 %803
      %v805 = vsel %vm751, %v789, 0.0
      %806 = vadd.xlane.f32.xlu0 %v805
      %v807 = vpop.xlane.xlu0 %806
      %v808 = vsel %vm751, %v790, 0.0
      %809 = vadd.xlane.f32.xlu0 %v808
      %v810 = vpop.xlane.xlu0 %809
      %v811 = vsel %vm751, %v791, 0.0
      %812 = vadd.xlane.f32.xlu0 %v811
      %v813 = vpop.xlane.xlu0 %812
      %v814 = vsel %vm751, %v792, 0.0
      %815 = vadd.xlane.f32.xlu0 %v814
      %v816 = vpop.xlane.xlu0 %815
      %v817 = vmul.f32 %v795, %v776
      %v818 = vmul.f32 %v798, %v776
      %v819 = vmul.f32 %v801, %v776
      %v820 = vmul.f32 %v804, %v776
      %v821 = vmul.f32 %v807, %v776
      %v822 = vmul.f32 %v810, %v776
      %v823 = vmul.f32 %v813, %v776
      %v824 = vmul.f32 %v816, %v776
      %v825 = vmul.f32 %v777, %v777
      %v826 = vmul.f32 %v778, %v778
      %v827 = vmul.f32 %v779, %v779
      %v828 = vmul.f32 %v780, %v780
      %v829 = vmul.f32 %v781, %v781
      %v830 = vmul.f32 %v782, %v782
      %v831 = vmul.f32 %v783, %v783
      %v832 = vmul.f32 %v784, %v784
      %v833 = vsub.f32 %v817, %v825
      %v834 = vsub.f32 %v818, %v826
      %v835 = vsub.f32 %v819, %v827
      %v836 = vsub.f32 %v820, %v828
      %v837 = vsub.f32 %v821, %v829
      %v838 = vsub.f32 %v822, %v830
      %v839 = vsub.f32 %v823, %v831
      %v840 = vsub.f32 %v824, %v832
      %v841 = vmax.f32 %v833, 0.0
      %v842 = vmax.f32 %v834, 0.0
      %v843 = vmax.f32 %v835, 0.0
      %v844 = vmax.f32 %v836, 0.0
      %v845 = vmax.f32 %v837, 0.0
      %v846 = vmax.f32 %v838, 0.0
      %v847 = vmax.f32 %v839, 0.0
      %v848 = vmax.f32 %v840, 0.0
      %v849 = vsub.f32 %v743, %v777
      %v850 = vsub.f32 %v744, %v778
      %v851 = vsub.f32 %v745, %v779
      %v852 = vsub.f32 %v746, %v780
      %v853 = vsub.f32 %v747, %v781
      %v854 = vsub.f32 %v748, %v782
      %v855 = vsub.f32 %v749, %v783
      %v856 = vsub.f32 %v750, %v784
      %v857 = vadd.f32 %v841, 1e-05
      %v858 = vadd.f32 %v842, 1e-05
      %v859 = vadd.f32 %v843, 1e-05
      %v860 = vadd.f32 %v844, 1e-05
      %v861 = vadd.f32 %v845, 1e-05
      %v862 = vadd.f32 %v846, 1e-05
      %v863 = vadd.f32 %v847, 1e-05
      %v864 = vadd.f32 %v848, 1e-05
      %v865 = vrsqrt.pop %v857
      %v866 = vrsqrt.pop %v858
      %v867 = vrsqrt.pop %v859
      %v868 = vrsqrt.pop %v860
      %v869 = vrsqrt.pop %v861
      %v870 = vrsqrt.pop %v862
      %v871 = vrsqrt.pop %v863
      %v872 = vrsqrt.pop %v864
      %v873 = vmul.f32 %v849, %v865
      %v874 = vmul.f32 %v850, %v866
      %v875 = vmul.f32 %v851, %v867
      %v876 = vmul.f32 %v852, %v868
      %v877 = vmul.f32 %v853, %v869
      %v878 = vmul.f32 %v854, %v870
      %v879 = vmul.f32 %v855, %v871
      %v880 = vmul.f32 %v856, %v872
      %v881 = vmax.f32 %v873, 0.0
      %v882 = vmax.f32 %v874, 0.0
      %v883 = vmax.f32 %v875, 0.0
      %v884 = vmax.f32 %v876, 0.0
      %v885 = vmax.f32 %v877, 0.0
      %v886 = vmax.f32 %v878, 0.0
      %v887 = vmax.f32 %v879, 0.0
      %v888 = vmax.f32 %v880, 0.0
      %v889 = vld [vmem:[%s7] sm:$0xf]
      %v890 = vld [vmem:[%s7 + $0x4] sm:$0xf]
      %v891 = vld [vmem:[%s7 + $0x8] sm:$0xf]
      %v892 = vld [vmem:[%s7 + $0xc] sm:$0xf]
      %v893 = vld [vmem:[%s8] sm:$0x1]
      %v894 = vunpack.c.l.bf16 %v893
      %v895 = vpack.c.bf16 %v882, %v881
      %v896 = vpack.c.bf16 %v884, %v883
      %v897 = vpack.c.bf16 %v886, %v885
      %v898 = vpack.c.bf16 %v888, %v887
      %v899 = vlaneseq
      %v900 = vshrl.u32 %v899, 7
      %v901 = vsub.s32 0, %v900
      %v902 = vrot.slane %v894, %v901
      %v907 = vunpack.c.l.b16 %v889
      %v908 = vunpack.c.l.b16 %v890
      %v909 = vunpack.c.l.b16 %v891
      %v910 = vunpack.c.l.b16 %v892
      %v911 = vpack.c.b16 %v908, %v907
      %v912 = vpack.c.b16 %v910, %v909
      %v916 = vsel %vm751, %v895, 0
      %v919 = vsel %vm751, %v896, 0
      %v922 = vsel %vm751, %v897, 0
      %v925 = vsel %vm751, %v898, 0
      %927 = vmatprep.subr.bf16.mxu0 0
      %928 = vmatpush1.bf16.msra.mxu0 %v911
      %929 = vmatprep.subr.bf16.mxu0 0
      %930 = vmatpush1.bf16.msra.mxu0 %v912
      %931 = vmatprep.subr.bf16.mxu0 0
      %932 = vmatpush1.bf16.msra.mxu0 0
      %933 = vmatprep.subr.bf16.mxu0 0
      %934 = vmatpush1.bf16.msra.mxu0 0
      %935 = vmatprep.subr.bf16.mxu0 0
      %936 = vmatpush1.bf16.msra.mxu0 0
      %937 = vmatprep.subr.bf16.mxu0 0
      %938 = vmatpush1.bf16.msra.mxu0 0
      %939 = vmatprep.subr.bf16.mxu0 0
      %940 = vmatpush1.bf16.msra.mxu0 0
      %941 = vmatprep.subr.bf16.mxu0 0
      %942 = vmatpush1.bf16.msra.mxu0 0
      %943 = vmatprep.subr.bf16.mxu0 0
      %944 = vmatpush1.bf16.msra.mxu0 0
      %945 = vmatprep.subr.bf16.mxu0 0
      %946 = vmatpush1.bf16.msra.mxu0 0
      %947 = vmatprep.subr.bf16.mxu0 0
      %948 = vmatpush1.bf16.msra.mxu0 0
      %949 = vmatprep.subr.bf16.mxu0 0
      %950 = vmatpush1.bf16.msra.mxu0 0
      %951 = vmatprep.subr.bf16.mxu0 0
      %952 = vmatpush1.bf16.msra.mxu0 0
      %953 = vmatprep.subr.bf16.mxu0 0
      %954 = vmatpush1.bf16.msra.mxu0 0
      %955 = vmatprep.subr.bf16.mxu0 0
      %956 = vmatpush1.bf16.msra.mxu0 0
      %957 = vmatprep.subr.bf16.mxu0 0
      %958 = vmatpush1.bf16.msra.mxu0 0
      %959 = vmatprep.mubr.bf16.mxu0 0
      %960 = vmatmul.mubr.bf16.gmra.mrb[0].mxu0 %v916
      %v961 = vpop.f32.mrb[0].mxu0
      %v962 = vadd.f32 %v902, %v961
      %v963 = vpop.f32.mrb[0].mxu0
      %v964 = vpop.f32.mrb[0].mxu0
      %v965 = vadd.f32 %v902, %v964
      %v966 = vpop.f32.mrb[0].mxu0
      %967 = vmatprep.mubr.bf16.mxu0 0
      %968 = vmatmul.mubr.bf16.gmra.mrb[0].mxu0 %v919
      %v969 = vpop.f32.mrb[0].mxu0
      %v970 = vadd.f32 %v902, %v969
      %v971 = vpop.f32.mrb[0].mxu0
      %v972 = vpop.f32.mrb[0].mxu0
      %v973 = vadd.f32 %v902, %v972
      %v974 = vpop.f32.mrb[0].mxu0
      %975 = vmatprep.mubr.bf16.mxu0 0
      %976 = vmatmul.mubr.bf16.gmra.mrb[0].mxu0 %v922
      %v977 = vpop.f32.mrb[0].mxu0
      %v978 = vadd.f32 %v902, %v977
      %v979 = vpop.f32.mrb[0].mxu0
      %v980 = vpop.f32.mrb[0].mxu0
      %v981 = vadd.f32 %v902, %v980
      %v982 = vpop.f32.mrb[0].mxu0
      %983 = vmatprep.mubr.bf16.mxu0 0
      %984 = vmatmul.mubr.bf16.gmra.mrb[0].mxu0 %v925
      %v985 = vpop.f32.mrb[0].mxu0
      %v986 = vadd.f32 %v902, %v985
      %v987 = vpop.f32.mrb[0].mxu0
      %v988 = vpop.f32.mrb[0].mxu0
      %v989 = vadd.f32 %v902, %v988
      %v990 = vpop.f32.mrb[0].mxu0
      %991 = vdwg.mxu0
      %v992 = vsel %vm435, %v962, 0.0
      %993 = vadd.xlane.f32.xlu0 %v992
      %v994 = vpop.xlane.xlu0 %993
      %v995 = vsel %vm435, %v965, 0.0
      %996 = vadd.xlane.f32.xlu0 %v995
      %v997 = vpop.xlane.xlu0 %996
      %v998 = vsel %vm435, %v970, 0.0
      %999 = vadd.xlane.f32.xlu0 %v998
      %v1000 = vpop.xlane.xlu0 %999
      %v1001 = vsel %vm435, %v973, 0.0
      %1002 = vadd.xlane.f32.xlu0 %v1001
      %v1003 = vpop.xlane.xlu0 %1002
      %v1004 = vsel %vm435, %v978, 0.0
      %1005 = vadd.xlane.f32.xlu0 %v1004
      %v1006 = vpop.xlane.xlu0 %1005
      %v1007 = vsel %vm435, %v981, 0.0
      %1008 = vadd.xlane.f32.xlu0 %v1007
      %v1009 = vpop.xlane.xlu0 %1008
      %v1010 = vsel %vm435, %v986, 0.0
      %1011 = vadd.xlane.f32.xlu0 %v1010
      %v1012 = vpop.xlane.xlu0 %1011
      %v1013 = vsel %vm435, %v989, 0.0
      %1014 = vadd.xlane.f32.xlu0 %v1013
      %v1015 = vpop.xlane.xlu0 %1014
      %v1016 = vrcp.pop 16.0
      %v1017 = vmul.f32 %v994, %v1016
      %v1018 = vmul.f32 %v997, %v1016
      %v1019 = vmul.f32 %v1000, %v1016
      %v1020 = vmul.f32 %v1003, %v1016
      %v1021 = vmul.f32 %v1006, %v1016
      %v1022 = vmul.f32 %v1009, %v1016
      %v1023 = vmul.f32 %v1012, %v1016
      %v1024 = vmul.f32 %v1015, %v1016
      %v1025 = vmul.f32 %v962, %v962
      %v1026 = vmul.f32 %v965, %v965
      %v1027 = vmul.f32 %v970, %v970
      %v1028 = vmul.f32 %v973, %v973
      %v1029 = vmul.f32 %v978, %v978
      %v1030 = vmul.f32 %v981, %v981
      %v1031 = vmul.f32 %v986, %v986
      %v1032 = vmul.f32 %v989, %v989
      %v1033 = vsel %vm435, %v1025, 0.0
      %1034 = vadd.xlane.f32.xlu0 %v1033
      %v1035 = vpop.xlane.xlu0 %1034
      %v1036 = vsel %vm435, %v1026, 0.0
      %1037 = vadd.xlane.f32.xlu0 %v1036
      %v1038 = vpop.xlane.xlu0 %1037
      %v1039 = vsel %vm435, %v1027, 0.0
      %1040 = vadd.xlane.f32.xlu0 %v1039
      %v1041 = vpop.xlane.xlu0 %1040
      %v1042 = vsel %vm435, %v1028, 0.0
      %1043 = vadd.xlane.f32.xlu0 %v1042
      %v1044 = vpop.xlane.xlu0 %1043
      %v1045 = vsel %vm435, %v1029, 0.0
      %1046 = vadd.xlane.f32.xlu0 %v1045
      %v1047 = vpop.xlane.xlu0 %1046
      %v1048 = vsel %vm435, %v1030, 0.0
      %1049 = vadd.xlane.f32.xlu0 %v1048
      %v1050 = vpop.xlane.xlu0 %1049
      %v1051 = vsel %vm435, %v1031, 0.0
      %1052 = vadd.xlane.f32.xlu0 %v1051
      %v1053 = vpop.xlane.xlu0 %1052
      %v1054 = vsel %vm435, %v1032, 0.0
      %1055 = vadd.xlane.f32.xlu0 %v1054
      %v1056 = vpop.xlane.xlu0 %1055
      %v1057 = vmul.f32 %v1035, %v1016
      %v1058 = vmul.f32 %v1038, %v1016
      %v1059 = vmul.f32 %v1041, %v1016
      %v1060 = vmul.f32 %v1044, %v1016
      %v1061 = vmul.f32 %v1047, %v1016
      %v1062 = vmul.f32 %v1050, %v1016
      %v1063 = vmul.f32 %v1053, %v1016
      %v1064 = vmul.f32 %v1056, %v1016
      %v1065 = vmul.f32 %v1017, %v1017
      %v1066 = vmul.f32 %v1018, %v1018
      %v1067 = vmul.f32 %v1019, %v1019
      %v1068 = vmul.f32 %v1020, %v1020
      %v1069 = vmul.f32 %v1021, %v1021
      %v1070 = vmul.f32 %v1022, %v1022
      %v1071 = vmul.f32 %v1023, %v1023
      %v1072 = vmul.f32 %v1024, %v1024
      %v1073 = vsub.f32 %v1057, %v1065
      %v1074 = vsub.f32 %v1058, %v1066
      %v1075 = vsub.f32 %v1059, %v1067
      %v1076 = vsub.f32 %v1060, %v1068
      %v1077 = vsub.f32 %v1061, %v1069
      %v1078 = vsub.f32 %v1062, %v1070
      %v1079 = vsub.f32 %v1063, %v1071
      %v1080 = vsub.f32 %v1064, %v1072
      %v1081 = vmax.f32 %v1073, 0.0
      %v1082 = vmax.f32 %v1074, 0.0
      %v1083 = vmax.f32 %v1075, 0.0
      %v1084 = vmax.f32 %v1076, 0.0
      %v1085 = vmax.f32 %v1077, 0.0
      %v1086 = vmax.f32 %v1078, 0.0
      %v1087 = vmax.f32 %v1079, 0.0
      %v1088 = vmax.f32 %v1080, 0.0
      %v1089 = vsub.f32 %v962, %v1017
      %v1090 = vsub.f32 %v965, %v1018
      %v1091 = vsub.f32 %v970, %v1019
      %v1092 = vsub.f32 %v973, %v1020
      %v1093 = vsub.f32 %v978, %v1021
      %v1094 = vsub.f32 %v981, %v1022
      %v1095 = vsub.f32 %v986, %v1023
      %v1096 = vsub.f32 %v989, %v1024
      %v1097 = vadd.f32 %v1081, 1e-05
      %v1098 = vadd.f32 %v1082, 1e-05
      %v1099 = vadd.f32 %v1083, 1e-05
      %v1100 = vadd.f32 %v1084, 1e-05
      %v1101 = vadd.f32 %v1085, 1e-05
      %v1102 = vadd.f32 %v1086, 1e-05
      %v1103 = vadd.f32 %v1087, 1e-05
      %v1104 = vadd.f32 %v1088, 1e-05
      %v1105 = vrsqrt.pop %v1097
      %v1106 = vrsqrt.pop %v1098
      %v1107 = vrsqrt.pop %v1099
      %v1108 = vrsqrt.pop %v1100
      %v1109 = vrsqrt.pop %v1101
      %v1110 = vrsqrt.pop %v1102
      %v1111 = vrsqrt.pop %v1103
      %v1112 = vrsqrt.pop %v1104
      %v1113 = vmul.f32 %v1089, %v1105
      %v1114 = vmul.f32 %v1090, %v1106
      %v1115 = vmul.f32 %v1091, %v1107
      %v1116 = vmul.f32 %v1092, %v1108
      %v1117 = vmul.f32 %v1093, %v1109
      %v1118 = vmul.f32 %v1094, %v1110
      %v1119 = vmul.f32 %v1095, %v1111
      %v1120 = vmul.f32 %v1096, %v1112
      %v1121 = vmax.f32 %v1113, 0.0
      %v1122 = vmax.f32 %v1114, 0.0
      %v1123 = vmax.f32 %v1115, 0.0
      %v1124 = vmax.f32 %v1116, 0.0
      %v1125 = vmax.f32 %v1117, 0.0
      %v1126 = vmax.f32 %v1118, 0.0
      %v1127 = vmax.f32 %v1119, 0.0
      %v1128 = vmax.f32 %v1120, 0.0
      %v1129 = vunpack.c.l.bf16 %v397
      %v1130 = vunpack.c.l.bf16 %v398
      %v1131 = vunpack.c.l.bf16 %v399
      %v1132 = vunpack.c.l.bf16 %v400
      %v1133 = vunpack.c.l.bf16 %v401
      %v1134 = vunpack.c.l.bf16 %v402
      %v1135 = vunpack.c.l.bf16 %v403
      %v1136 = vunpack.c.l.bf16 %v404
      %v1137 = vadd.f32 %v1121, %v1129
      %v1138 = vadd.f32 %v1122, %v1130
      %v1139 = vadd.f32 %v1123, %v1131
      %v1140 = vadd.f32 %v1124, %v1132
      %v1141 = vadd.f32 %v1125, %v1133
      %v1142 = vadd.f32 %v1126, %v1134
      %v1143 = vadd.f32 %v1127, %v1135
      %v1144 = vadd.f32 %v1128, %v1136
      %v1145 = vpack.c.bf16 %v1138, %v1137
      %v1146 = vpack.c.bf16 %v1140, %v1139
      %v1147 = vpack.c.bf16 %v1142, %v1141
      %v1148 = vpack.c.bf16 %v1144, %v1143
      %v1153 = vunpack.c.l.b16 %v1145
      %v1154 = vunpack.c.h.b16 %v1145
      %v1155 = vunpack.c.l.b16 %v1146
      %v1156 = vunpack.c.h.b16 %v1146
      %v1157 = vunpack.c.l.b16 %v1147
      %v1158 = vunpack.c.h.b16 %v1147
      %v1159 = vunpack.c.l.b16 %v1148
      %v1160 = vunpack.c.h.b16 %v1148
      %v1161 = vpack.c.b16 %v1153, %v1153
      %v1162 = vpack.c.b16 %v1154, %v1154
      %v1163 = vpack.c.b16 %v1155, %v1155
      %v1164 = vpack.c.b16 %v1156, %v1156
      %v1165 = vpack.c.b16 %v1157, %v1157
      %v1166 = vpack.c.b16 %v1158, %v1158
      %v1167 = vpack.c.b16 %v1159, %v1159
      %v1168 = vpack.c.b16 %v1160, %v1160
      %vm1177 = vcmask 125952
      %1178 = vst.msk [vmem:[%s378] sm:$0xf] %vm1177, %v1161
      %1179 = vst.msk [vmem:[%s378 + $0x4] sm:$0xf] %vm1177, %v1162
      %1180 = vst.msk [vmem:[%s378 + $0x8] sm:$0xf] %vm1177, %v1163
      %1181 = vst.msk [vmem:[%s378 + $0xc] sm:$0xf] %vm1177, %v1164
      %1182 = vst.msk [vmem:[%s378 + $0x10] sm:$0xf] %vm1177, %v1165
      %1183 = vst.msk [vmem:[%s378 + $0x14] sm:$0xf] %vm1177, %v1166
      %1184 = vst.msk [vmem:[%s378 + $0x18] sm:$0xf] %vm1177, %v1167
      %1185 = vst.msk [vmem:[%s378 + $0x1c] sm:$0xf] %vm1177, %v1168
      %s1186 = smul.u32 8, %s20
      %p1187 = scmp.lt.s32.totalorder %s1186, 15
      %s1188 = scalar_select %p1187, %s1186, 15
      %s1189 = smul.addr %s1188, 4
      %s1190 = scalar_lea.vmem %s9, %s1189
      // Predicated region
      $region57: #{_lambda_.10} parent=55 // pred_check
        %p1191 = pneg %p242
      $region58: #{_lambda_.10} parent=55 // pred_check_branch
        %1193 = sbr.rel (%p1191) target = $region60
      $region59: #{_lambda_.10} parent=55 // pred_region
        %s1194 = smul.u32 8, %s20
      $region60: #{_lambda_.10} parent=55 // pred_fallthru
        _
    $region56: #{_lambda_.10} parent=5 // pred_fallthru
      _
    %p1195 = scmp.le.s32.totalorder 2, %s15
    // Predicated region
    $region61: #{_lambda_.10} parent=5 // pred_check
      %p1196 = pneg %p1195
    $region62: #{_lambda_.10} parent=5 // pred_check_branch
      %1198 = sbr.rel (%p1196) target = $region64
    $region63: #{_lambda_.10} parent=5 // pred_region
      %s1199 = ssub.s32 %s15, 2
      // Predicated region
      $region65: #{_lambda_.10} parent=63 // pred_check
        %p1200 = pneg %p248
      $region66: #{_lambda_.10} parent=63 // pred_check_branch
        %1202 = sbr.rel (%p1200) target = $region68
      $region67: #{_lambda_.10} parent=63 // pred_region
        %s1203 = smul.u32 8, %s21
        %p1204 = scmp.lt.s32.totalorder %s1203, 15
        %s1205 = scalar_select %p1204, %s1203, 15
        %s1206 = smul.addr %s1205, 4
        %s1207 = scalar_lea.vmem %s9, %s1206
      $region68: #{_lambda_.10} parent=63 // pred_fallthru
        _
    $region64: #{_lambda_.10} parent=5 // pred_fallthru
      _
  $region6: #{_lambda_.10} parent=0 // loop_footer
    %s19 = sadd.s32 1, %s15
  $region7: #{_lambda_.10} parent=0 // loop_footer_branch
    %14 = sbr.rel target = $region3
  $region8: #{_lambda_.10} parent=0 // loop_exit
    _

</llo_original>
